<compile_context>
chip_gen: v7x
topology: tpu7x:2x2x1
jax: 0.10.0
libtpu: 0.0.40
codegen_flags: <defaults>
</compile_context>

<pallas_src>
import jax
import jax.numpy as jnp
from jax.experimental import pallas as pl
from jax.experimental.pallas import tpu as pltpu

# ------------------------- small synthetic ViT config -------------------------
PATCH = 14
IMG = 28                       # 2x2 = 4 patches (consistent with /14 patching)
C_IN = 3
EMBED = 128                    # lane-dense (real ViT-S/14 uses 384 = 3*128)
DEPTH = 2
HEADS = 2
HEAD_DIM = EMBED // HEADS
MLP_HIDDEN = 4 * EMBED
BATCH = 2
B2 = 2 * BATCH                 # input + target batched through one forward
N_PATCH = (IMG // PATCH) ** 2
SEQ = 1 + N_PATCH              # 5
SEQ_PAD = 8                    # pad sequence to a sublane multiple
ROWS = B2 * SEQ_PAD            # 32
PFEAT = C_IN * PATCH * PATCH   # 588
PFEAT_PAD = 640                # next multiple of 128
LN_EPS = 1e-6
COS_EPS = 1e-8
ATTN_SCALE = 1.0 / (HEAD_DIM ** 0.5)
NEG_INF = -1e30

_VMEM = pl.BlockSpec(memory_space=pltpu.MemorySpace.VMEM)


# ------------------------------ fused kernel ---------------------------------
def _ln(x, g, b):
    # one-pass LayerNorm: var = E[x^2] - E[x]^2, stats in f32
    mu = jnp.mean(x, axis=-1, keepdims=True)
    var = jnp.mean(x * x, axis=-1, keepdims=True) - mu * mu
    return (x - mu) * jax.lax.rsqrt(var + LN_EPS) * g + b


def _mxu(a, w):
    # bf16 MXU matmul with f32 accumulation (weights already bf16)
    return jnp.dot(a.astype(jnp.bfloat16), w, preferred_element_type=jnp.float32)


def _vit_dino_kernel(patches_ref, base_ref, kmask_ref, pw_ref,
                     ln1_g_ref, ln1_b_ref, qkv_w_ref, qkv_b_ref,
                     proj_w_ref, proj_b_ref, ls1_ref,
                     ln2_g_ref, ln2_b_ref, fc1_w_ref, fc1_b_ref,
                     fc2_w_ref, fc2_b_ref, ls2_ref,
                     norm_g_ref, norm_b_ref,
                     loss_ref):
    # patch embed; channel normalization + conv bias + cls + pos folded into pw/base
    x = _mxu(patches_ref[...], pw_ref[...]) + base_ref[...]          # (ROWS, EMBED) f32

    kmask = kmask_ref[...]                                           # (SEQ_PAD, SEQ_PAD)

    for d in range(DEPTH):                 # static unroll; weights stacked over depth
        # --- attention sub-block: LN1 fused into the QKV matmul ---
        h = _ln(x, ln1_g_ref[d], ln1_b_ref[d])
        qkv = _mxu(h, qkv_w_ref[d]) + qkv_b_ref[d]                   # (ROWS, 3*EMBED)

        head_outs = []
        for hh in range(HEADS):            # static head slices — no HBM transposes
            q = qkv[:, hh * HEAD_DIM:(hh + 1) * HEAD_DIM]
            k = qkv[:, EMBED + hh * HEAD_DIM:EMBED + (hh + 1) * HEAD_DIM]
            v = qkv[:, 2 * EMBED + hh * HEAD_DIM:2 * EMBED + (hh + 1) * HEAD_DIM]
            q = q.reshape(B2, SEQ_PAD, HEAD_DIM)
            k = k.reshape(B2, SEQ_PAD, HEAD_DIM)
            v = v.reshape(B2, SEQ_PAD, HEAD_DIM)
            s = jnp.einsum("bqd,bkd->bqk",
                           q.astype(jnp.bfloat16), k.astype(jnp.bfloat16),
                           preferred_element_type=jnp.float32)
            s = s * ATTN_SCALE + kmask     # mask padded key columns
            m = jnp.max(s, axis=-1, keepdims=True)
            p = jnp.exp(s - m)
            p = p * pl.reciprocal(jnp.sum(p, axis=-1, keepdims=True), approx=True)
            o = jnp.einsum("bqk,bkd->bqd",
                           p.astype(jnp.bfloat16), v.astype(jnp.bfloat16),
                           preferred_element_type=jnp.float32)
            head_outs.append(o.reshape(ROWS, HEAD_DIM))
        attn = jnp.concatenate(head_outs, axis=-1)                   # (ROWS, EMBED)

        proj = _mxu(attn, proj_w_ref[d]) + proj_b_ref[d]
        x = x + ls1_ref[d] * proj          # LayerScale + residual fused

        # --- MLP sub-block: LN2 fused into fc1 ---
        h = _ln(x, ln2_g_ref[d], ln2_b_ref[d])
        h = _mxu(h, fc1_w_ref[d]) + fc1_b_ref[d]
        # TODO(synk): DINOv2 uses exact erf-GELU; tanh-approximate GELU used (EUP-friendly).
        h = jax.nn.gelu(h, approximate=True)
        h = _mxu(h, fc2_w_ref[d]) + fc2_b_ref[d]
        x = x + ls2_ref[d] * h             # LayerScale + residual fused

    xf = _ln(x, norm_g_ref[...], norm_b_ref[...])                    # (ROWS, EMBED)

    # cls-token features: rows b*SEQ_PAD (sublane-aligned static slices)
    fi = jnp.concatenate(
        [xf[b * SEQ_PAD:b * SEQ_PAD + 1, :] for b in range(BATCH)], axis=0)
    ft = jnp.concatenate(
        [xf[(BATCH + b) * SEQ_PAD:(BATCH + b) * SEQ_PAD + 1, :] for b in range(BATCH)],
        axis=0)

    # loss = -mean(cosine_similarity)  (torch per-norm eps clamping)
    ni = jnp.maximum(jnp.sqrt(jnp.sum(fi * fi, axis=-1, keepdims=True)), COS_EPS)
    nt = jnp.maximum(jnp.sqrt(jnp.sum(ft * ft, axis=-1, keepdims=True)), COS_EPS)
    cos = jnp.sum((fi / ni) * (ft / nt), axis=-1, keepdims=True)     # (BATCH, 1)
    loss_ref[...] = (-jnp.sum(cos, axis=0, keepdims=True) / BATCH).astype(loss_ref.dtype)


# ------------------------------ wrapper / prep ---------------------------------
def _prep_inputs(inp, tgt, p):
    """Unfold patches, fold Normalize(2*mean-1, 2*std) into the patch-embed weights,
    and lay tokens out as a lane-dense, sequence-padded slab (cls/pad rows zero)."""
    x = jnp.concatenate([inp, tgt], axis=0)                          # (B2, C, H, W)
    Hp = Wp = IMG // PATCH
    patches = x.reshape(B2, C_IN, Hp, PATCH, Wp, PATCH)
    patches = patches.transpose(0, 2, 4, 1, 3, 5).reshape(B2, N_PATCH, PFEAT)

    # (p - m)/s @ W + b  ==  p @ (W * (1/s)) + (b - (m/s) @ W)
    mean_c = 2.0 * jnp.array([0.485, 0.456, 0.406], jnp.float32) - 1.0
    std_c = 2.0 * jnp.array([0.229, 0.224, 0.225], jnp.float32)
    m_vec = jnp.repeat(mean_c, PATCH * PATCH)                        # (PFEAT,)
    s_vec = jnp.repeat(std_c, PATCH * PATCH)
    w_fold = p["patch_w"] * (1.0 / s_vec)[:, None]                   # (PFEAT, EMBED)
    b_fold = p["patch_b"] - (m_vec / s_vec) @ p["patch_w"]           # (EMBED,)

    # pad: cls slot at s=0, pad rows after, feature axis to 128-multiple
    patches_full = jnp.pad(
        patches, ((0, 0), (1, SEQ_PAD - 1 - N_PATCH), (0, PFEAT_PAD - PFEAT)))
    patches_full = patches_full.reshape(ROWS, PFEAT_PAD)
    pw = jnp.pad(w_fold, ((0, PFEAT_PAD - PFEAT), (0, 0))).astype(jnp.bfloat16)

    # additive base: cls+pos at s=0, pos+folded_bias at patch rows, zero at pad rows
    # TODO(synk): real DINOv2 bicubically interpolates pos_embed for non-518 inputs.
    base_rows = jnp.zeros((SEQ_PAD, EMBED), jnp.float32)
    base_rows = base_rows.at[0].set(p["cls_token"][0, 0] + p["pos_embed"][0, 0])
    base_rows = base_rows.at[1:SEQ].set(p["pos_embed"][0, 1:SEQ] + b_fold[None, :])
    base = jnp.tile(base_rows[None], (B2, 1, 1)).reshape(ROWS, EMBED)

    kidx = jax.lax.broadcasted_iota(jnp.int32, (SEQ_PAD, SEQ_PAD), 1)
    kmask = jnp.where(kidx < SEQ, 0.0, NEG_INF).astype(jnp.float32)
    return patches_full, base, kmask, pw


def vit_dino_loss(inp, tgt, params):
    patches_full, base, kmask, pw = _prep_inputs(inp, tgt, params)
    b = params["blocks"]
    args = (patches_full, base, kmask, pw,
            b["ln1_g"], b["ln1_b"], b["qkv_w"], b["qkv_b"],
            b["proj_w"], b["proj_b"], b["ls1"],
            b["ln2_g"], b["ln2_b"], b["fc1_w"], b["fc1_b"],
            b["fc2_w"], b["fc2_b"], b["ls2"],
            params["norm_g"], params["norm_b"])
    loss = pl.pallas_call(
        _vit_dino_kernel,
        out_shape=jax.ShapeDtypeStruct((1, 1), jnp.float32),
        in_specs=[_VMEM] * len(args),
        out_specs=_VMEM,
        compiler_params=pltpu.CompilerParams(vmem_limit_bytes=32 * 1024 * 1024),
    )(*args)
    return loss[0, 0]


# ------------------------------ deterministic params ----------------------------
def init_params(key):
    ks = jax.random.split(key, 7)

    def nrm(k, shape, scale=0.02):
        return (scale * jax.random.normal(k, shape)).astype(jnp.float32)

    blocks = {
        "ln1_g": jnp.ones((DEPTH, 1, EMBED), jnp.float32),
        "ln1_b": jnp.zeros((DEPTH, 1, EMBED), jnp.float32),
        "qkv_w": nrm(ks[3], (DEPTH, EMBED, 3 * EMBED)).astype(jnp.bfloat16),
        "qkv_b": jnp.zeros((DEPTH, 1, 3 * EMBED), jnp.float32),
        "proj_w": nrm(ks[4], (DEPTH, EMBED, EMBED)).astype(jnp.bfloat16),
        "proj_b": jnp.zeros((DEPTH, 1, EMBED), jnp.float32),
        "ls1": jnp.full((DEPTH, 1, EMBED), 0.1, jnp.float32),
        "ln2_g": jnp.ones((DEPTH, 1, EMBED), jnp.float32),
        "ln2_b": jnp.zeros((DEPTH, 1, EMBED), jnp.float32),
        "fc1_w": nrm(ks[5], (DEPTH, EMBED, MLP_HIDDEN)).astype(jnp.bfloat16),
        "fc1_b": jnp.zeros((DEPTH, 1, MLP_HIDDEN), jnp.float32),
        "fc2_w": nrm(ks[6], (DEPTH, MLP_HIDDEN, EMBED)).astype(jnp.bfloat16),
        "fc2_b": jnp.zeros((DEPTH, 1, EMBED), jnp.float32),
        "ls2": jnp.full((DEPTH, 1, EMBED), 0.1, jnp.float32),
    }
    return {
        "patch_w": nrm(ks[0], (PFEAT, EMBED)),
        "patch_b": jnp.zeros((EMBED,), jnp.float32),
        "cls_token": nrm(ks[1], (1, 1, EMBED)),
        "pos_embed": nrm(ks[2], (1, SEQ, EMBED)),
        "norm_g": jnp.ones((1, EMBED), jnp.float32),
        "norm_b": jnp.zeros((1, EMBED), jnp.float32),
        "blocks": blocks,
    }


# ------------------------------------- main --------------------------------------
if __name__ == "__main__":
    key = jax.random.PRNGKey(0)
    k_in, k_tgt, k_par = jax.random.split(key, 3)

    # Images in [-1, 1] (the module expects 2*x-1 style inputs).
    inp = jax.random.uniform(k_in, (BATCH, C_IN, IMG, IMG), jnp.float32, -1.0, 1.0)
    tgt = jax.random.uniform(k_tgt, (BATCH, C_IN, IMG, IMG), jnp.float32, -1.0, 1.0)

    params = init_params(k_par)

    loss_fn = jax.jit(vit_dino_loss)
    loss = loss_fn(inp, tgt, params)
    jax.block_until_ready(loss)

    assert loss.shape == () and jnp.isfinite(loss)
    print("KERNEL_OK")
</pallas_src>

<mosaic_0001>
module attributes {stable_mosaic.version = 11 : i64} {
  func.func @_vit_dino_kernel(%arg0: memref<32x640xf32, #tpu.memory_space<vmem>>, %arg1: memref<32x128xf32, #tpu.memory_space<vmem>>, %arg2: memref<8x8xf32, #tpu.memory_space<vmem>>, %arg3: memref<640x128xbf16, #tpu.memory_space<vmem>>, %arg4: memref<2x1x128xf32, #tpu.memory_space<vmem>>, %arg5: memref<2x1x128xf32, #tpu.memory_space<vmem>>, %arg6: memref<2x128x384xbf16, #tpu.memory_space<vmem>>, %arg7: memref<2x1x384xf32, #tpu.memory_space<vmem>>, %arg8: memref<2x128x128xbf16, #tpu.memory_space<vmem>>, %arg9: memref<2x1x128xf32, #tpu.memory_space<vmem>>, %arg10: memref<2x1x128xf32, #tpu.memory_space<vmem>>, %arg11: memref<2x1x128xf32, #tpu.memory_space<vmem>>, %arg12: memref<2x1x128xf32, #tpu.memory_space<vmem>>, %arg13: memref<2x128x512xbf16, #tpu.memory_space<vmem>>, %arg14: memref<2x1x512xf32, #tpu.memory_space<vmem>>, %arg15: memref<2x512x128xbf16, #tpu.memory_space<vmem>>, %arg16: memref<2x1x128xf32, #tpu.memory_space<vmem>>, %arg17: memref<2x1x128xf32, #tpu.memory_space<vmem>>, %arg18: memref<1x128xf32, #tpu.memory_space<vmem>>, %arg19: memref<1x128xf32, #tpu.memory_space<vmem>>, %arg20: memref<1x1xf32, #tpu.memory_space<vmem>>) attributes {dimension_semantics = [], scalar_prefetch = 0 : i64, scratch_operands = 0 : i64, tpu.core_type = #tpu.core_type<tc>} {
    %c0 = arith.constant 0 : index
    %c0_0 = arith.constant 0 : index
    %0 = vector.load %arg0[%c0, %c0_0] : memref<32x640xf32, #tpu.memory_space<vmem>>, vector<32x640xf32>
    %c0_1 = arith.constant 0 : index
    %c0_2 = arith.constant 0 : index
    %1 = vector.load %arg3[%c0_1, %c0_2] : memref<640x128xbf16, #tpu.memory_space<vmem>>, vector<640x128xbf16>
    %2 = arith.truncf %0 : vector<32x640xf32> to vector<32x640xbf16>
    %cst = arith.constant dense<0.000000e+00> : vector<32x128xf32>
    %3 = tpu.matmul %2, %1, %cst {dimension_numbers = #tpu.dot_dimension_numbers<[1], [0], [0], [1], [0, 0, 1, 1], [], []>} : vector<32x640xbf16>, vector<640x128xbf16>, vector<32x128xf32> -> vector<32x128xf32>
    %c0_3 = arith.constant 0 : index
    %c0_4 = arith.constant 0 : index
    %4 = vector.load %arg1[%c0_3, %c0_4] : memref<32x128xf32, #tpu.memory_space<vmem>>, vector<32x128xf32>
    %5 = arith.addf %3, %4 : vector<32x128xf32>
    %c0_5 = arith.constant 0 : index
    %c0_6 = arith.constant 0 : index
    %6 = vector.load %arg2[%c0_5, %c0_6] : memref<8x8xf32, #tpu.memory_space<vmem>>, vector<8x8xf32>
    %c0_7 = arith.constant 0 : index
    %c0_8 = arith.constant 0 : index
    %c0_9 = arith.constant 0 : index
    %7 = vector.load %arg4[%c0_7, %c0_8, %c0_9] : memref<2x1x128xf32, #tpu.memory_space<vmem>>, vector<1x1x128xf32>
    %8 = vector.shape_cast %7 : vector<1x1x128xf32> to vector<1x128xf32>
    %c0_10 = arith.constant 0 : index
    %c0_11 = arith.constant 0 : index
    %c0_12 = arith.constant 0 : index
    %9 = vector.load %arg5[%c0_10, %c0_11, %c0_12] : memref<2x1x128xf32, #tpu.memory_space<vmem>>, vector<1x1x128xf32>
    %10 = vector.shape_cast %9 : vector<1x1x128xf32> to vector<1x128xf32>
    %cst_13 = arith.constant dense<0.000000e+00> : vector<32xf32>
    %11 = vector.multi_reduction <add>, %5, %cst_13 [1] : vector<32x128xf32> to vector<32xf32>
    %12 = vector.shape_cast %11 : vector<32xf32> to vector<32x1xf32>
    %cst_14 = arith.constant 1.280000e+02 : f32
    %13 = vector.broadcast %cst_14 : f32 to vector<32x1xf32>
    %14 = arith.divf %12, %13 : vector<32x1xf32>
    %15 = arith.mulf %5, %5 : vector<32x128xf32>
    %cst_15 = arith.constant dense<0.000000e+00> : vector<32xf32>
    %16 = vector.multi_reduction <add>, %15, %cst_15 [1] : vector<32x128xf32> to vector<32xf32>
    %17 = vector.shape_cast %16 : vector<32xf32> to vector<32x1xf32>
    %cst_16 = arith.constant 1.280000e+02 : f32
    %18 = vector.broadcast %cst_16 : f32 to vector<32x1xf32>
    %19 = arith.divf %17, %18 : vector<32x1xf32>
    %20 = arith.mulf %14, %14 : vector<32x1xf32>
    %21 = arith.subf %19, %20 : vector<32x1xf32>
    %22 = vector.broadcast %14 : vector<32x1xf32> to vector<32x128xf32>
    %23 = arith.subf %5, %22 : vector<32x128xf32>
    %cst_17 = arith.constant 9.99999997E-7 : f32
    %24 = vector.broadcast %cst_17 : f32 to vector<32x1xf32>
    %25 = arith.addf %21, %24 : vector<32x1xf32>
    %26 = math.rsqrt %25 : vector<32x1xf32>
    %27 = vector.broadcast %26 : vector<32x1xf32> to vector<32x128xf32>
    %28 = arith.mulf %23, %27 : vector<32x128xf32>
    %29 = vector.broadcast %8 : vector<1x128xf32> to vector<32x128xf32>
    %30 = arith.mulf %28, %29 : vector<32x128xf32>
    %31 = vector.broadcast %10 : vector<1x128xf32> to vector<32x128xf32>
    %32 = arith.addf %30, %31 : vector<32x128xf32>
    %c0_18 = arith.constant 0 : index
    %c0_19 = arith.constant 0 : index
    %c0_20 = arith.constant 0 : index
    %33 = vector.load %arg6[%c0_18, %c0_19, %c0_20] : memref<2x128x384xbf16, #tpu.memory_space<vmem>>, vector<1x128x384xbf16>
    %34 = vector.shape_cast %33 : vector<1x128x384xbf16> to vector<128x384xbf16>
    %35 = arith.truncf %32 : vector<32x128xf32> to vector<32x128xbf16>
    %cst_21 = arith.constant dense<0.000000e+00> : vector<32x384xf32>
    %36 = tpu.matmul %35, %34, %cst_21 {dimension_numbers = #tpu.dot_dimension_numbers<[1], [0], [0], [1], [0, 0, 1, 1], [], []>} : vector<32x128xbf16>, vector<128x384xbf16>, vector<32x384xf32> -> vector<32x384xf32>
    %c0_22 = arith.constant 0 : index
    %c0_23 = arith.constant 0 : index
    %c0_24 = arith.constant 0 : index
    %37 = vector.load %arg7[%c0_22, %c0_23, %c0_24] : memref<2x1x384xf32, #tpu.memory_space<vmem>>, vector<1x1x384xf32>
    %38 = vector.shape_cast %37 : vector<1x1x384xf32> to vector<1x384xf32>
    %39 = vector.broadcast %38 : vector<1x384xf32> to vector<32x384xf32>
    %40 = arith.addf %36, %39 : vector<32x384xf32>
    %41 = vector.extract_strided_slice %40 {offsets = [0, 0], sizes = [32, 64], strides = [1, 1]} : vector<32x384xf32> to vector<32x64xf32>
    %42 = vector.extract_strided_slice %40 {offsets = [0, 128], sizes = [32, 64], strides = [1, 1]} : vector<32x384xf32> to vector<32x64xf32>
    %43 = vector.extract_strided_slice %40 {offsets = [0, 256], sizes = [32, 64], strides = [1, 1]} : vector<32x384xf32> to vector<32x64xf32>
    %44 = vector.shape_cast %41 : vector<32x64xf32> to vector<4x8x64xf32>
    %45 = vector.shape_cast %42 : vector<32x64xf32> to vector<4x8x64xf32>
    %46 = vector.shape_cast %43 : vector<32x64xf32> to vector<4x8x64xf32>
    %47 = arith.truncf %44 : vector<4x8x64xf32> to vector<4x8x64xbf16>
    %48 = arith.truncf %45 : vector<4x8x64xf32> to vector<4x8x64xbf16>
    "tpu.trace_start"() <{level = 10 : i32, message = "bqd,bkd->bqk"}> : () -> ()
    %cst_25 = arith.constant dense<0.000000e+00> : vector<4x8x8xf32>
    %49 = tpu.matmul %47, %48, %cst_25 {dimension_numbers = #tpu.dot_dimension_numbers<[2], [2], [1], [1], [0, 0, 0, 1, 1, 1], [0], [0]>} : vector<4x8x64xbf16>, vector<4x8x64xbf16>, vector<4x8x8xf32> -> vector<4x8x8xf32>
    "tpu.trace_stop"() : () -> ()
    %cst_26 = arith.constant 1.250000e-01 : f32
    %50 = vector.broadcast %cst_26 : f32 to vector<4x8x8xf32>
    %51 = arith.mulf %49, %50 : vector<4x8x8xf32>
    %52 = vector.shape_cast %6 : vector<8x8xf32> to vector<1x8x8xf32>
    %53 = vector.broadcast %52 : vector<1x8x8xf32> to vector<4x8x8xf32>
    %54 = arith.addf %51, %53 : vector<4x8x8xf32>
    %cst_27 = arith.constant dense<0xFF800000> : vector<4x8xf32>
    %55 = vector.multi_reduction <maximumf>, %54, %cst_27 [2] : vector<4x8x8xf32> to vector<4x8xf32>
    %56 = vector.shape_cast %55 : vector<4x8xf32> to vector<4x8x1xf32>
    %57 = vector.broadcast %56 : vector<4x8x1xf32> to vector<4x8x8xf32>
    %58 = arith.subf %54, %57 : vector<4x8x8xf32>
    %59 = math.exp %58 : vector<4x8x8xf32>
    %cst_28 = arith.constant dense<0.000000e+00> : vector<4x8xf32>
    %60 = vector.multi_reduction <add>, %59, %cst_28 [2] : vector<4x8x8xf32> to vector<4x8xf32>
    %61 = vector.shape_cast %60 : vector<4x8xf32> to vector<4x8x1xf32>
    %62 = tpu.reciprocal %61 {approx = true} : vector<4x8x1xf32> -> vector<4x8x1xf32>
    %63 = vector.broadcast %62 : vector<4x8x1xf32> to vector<4x8x8xf32>
    %64 = arith.mulf %59, %63 : vector<4x8x8xf32>
    %65 = arith.truncf %64 : vector<4x8x8xf32> to vector<4x8x8xbf16>
    %66 = arith.truncf %46 : vector<4x8x64xf32> to vector<4x8x64xbf16>
    "tpu.trace_start"() <{level = 10 : i32, message = "bqk,bkd->bqd"}> : () -> ()
    %cst_29 = arith.constant dense<0.000000e+00> : vector<4x8x64xf32>
    %67 = tpu.matmul %65, %66, %cst_29 {dimension_numbers = #tpu.dot_dimension_numbers<[2], [1], [1], [2], [0, 0, 0, 1, 1, 2], [0], [0]>} : vector<4x8x8xbf16>, vector<4x8x64xbf16>, vector<4x8x64xf32> -> vector<4x8x64xf32>
    "tpu.trace_stop"() : () -> ()
    %68 = vector.shape_cast %67 : vector<4x8x64xf32> to vector<32x64xf32>
    %69 = vector.extract_strided_slice %40 {offsets = [0, 64], sizes = [32, 64], strides = [1, 1]} : vector<32x384xf32> to vector<32x64xf32>
    %70 = vector.extract_strided_slice %40 {offsets = [0, 192], sizes = [32, 64], strides = [1, 1]} : vector<32x384xf32> to vector<32x64xf32>
    %71 = vector.extract_strided_slice %40 {offsets = [0, 320], sizes = [32, 64], strides = [1, 1]} : vector<32x384xf32> to vector<32x64xf32>
    %72 = vector.shape_cast %69 : vector<32x64xf32> to vector<4x8x64xf32>
    %73 = vector.shape_cast %70 : vector<32x64xf32> to vector<4x8x64xf32>
    %74 = vector.shape_cast %71 : vector<32x64xf32> to vector<4x8x64xf32>
    %75 = arith.truncf %72 : vector<4x8x64xf32> to vector<4x8x64xbf16>
    %76 = arith.truncf %73 : vector<4x8x64xf32> to vector<4x8x64xbf16>
    "tpu.trace_start"() <{level = 10 : i32, message = "bqd,bkd->bqk"}> : () -> ()
    %cst_30 = arith.constant dense<0.000000e+00> : vector<4x8x8xf32>
    %77 = tpu.matmul %75, %76, %cst_30 {dimension_numbers = #tpu.dot_dimension_numbers<[2], [2], [1], [1], [0, 0, 0, 1, 1, 1], [0], [0]>} : vector<4x8x64xbf16>, vector<4x8x64xbf16>, vector<4x8x8xf32> -> vector<4x8x8xf32>
    "tpu.trace_stop"() : () -> ()
    %cst_31 = arith.constant 1.250000e-01 : f32
    %78 = vector.broadcast %cst_31 : f32 to vector<4x8x8xf32>
    %79 = arith.mulf %77, %78 : vector<4x8x8xf32>
    %80 = vector.shape_cast %6 : vector<8x8xf32> to vector<1x8x8xf32>
    %81 = vector.broadcast %80 : vector<1x8x8xf32> to vector<4x8x8xf32>
    %82 = arith.addf %79, %81 : vector<4x8x8xf32>
    %cst_32 = arith.constant dense<0xFF800000> : vector<4x8xf32>
    %83 = vector.multi_reduction <maximumf>, %82, %cst_32 [2] : vector<4x8x8xf32> to vector<4x8xf32>
    %84 = vector.shape_cast %83 : vector<4x8xf32> to vector<4x8x1xf32>
    %85 = vector.broadcast %84 : vector<4x8x1xf32> to vector<4x8x8xf32>
    %86 = arith.subf %82, %85 : vector<4x8x8xf32>
    %87 = math.exp %86 : vector<4x8x8xf32>
    %cst_33 = arith.constant dense<0.000000e+00> : vector<4x8xf32>
    %88 = vector.multi_reduction <add>, %87, %cst_33 [2] : vector<4x8x8xf32> to vector<4x8xf32>
    %89 = vector.shape_cast %88 : vector<4x8xf32> to vector<4x8x1xf32>
    %90 = tpu.reciprocal %89 {approx = true} : vector<4x8x1xf32> -> vector<4x8x1xf32>
    %91 = vector.broadcast %90 : vector<4x8x1xf32> to vector<4x8x8xf32>
    %92 = arith.mulf %87, %91 : vector<4x8x8xf32>
    %93 = arith.truncf %92 : vector<4x8x8xf32> to vector<4x8x8xbf16>
    %94 = arith.truncf %74 : vector<4x8x64xf32> to vector<4x8x64xbf16>
    "tpu.trace_start"() <{level = 10 : i32, message = "bqk,bkd->bqd"}> : () -> ()
    %cst_34 = arith.constant dense<0.000000e+00> : vector<4x8x64xf32>
    %95 = tpu.matmul %93, %94, %cst_34 {dimension_numbers = #tpu.dot_dimension_numbers<[2], [1], [1], [2], [0, 0, 0, 1, 1, 2], [0], [0]>} : vector<4x8x8xbf16>, vector<4x8x64xbf16>, vector<4x8x64xf32> -> vector<4x8x64xf32>
    "tpu.trace_stop"() : () -> ()
    %96 = vector.shape_cast %95 : vector<4x8x64xf32> to vector<32x64xf32>
    %97 = tpu.concatenate %68, %96 in 1 : vector<32x64xf32>, vector<32x64xf32> -> vector<32x128xf32>
    %c0_35 = arith.constant 0 : index
    %c0_36 = arith.constant 0 : index
    %c0_37 = arith.constant 0 : index
    %98 = vector.load %arg8[%c0_35, %c0_36, %c0_37] : memref<2x128x128xbf16, #tpu.memory_space<vmem>>, vector<1x128x128xbf16>
    %99 = vector.shape_cast %98 : vector<1x128x128xbf16> to vector<128x128xbf16>
    %100 = arith.truncf %97 : vector<32x128xf32> to vector<32x128xbf16>
    %cst_38 = arith.constant dense<0.000000e+00> : vector<32x128xf32>
    %101 = tpu.matmul %100, %99, %cst_38 {dimension_numbers = #tpu.dot_dimension_numbers<[1], [0], [0], [1], [0, 0, 1, 1], [], []>} : vector<32x128xbf16>, vector<128x128xbf16>, vector<32x128xf32> -> vector<32x128xf32>
    %c0_39 = arith.constant 0 : index
    %c0_40 = arith.constant 0 : index
    %c0_41 = arith.constant 0 : index
    %102 = vector.load %arg9[%c0_39, %c0_40, %c0_41] : memref<2x1x128xf32, #tpu.memory_space<vmem>>, vector<1x1x128xf32>
    %103 = vector.shape_cast %102 : vector<1x1x128xf32> to vector<1x128xf32>
    %104 = vector.broadcast %103 : vector<1x128xf32> to vector<32x128xf32>
    %105 = arith.addf %101, %104 : vector<32x128xf32>
    %c0_42 = arith.constant 0 : index
    %c0_43 = arith.constant 0 : index
    %c0_44 = arith.constant 0 : index
    %106 = vector.load %arg10[%c0_42, %c0_43, %c0_44] : memref<2x1x128xf32, #tpu.memory_space<vmem>>, vector<1x1x128xf32>
    %107 = vector.shape_cast %106 : vector<1x1x128xf32> to vector<1x128xf32>
    %108 = vector.broadcast %107 : vector<1x128xf32> to vector<32x128xf32>
    %109 = arith.mulf %108, %105 : vector<32x128xf32>
    %110 = arith.addf %5, %109 : vector<32x128xf32>
    %c0_45 = arith.constant 0 : index
    %c0_46 = arith.constant 0 : index
    %c0_47 = arith.constant 0 : index
    %111 = vector.load %arg11[%c0_45, %c0_46, %c0_47] : memref<2x1x128xf32, #tpu.memory_space<vmem>>, vector<1x1x128xf32>
    %112 = vector.shape_cast %111 : vector<1x1x128xf32> to vector<1x128xf32>
    %c0_48 = arith.constant 0 : index
    %c0_49 = arith.constant 0 : index
    %c0_50 = arith.constant 0 : index
    %113 = vector.load %arg12[%c0_48, %c0_49, %c0_50] : memref<2x1x128xf32, #tpu.memory_space<vmem>>, vector<1x1x128xf32>
    %114 = vector.shape_cast %113 : vector<1x1x128xf32> to vector<1x128xf32>
    %cst_51 = arith.constant dense<0.000000e+00> : vector<32xf32>
    %115 = vector.multi_reduction <add>, %110, %cst_51 [1] : vector<32x128xf32> to vector<32xf32>
    %116 = vector.shape_cast %115 : vector<32xf32> to vector<32x1xf32>
    %cst_52 = arith.constant 1.280000e+02 : f32
    %117 = vector.broadcast %cst_52 : f32 to vector<32x1xf32>
    %118 = arith.divf %116, %117 : vector<32x1xf32>
    %119 = arith.mulf %110, %110 : vector<32x128xf32>
    %cst_53 = arith.constant dense<0.000000e+00> : vector<32xf32>
    %120 = vector.multi_reduction <add>, %119, %cst_53 [1] : vector<32x128xf32> to vector<32xf32>
    %121 = vector.shape_cast %120 : vector<32xf32> to vector<32x1xf32>
    %cst_54 = arith.constant 1.280000e+02 : f32
    %122 = vector.broadcast %cst_54 : f32 to vector<32x1xf32>
    %123 = arith.divf %121, %122 : vector<32x1xf32>
    %124 = arith.mulf %118, %118 : vector<32x1xf32>
    %125 = arith.subf %123, %124 : vector<32x1xf32>
    %126 = vector.broadcast %118 : vector<32x1xf32> to vector<32x128xf32>
    %127 = arith.subf %110, %126 : vector<32x128xf32>
    %cst_55 = arith.constant 9.99999997E-7 : f32
    %128 = vector.broadcast %cst_55 : f32 to vector<32x1xf32>
    %129 = arith.addf %125, %128 : vector<32x1xf32>
    %130 = math.rsqrt %129 : vector<32x1xf32>
    %131 = vector.broadcast %130 : vector<32x1xf32> to vector<32x128xf32>
    %132 = arith.mulf %127, %131 : vector<32x128xf32>
    %133 = vector.broadcast %112 : vector<1x128xf32> to vector<32x128xf32>
    %134 = arith.mulf %132, %133 : vector<32x128xf32>
    %135 = vector.broadcast %114 : vector<1x128xf32> to vector<32x128xf32>
    %136 = arith.addf %134, %135 : vector<32x128xf32>
    %c0_56 = arith.constant 0 : index
    %c0_57 = arith.constant 0 : index
    %c0_58 = arith.constant 0 : index
    %137 = vector.load %arg13[%c0_56, %c0_57, %c0_58] : memref<2x128x512xbf16, #tpu.memory_space<vmem>>, vector<1x128x512xbf16>
    %138 = vector.shape_cast %137 : vector<1x128x512xbf16> to vector<128x512xbf16>
    %139 = arith.truncf %136 : vector<32x128xf32> to vector<32x128xbf16>
    %cst_59 = arith.constant dense<0.000000e+00> : vector<32x512xf32>
    %140 = tpu.matmul %139, %138, %cst_59 {dimension_numbers = #tpu.dot_dimension_numbers<[1], [0], [0], [1], [0, 0, 1, 1], [], []>} : vector<32x128xbf16>, vector<128x512xbf16>, vector<32x512xf32> -> vector<32x512xf32>
    %c0_60 = arith.constant 0 : index
    %c0_61 = arith.constant 0 : index
    %c0_62 = arith.constant 0 : index
    %141 = vector.load %arg14[%c0_60, %c0_61, %c0_62] : memref<2x1x512xf32, #tpu.memory_space<vmem>>, vector<1x1x512xf32>
    %142 = vector.shape_cast %141 : vector<1x1x512xf32> to vector<1x512xf32>
    %143 = vector.broadcast %142 : vector<1x512xf32> to vector<32x512xf32>
    %144 = arith.addf %140, %143 : vector<32x512xf32>
    %145 = arith.mulf %144, %144 : vector<32x512xf32>
    %146 = arith.mulf %144, %145 : vector<32x512xf32>
    %cst_63 = arith.constant 4.471500e-02 : f32
    %147 = vector.broadcast %cst_63 : f32 to vector<32x512xf32>
    %148 = arith.mulf %147, %146 : vector<32x512xf32>
    %149 = arith.addf %144, %148 : vector<32x512xf32>
    %cst_64 = arith.constant 0.797884583 : f32
    %150 = vector.broadcast %cst_64 : f32 to vector<32x512xf32>
    %151 = arith.mulf %150, %149 : vector<32x512xf32>
    %152 = math.tanh %151 : vector<32x512xf32>
    %cst_65 = arith.constant 1.000000e+00 : f32
    %153 = vector.broadcast %cst_65 : f32 to vector<32x512xf32>
    %154 = arith.addf %153, %152 : vector<32x512xf32>
    %cst_66 = arith.constant 5.000000e-01 : f32
    %155 = vector.broadcast %cst_66 : f32 to vector<32x512xf32>
    %156 = arith.mulf %155, %154 : vector<32x512xf32>
    %157 = arith.mulf %144, %156 : vector<32x512xf32>
    %c0_67 = arith.constant 0 : index
    %c0_68 = arith.constant 0 : index
    %c0_69 = arith.constant 0 : index
    %158 = vector.load %arg15[%c0_67, %c0_68, %c0_69] : memref<2x512x128xbf16, #tpu.memory_space<vmem>>, vector<1x512x128xbf16>
    %159 = vector.shape_cast %158 : vector<1x512x128xbf16> to vector<512x128xbf16>
    %160 = arith.truncf %157 : vector<32x512xf32> to vector<32x512xbf16>
    %cst_70 = arith.constant dense<0.000000e+00> : vector<32x128xf32>
    %161 = tpu.matmul %160, %159, %cst_70 {dimension_numbers = #tpu.dot_dimension_numbers<[1], [0], [0], [1], [0, 0, 1, 1], [], []>} : vector<32x512xbf16>, vector<512x128xbf16>, vector<32x128xf32> -> vector<32x128xf32>
    %c0_71 = arith.constant 0 : index
    %c0_72 = arith.constant 0 : index
    %c0_73 = arith.constant 0 : index
    %162 = vector.load %arg16[%c0_71, %c0_72, %c0_73] : memref<2x1x128xf32, #tpu.memory_space<vmem>>, vector<1x1x128xf32>
    %163 = vector.shape_cast %162 : vector<1x1x128xf32> to vector<1x128xf32>
    %164 = vector.broadcast %163 : vector<1x128xf32> to vector<32x128xf32>
    %165 = arith.addf %161, %164 : vector<32x128xf32>
    %c0_74 = arith.constant 0 : index
    %c0_75 = arith.constant 0 : index
    %c0_76 = arith.constant 0 : index
    %166 = vector.load %arg17[%c0_74, %c0_75, %c0_76] : memref<2x1x128xf32, #tpu.memory_space<vmem>>, vector<1x1x128xf32>
    %167 = vector.shape_cast %166 : vector<1x1x128xf32> to vector<1x128xf32>
    %168 = vector.broadcast %167 : vector<1x128xf32> to vector<32x128xf32>
    %169 = arith.mulf %168, %165 : vector<32x128xf32>
    %170 = arith.addf %110, %169 : vector<32x128xf32>
    %c1 = arith.constant 1 : index
    %c0_77 = arith.constant 0 : index
    %c0_78 = arith.constant 0 : index
    %171 = vector.load %arg4[%c1, %c0_77, %c0_78] : memref<2x1x128xf32, #tpu.memory_space<vmem>>, vector<1x1x128xf32>
    %172 = vector.shape_cast %171 : vector<1x1x128xf32> to vector<1x128xf32>
    %c1_79 = arith.constant 1 : index
    %c0_80 = arith.constant 0 : index
    %c0_81 = arith.constant 0 : index
    %173 = vector.load %arg5[%c1_79, %c0_80, %c0_81] : memref<2x1x128xf32, #tpu.memory_space<vmem>>, vector<1x1x128xf32>
    %174 = vector.shape_cast %173 : vector<1x1x128xf32> to vector<1x128xf32>
    %cst_82 = arith.constant dense<0.000000e+00> : vector<32xf32>
    %175 = vector.multi_reduction <add>, %170, %cst_82 [1] : vector<32x128xf32> to vector<32xf32>
    %176 = vector.shape_cast %175 : vector<32xf32> to vector<32x1xf32>
    %cst_83 = arith.constant 1.280000e+02 : f32
    %177 = vector.broadcast %cst_83 : f32 to vector<32x1xf32>
    %178 = arith.divf %176, %177 : vector<32x1xf32>
    %179 = arith.mulf %170, %170 : vector<32x128xf32>
    %cst_84 = arith.constant dense<0.000000e+00> : vector<32xf32>
    %180 = vector.multi_reduction <add>, %179, %cst_84 [1] : vector<32x128xf32> to vector<32xf32>
    %181 = vector.shape_cast %180 : vector<32xf32> to vector<32x1xf32>
    %cst_85 = arith.constant 1.280000e+02 : f32
    %182 = vector.broadcast %cst_85 : f32 to vector<32x1xf32>
    %183 = arith.divf %181, %182 : vector<32x1xf32>
    %184 = arith.mulf %178, %178 : vector<32x1xf32>
    %185 = arith.subf %183, %184 : vector<32x1xf32>
    %186 = vector.broadcast %178 : vector<32x1xf32> to vector<32x128xf32>
    %187 = arith.subf %170, %186 : vector<32x128xf32>
    %cst_86 = arith.constant 9.99999997E-7 : f32
    %188 = vector.broadcast %cst_86 : f32 to vector<32x1xf32>
    %189 = arith.addf %185, %188 : vector<32x1xf32>
    %190 = math.rsqrt %189 : vector<32x1xf32>
    %191 = vector.broadcast %190 : vector<32x1xf32> to vector<32x128xf32>
    %192 = arith.mulf %187, %191 : vector<32x128xf32>
    %193 = vector.broadcast %172 : vector<1x128xf32> to vector<32x128xf32>
    %194 = arith.mulf %192, %193 : vector<32x128xf32>
    %195 = vector.broadcast %174 : vector<1x128xf32> to vector<32x128xf32>
    %196 = arith.addf %194, %195 : vector<32x128xf32>
    %c1_87 = arith.constant 1 : index
    %c0_88 = arith.constant 0 : index
    %c0_89 = arith.constant 0 : index
    %197 = vector.load %arg6[%c1_87, %c0_88, %c0_89] : memref<2x128x384xbf16, #tpu.memory_space<vmem>>, vector<1x128x384xbf16>
    %198 = vector.shape_cast %197 : vector<1x128x384xbf16> to vector<128x384xbf16>
    %199 = arith.truncf %196 : vector<32x128xf32> to vector<32x128xbf16>
    %cst_90 = arith.constant dense<0.000000e+00> : vector<32x384xf32>
    %200 = tpu.matmul %199, %198, %cst_90 {dimension_numbers = #tpu.dot_dimension_numbers<[1], [0], [0], [1], [0, 0, 1, 1], [], []>} : vector<32x128xbf16>, vector<128x384xbf16>, vector<32x384xf32> -> vector<32x384xf32>
    %c1_91 = arith.constant 1 : index
    %c0_92 = arith.constant 0 : index
    %c0_93 = arith.constant 0 : index
    %201 = vector.load %arg7[%c1_91, %c0_92, %c0_93] : memref<2x1x384xf32, #tpu.memory_space<vmem>>, vector<1x1x384xf32>
    %202 = vector.shape_cast %201 : vector<1x1x384xf32> to vector<1x384xf32>
    %203 = vector.broadcast %202 : vector<1x384xf32> to vector<32x384xf32>
    %204 = arith.addf %200, %203 : vector<32x384xf32>
    %205 = vector.extract_strided_slice %204 {offsets = [0, 0], sizes = [32, 64], strides = [1, 1]} : vector<32x384xf32> to vector<32x64xf32>
    %206 = vector.extract_strided_slice %204 {offsets = [0, 128], sizes = [32, 64], strides = [1, 1]} : vector<32x384xf32> to vector<32x64xf32>
    %207 = vector.extract_strided_slice %204 {offsets = [0, 256], sizes = [32, 64], strides = [1, 1]} : vector<32x384xf32> to vector<32x64xf32>
    %208 = vector.shape_cast %205 : vector<32x64xf32> to vector<4x8x64xf32>
    %209 = vector.shape_cast %206 : vector<32x64xf32> to vector<4x8x64xf32>
    %210 = vector.shape_cast %207 : vector<32x64xf32> to vector<4x8x64xf32>
    %211 = arith.truncf %208 : vector<4x8x64xf32> to vector<4x8x64xbf16>
    %212 = arith.truncf %209 : vector<4x8x64xf32> to vector<4x8x64xbf16>
    "tpu.trace_start"() <{level = 10 : i32, message = "bqd,bkd->bqk"}> : () -> ()
    %cst_94 = arith.constant dense<0.000000e+00> : vector<4x8x8xf32>
    %213 = tpu.matmul %211, %212, %cst_94 {dimension_numbers = #tpu.dot_dimension_numbers<[2], [2], [1], [1], [0, 0, 0, 1, 1, 1], [0], [0]>} : vector<4x8x64xbf16>, vector<4x8x64xbf16>, vector<4x8x8xf32> -> vector<4x8x8xf32>
    "tpu.trace_stop"() : () -> ()
    %cst_95 = arith.constant 1.250000e-01 : f32
    %214 = vector.broadcast %cst_95 : f32 to vector<4x8x8xf32>
    %215 = arith.mulf %213, %214 : vector<4x8x8xf32>
    %216 = vector.shape_cast %6 : vector<8x8xf32> to vector<1x8x8xf32>
    %217 = vector.broadcast %216 : vector<1x8x8xf32> to vector<4x8x8xf32>
    %218 = arith.addf %215, %217 : vector<4x8x8xf32>
    %cst_96 = arith.constant dense<0xFF800000> : vector<4x8xf32>
    %219 = vector.multi_reduction <maximumf>, %218, %cst_96 [2] : vector<4x8x8xf32> to vector<4x8xf32>
    %220 = vector.shape_cast %219 : vector<4x8xf32> to vector<4x8x1xf32>
    %221 = vector.broadcast %220 : vector<4x8x1xf32> to vector<4x8x8xf32>
    %222 = arith.subf %218, %221 : vector<4x8x8xf32>
    %223 = math.exp %222 : vector<4x8x8xf32>
    %cst_97 = arith.constant dense<0.000000e+00> : vector<4x8xf32>
    %224 = vector.multi_reduction <add>, %223, %cst_97 [2] : vector<4x8x8xf32> to vector<4x8xf32>
    %225 = vector.shape_cast %224 : vector<4x8xf32> to vector<4x8x1xf32>
    %226 = tpu.reciprocal %225 {approx = true} : vector<4x8x1xf32> -> vector<4x8x1xf32>
    %227 = vector.broadcast %226 : vector<4x8x1xf32> to vector<4x8x8xf32>
    %228 = arith.mulf %223, %227 : vector<4x8x8xf32>
    %229 = arith.truncf %228 : vector<4x8x8xf32> to vector<4x8x8xbf16>
    %230 = arith.truncf %210 : vector<4x8x64xf32> to vector<4x8x64xbf16>
    "tpu.trace_start"() <{level = 10 : i32, message = "bqk,bkd->bqd"}> : () -> ()
    %cst_98 = arith.constant dense<0.000000e+00> : vector<4x8x64xf32>
    %231 = tpu.matmul %229, %230, %cst_98 {dimension_numbers = #tpu.dot_dimension_numbers<[2], [1], [1], [2], [0, 0, 0, 1, 1, 2], [0], [0]>} : vector<4x8x8xbf16>, vector<4x8x64xbf16>, vector<4x8x64xf32> -> vector<4x8x64xf32>
    "tpu.trace_stop"() : () -> ()
    %232 = vector.shape_cast %231 : vector<4x8x64xf32> to vector<32x64xf32>
    %233 = vector.extract_strided_slice %204 {offsets = [0, 64], sizes = [32, 64], strides = [1, 1]} : vector<32x384xf32> to vector<32x64xf32>
    %234 = vector.extract_strided_slice %204 {offsets = [0, 192], sizes = [32, 64], strides = [1, 1]} : vector<32x384xf32> to vector<32x64xf32>
    %235 = vector.extract_strided_slice %204 {offsets = [0, 320], sizes = [32, 64], strides = [1, 1]} : vector<32x384xf32> to vector<32x64xf32>
    %236 = vector.shape_cast %233 : vector<32x64xf32> to vector<4x8x64xf32>
    %237 = vector.shape_cast %234 : vector<32x64xf32> to vector<4x8x64xf32>
    %238 = vector.shape_cast %235 : vector<32x64xf32> to vector<4x8x64xf32>
    %239 = arith.truncf %236 : vector<4x8x64xf32> to vector<4x8x64xbf16>
    %240 = arith.truncf %237 : vector<4x8x64xf32> to vector<4x8x64xbf16>
    "tpu.trace_start"() <{level = 10 : i32, message = "bqd,bkd->bqk"}> : () -> ()
    %cst_99 = arith.constant dense<0.000000e+00> : vector<4x8x8xf32>
    %241 = tpu.matmul %239, %240, %cst_99 {dimension_numbers = #tpu.dot_dimension_numbers<[2], [2], [1], [1], [0, 0, 0, 1, 1, 1], [0], [0]>} : vector<4x8x64xbf16>, vector<4x8x64xbf16>, vector<4x8x8xf32> -> vector<4x8x8xf32>
    "tpu.trace_stop"() : () -> ()
    %cst_100 = arith.constant 1.250000e-01 : f32
    %242 = vector.broadcast %cst_100 : f32 to vector<4x8x8xf32>
    %243 = arith.mulf %241, %242 : vector<4x8x8xf32>
    %244 = vector.shape_cast %6 : vector<8x8xf32> to vector<1x8x8xf32>
    %245 = vector.broadcast %244 : vector<1x8x8xf32> to vector<4x8x8xf32>
    %246 = arith.addf %243, %245 : vector<4x8x8xf32>
    %cst_101 = arith.constant dense<0xFF800000> : vector<4x8xf32>
    %247 = vector.multi_reduction <maximumf>, %246, %cst_101 [2] : vector<4x8x8xf32> to vector<4x8xf32>
    %248 = vector.shape_cast %247 : vector<4x8xf32> to vector<4x8x1xf32>
    %249 = vector.broadcast %248 : vector<4x8x1xf32> to vector<4x8x8xf32>
    %250 = arith.subf %246, %249 : vector<4x8x8xf32>
    %251 = math.exp %250 : vector<4x8x8xf32>
    %cst_102 = arith.constant dense<0.000000e+00> : vector<4x8xf32>
    %252 = vector.multi_reduction <add>, %251, %cst_102 [2] : vector<4x8x8xf32> to vector<4x8xf32>
    %253 = vector.shape_cast %252 : vector<4x8xf32> to vector<4x8x1xf32>
    %254 = tpu.reciprocal %253 {approx = true} : vector<4x8x1xf32> -> vector<4x8x1xf32>
    %255 = vector.broadcast %254 : vector<4x8x1xf32> to vector<4x8x8xf32>
    %256 = arith.mulf %251, %255 : vector<4x8x8xf32>
    %257 = arith.truncf %256 : vector<4x8x8xf32> to vector<4x8x8xbf16>
    %258 = arith.truncf %238 : vector<4x8x64xf32> to vector<4x8x64xbf16>
    "tpu.trace_start"() <{level = 10 : i32, message = "bqk,bkd->bqd"}> : () -> ()
    %cst_103 = arith.constant dense<0.000000e+00> : vector<4x8x64xf32>
    %259 = tpu.matmul %257, %258, %cst_103 {dimension_numbers = #tpu.dot_dimension_numbers<[2], [1], [1], [2], [0, 0, 0, 1, 1, 2], [0], [0]>} : vector<4x8x8xbf16>, vector<4x8x64xbf16>, vector<4x8x64xf32> -> vector<4x8x64xf32>
    "tpu.trace_stop"() : () -> ()
    %260 = vector.shape_cast %259 : vector<4x8x64xf32> to vector<32x64xf32>
    %261 = tpu.concatenate %232, %260 in 1 : vector<32x64xf32>, vector<32x64xf32> -> vector<32x128xf32>
    %c1_104 = arith.constant 1 : index
    %c0_105 = arith.constant 0 : index
    %c0_106 = arith.constant 0 : index
    %262 = vector.load %arg8[%c1_104, %c0_105, %c0_106] : memref<2x128x128xbf16, #tpu.memory_space<vmem>>, vector<1x128x128xbf16>
    %263 = vector.shape_cast %262 : vector<1x128x128xbf16> to vector<128x128xbf16>
    %264 = arith.truncf %261 : vector<32x128xf32> to vector<32x128xbf16>
    %cst_107 = arith.constant dense<0.000000e+00> : vector<32x128xf32>
    %265 = tpu.matmul %264, %263, %cst_107 {dimension_numbers = #tpu.dot_dimension_numbers<[1], [0], [0], [1], [0, 0, 1, 1], [], []>} : vector<32x128xbf16>, vector<128x128xbf16>, vector<32x128xf32> -> vector<32x128xf32>
    %c1_108 = arith.constant 1 : index
    %c0_109 = arith.constant 0 : index
    %c0_110 = arith.constant 0 : index
    %266 = vector.load %arg9[%c1_108, %c0_109, %c0_110] : memref<2x1x128xf32, #tpu.memory_space<vmem>>, vector<1x1x128xf32>
    %267 = vector.shape_cast %266 : vector<1x1x128xf32> to vector<1x128xf32>
    %268 = vector.broadcast %267 : vector<1x128xf32> to vector<32x128xf32>
    %269 = arith.addf %265, %268 : vector<32x128xf32>
    %c1_111 = arith.constant 1 : index
    %c0_112 = arith.constant 0 : index
    %c0_113 = arith.constant 0 : index
    %270 = vector.load %arg10[%c1_111, %c0_112, %c0_113] : memref<2x1x128xf32, #tpu.memory_space<vmem>>, vector<1x1x128xf32>
    %271 = vector.shape_cast %270 : vector<1x1x128xf32> to vector<1x128xf32>
    %272 = vector.broadcast %271 : vector<1x128xf32> to vector<32x128xf32>
    %273 = arith.mulf %272, %269 : vector<32x128xf32>
    %274 = arith.addf %170, %273 : vector<32x128xf32>
    %c1_114 = arith.constant 1 : index
    %c0_115 = arith.constant 0 : index
    %c0_116 = arith.constant 0 : index
    %275 = vector.load %arg11[%c1_114, %c0_115, %c0_116] : memref<2x1x128xf32, #tpu.memory_space<vmem>>, vector<1x1x128xf32>
    %276 = vector.shape_cast %275 : vector<1x1x128xf32> to vector<1x128xf32>
    %c1_117 = arith.constant 1 : index
    %c0_118 = arith.constant 0 : index
    %c0_119 = arith.constant 0 : index
    %277 = vector.load %arg12[%c1_117, %c0_118, %c0_119] : memref<2x1x128xf32, #tpu.memory_space<vmem>>, vector<1x1x128xf32>
    %278 = vector.shape_cast %277 : vector<1x1x128xf32> to vector<1x128xf32>
    %cst_120 = arith.constant dense<0.000000e+00> : vector<32xf32>
    %279 = vector.multi_reduction <add>, %274, %cst_120 [1] : vector<32x128xf32> to vector<32xf32>
    %280 = vector.shape_cast %279 : vector<32xf32> to vector<32x1xf32>
    %cst_121 = arith.constant 1.280000e+02 : f32
    %281 = vector.broadcast %cst_121 : f32 to vector<32x1xf32>
    %282 = arith.divf %280, %281 : vector<32x1xf32>
    %283 = arith.mulf %274, %274 : vector<32x128xf32>
    %cst_122 = arith.constant dense<0.000000e+00> : vector<32xf32>
    %284 = vector.multi_reduction <add>, %283, %cst_122 [1] : vector<32x128xf32> to vector<32xf32>
    %285 = vector.shape_cast %284 : vector<32xf32> to vector<32x1xf32>
    %cst_123 = arith.constant 1.280000e+02 : f32
    %286 = vector.broadcast %cst_123 : f32 to vector<32x1xf32>
    %287 = arith.divf %285, %286 : vector<32x1xf32>
    %288 = arith.mulf %282, %282 : vector<32x1xf32>
    %289 = arith.subf %287, %288 : vector<32x1xf32>
    %290 = vector.broadcast %282 : vector<32x1xf32> to vector<32x128xf32>
    %291 = arith.subf %274, %290 : vector<32x128xf32>
    %cst_124 = arith.constant 9.99999997E-7 : f32
    %292 = vector.broadcast %cst_124 : f32 to vector<32x1xf32>
    %293 = arith.addf %289, %292 : vector<32x1xf32>
    %294 = math.rsqrt %293 : vector<32x1xf32>
    %295 = vector.broadcast %294 : vector<32x1xf32> to vector<32x128xf32>
    %296 = arith.mulf %291, %295 : vector<32x128xf32>
    %297 = vector.broadcast %276 : vector<1x128xf32> to vector<32x128xf32>
    %298 = arith.mulf %296, %297 : vector<32x128xf32>
    %299 = vector.broadcast %278 : vector<1x128xf32> to vector<32x128xf32>
    %300 = arith.addf %298, %299 : vector<32x128xf32>
    %c1_125 = arith.constant 1 : index
    %c0_126 = arith.constant 0 : index
    %c0_127 = arith.constant 0 : index
    %301 = vector.load %arg13[%c1_125, %c0_126, %c0_127] : memref<2x128x512xbf16, #tpu.memory_space<vmem>>, vector<1x128x512xbf16>
    %302 = vector.shape_cast %301 : vector<1x128x512xbf16> to vector<128x512xbf16>
    %303 = arith.truncf %300 : vector<32x128xf32> to vector<32x128xbf16>
    %cst_128 = arith.constant dense<0.000000e+00> : vector<32x512xf32>
    %304 = tpu.matmul %303, %302, %cst_128 {dimension_numbers = #tpu.dot_dimension_numbers<[1], [0], [0], [1], [0, 0, 1, 1], [], []>} : vector<32x128xbf16>, vector<128x512xbf16>, vector<32x512xf32> -> vector<32x512xf32>
    %c1_129 = arith.constant 1 : index
    %c0_130 = arith.constant 0 : index
    %c0_131 = arith.constant 0 : index
    %305 = vector.load %arg14[%c1_129, %c0_130, %c0_131] : memref<2x1x512xf32, #tpu.memory_space<vmem>>, vector<1x1x512xf32>
    %306 = vector.shape_cast %305 : vector<1x1x512xf32> to vector<1x512xf32>
    %307 = vector.broadcast %306 : vector<1x512xf32> to vector<32x512xf32>
    %308 = arith.addf %304, %307 : vector<32x512xf32>
    %309 = arith.mulf %308, %308 : vector<32x512xf32>
    %310 = arith.mulf %308, %309 : vector<32x512xf32>
    %cst_132 = arith.constant 4.471500e-02 : f32
    %311 = vector.broadcast %cst_132 : f32 to vector<32x512xf32>
    %312 = arith.mulf %311, %310 : vector<32x512xf32>
    %313 = arith.addf %308, %312 : vector<32x512xf32>
    %cst_133 = arith.constant 0.797884583 : f32
    %314 = vector.broadcast %cst_133 : f32 to vector<32x512xf32>
    %315 = arith.mulf %314, %313 : vector<32x512xf32>
    %316 = math.tanh %315 : vector<32x512xf32>
    %cst_134 = arith.constant 1.000000e+00 : f32
    %317 = vector.broadcast %cst_134 : f32 to vector<32x512xf32>
    %318 = arith.addf %317, %316 : vector<32x512xf32>
    %cst_135 = arith.constant 5.000000e-01 : f32
    %319 = vector.broadcast %cst_135 : f32 to vector<32x512xf32>
    %320 = arith.mulf %319, %318 : vector<32x512xf32>
    %321 = arith.mulf %308, %320 : vector<32x512xf32>
    %c1_136 = arith.constant 1 : index
    %c0_137 = arith.constant 0 : index
    %c0_138 = arith.constant 0 : index
    %322 = vector.load %arg15[%c1_136, %c0_137, %c0_138] : memref<2x512x128xbf16, #tpu.memory_space<vmem>>, vector<1x512x128xbf16>
    %323 = vector.shape_cast %322 : vector<1x512x128xbf16> to vector<512x128xbf16>
    %324 = arith.truncf %321 : vector<32x512xf32> to vector<32x512xbf16>
    %cst_139 = arith.constant dense<0.000000e+00> : vector<32x128xf32>
    %325 = tpu.matmul %324, %323, %cst_139 {dimension_numbers = #tpu.dot_dimension_numbers<[1], [0], [0], [1], [0, 0, 1, 1], [], []>} : vector<32x512xbf16>, vector<512x128xbf16>, vector<32x128xf32> -> vector<32x128xf32>
    %c1_140 = arith.constant 1 : index
    %c0_141 = arith.constant 0 : index
    %c0_142 = arith.constant 0 : index
    %326 = vector.load %arg16[%c1_140, %c0_141, %c0_142] : memref<2x1x128xf32, #tpu.memory_space<vmem>>, vector<1x1x128xf32>
    %327 = vector.shape_cast %326 : vector<1x1x128xf32> to vector<1x128xf32>
    %328 = vector.broadcast %327 : vector<1x128xf32> to vector<32x128xf32>
    %329 = arith.addf %325, %328 : vector<32x128xf32>
    %c1_143 = arith.constant 1 : index
    %c0_144 = arith.constant 0 : index
    %c0_145 = arith.constant 0 : index
    %330 = vector.load %arg17[%c1_143, %c0_144, %c0_145] : memref<2x1x128xf32, #tpu.memory_space<vmem>>, vector<1x1x128xf32>
    %331 = vector.shape_cast %330 : vector<1x1x128xf32> to vector<1x128xf32>
    %332 = vector.broadcast %331 : vector<1x128xf32> to vector<32x128xf32>
    %333 = arith.mulf %332, %329 : vector<32x128xf32>
    %334 = arith.addf %274, %333 : vector<32x128xf32>
    %c0_146 = arith.constant 0 : index
    %c0_147 = arith.constant 0 : index
    %335 = vector.load %arg18[%c0_146, %c0_147] : memref<1x128xf32, #tpu.memory_space<vmem>>, vector<1x128xf32>
    %c0_148 = arith.constant 0 : index
    %c0_149 = arith.constant 0 : index
    %336 = vector.load %arg19[%c0_148, %c0_149] : memref<1x128xf32, #tpu.memory_space<vmem>>, vector<1x128xf32>
    %cst_150 = arith.constant dense<0.000000e+00> : vector<32xf32>
    %337 = vector.multi_reduction <add>, %334, %cst_150 [1] : vector<32x128xf32> to vector<32xf32>
    %338 = vector.shape_cast %337 : vector<32xf32> to vector<32x1xf32>
    %cst_151 = arith.constant 1.280000e+02 : f32
    %339 = vector.broadcast %cst_151 : f32 to vector<32x1xf32>
    %340 = arith.divf %338, %339 : vector<32x1xf32>
    %341 = arith.mulf %334, %334 : vector<32x128xf32>
    %cst_152 = arith.constant dense<0.000000e+00> : vector<32xf32>
    %342 = vector.multi_reduction <add>, %341, %cst_152 [1] : vector<32x128xf32> to vector<32xf32>
    %343 = vector.shape_cast %342 : vector<32xf32> to vector<32x1xf32>
    %cst_153 = arith.constant 1.280000e+02 : f32
    %344 = vector.broadcast %cst_153 : f32 to vector<32x1xf32>
    %345 = arith.divf %343, %344 : vector<32x1xf32>
    %346 = arith.mulf %340, %340 : vector<32x1xf32>
    %347 = arith.subf %345, %346 : vector<32x1xf32>
    %348 = vector.broadcast %340 : vector<32x1xf32> to vector<32x128xf32>
    %349 = arith.subf %334, %348 : vector<32x128xf32>
    %cst_154 = arith.constant 9.99999997E-7 : f32
    %350 = vector.broadcast %cst_154 : f32 to vector<32x1xf32>
    %351 = arith.addf %347, %350 : vector<32x1xf32>
    %352 = math.rsqrt %351 : vector<32x1xf32>
    %353 = vector.broadcast %352 : vector<32x1xf32> to vector<32x128xf32>
    %354 = arith.mulf %349, %353 : vector<32x128xf32>
    %355 = vector.broadcast %335 : vector<1x128xf32> to vector<32x128xf32>
    %356 = arith.mulf %354, %355 : vector<32x128xf32>
    %357 = vector.broadcast %336 : vector<1x128xf32> to vector<32x128xf32>
    %358 = arith.addf %356, %357 : vector<32x128xf32>
    %359 = vector.extract_strided_slice %358 {offsets = [0, 0], sizes = [1, 128], strides = [1, 1]} : vector<32x128xf32> to vector<1x128xf32>
    %360 = vector.extract_strided_slice %358 {offsets = [8, 0], sizes = [1, 128], strides = [1, 1]} : vector<32x128xf32> to vector<1x128xf32>
    %361 = tpu.concatenate %359, %360 in 0 : vector<1x128xf32>, vector<1x128xf32> -> vector<2x128xf32>
    %362 = vector.extract_strided_slice %358 {offsets = [16, 0], sizes = [1, 128], strides = [1, 1]} : vector<32x128xf32> to vector<1x128xf32>
    %363 = vector.extract_strided_slice %358 {offsets = [24, 0], sizes = [1, 128], strides = [1, 1]} : vector<32x128xf32> to vector<1x128xf32>
    %364 = tpu.concatenate %362, %363 in 0 : vector<1x128xf32>, vector<1x128xf32> -> vector<2x128xf32>
    %365 = arith.mulf %361, %361 : vector<2x128xf32>
    %cst_155 = arith.constant dense<0.000000e+00> : vector<2xf32>
    %366 = vector.multi_reduction <add>, %365, %cst_155 [1] : vector<2x128xf32> to vector<2xf32>
    %367 = vector.shape_cast %366 : vector<2xf32> to vector<2x1xf32>
    %368 = math.sqrt %367 : vector<2x1xf32>
    %cst_156 = arith.constant 9.99999993E-9 : f32
    %369 = vector.broadcast %cst_156 : f32 to vector<2x1xf32>
    %370 = arith.maximumf %368, %369 : vector<2x1xf32>
    %371 = arith.mulf %364, %364 : vector<2x128xf32>
    %cst_157 = arith.constant dense<0.000000e+00> : vector<2xf32>
    %372 = vector.multi_reduction <add>, %371, %cst_157 [1] : vector<2x128xf32> to vector<2xf32>
    %373 = vector.shape_cast %372 : vector<2xf32> to vector<2x1xf32>
    %374 = math.sqrt %373 : vector<2x1xf32>
    %cst_158 = arith.constant 9.99999993E-9 : f32
    %375 = vector.broadcast %cst_158 : f32 to vector<2x1xf32>
    %376 = arith.maximumf %374, %375 : vector<2x1xf32>
    %377 = vector.broadcast %370 : vector<2x1xf32> to vector<2x128xf32>
    %378 = arith.divf %361, %377 : vector<2x128xf32>
    %379 = vector.broadcast %376 : vector<2x1xf32> to vector<2x128xf32>
    %380 = arith.divf %364, %379 : vector<2x128xf32>
    %381 = arith.mulf %378, %380 : vector<2x128xf32>
    %cst_159 = arith.constant dense<0.000000e+00> : vector<2xf32>
    %382 = vector.multi_reduction <add>, %381, %cst_159 [1] : vector<2x128xf32> to vector<2xf32>
    %383 = vector.shape_cast %382 : vector<2xf32> to vector<2x1xf32>
    %cst_160 = arith.constant dense<0.000000e+00> : vector<1xf32>
    %384 = vector.multi_reduction <add>, %383, %cst_160 [0] : vector<2x1xf32> to vector<1xf32>
    %385 = vector.shape_cast %384 : vector<1xf32> to vector<1x1xf32>
    %cst_161 = arith.constant 0.000000e+00 : f32
    %386 = vector.broadcast %cst_161 : f32 to vector<1x1xf32>
    %387 = arith.subf %386, %385 : vector<1x1xf32>
    %cst_162 = arith.constant 2.000000e+00 : f32
    %388 = vector.broadcast %cst_162 : f32 to vector<1x1xf32>
    %389 = arith.divf %387, %388 : vector<1x1xf32>
    %c0_163 = arith.constant 0 : index
    %c0_164 = arith.constant 0 : index
    %390 = vector.load %arg20[%c0_163, %c0_164] : memref<1x1xf32, #tpu.memory_space<vmem>>, vector<1x1xf32>
    tpu.vector_store %arg20[%c0_163, %c0_164], %389 {strides = array<i32>} : memref<1x1xf32, #tpu.memory_space<vmem>>, vector<1x1xf32>,
    return
  }
}

</mosaic_0001>

<llo_original>
// kernel: sub.1
$region0: #{sub.1}
  #allocation0 [shape = 's32[1]{0}', space=sflag, size = 0x4, scoped, tag = 'scoped memory for sub.1']
  %s0 = inlined_call_operand.vmem [shape: f32[128], index: 0, kind: input, shape index: {}]
  %s1 = inlined_call_operand.vmem [shape: f32[128], index: 1, kind: input, shape index: {}]
  %s2 = inlined_call_operand.vmem [shape: f32[128], index: 2, kind: output, shape index: {}]
  %v3 = vld [vmem:[%s0] sm:$0x1]
  %v4 = vld [vmem:[%s1] sm:$0x1]
  %5 = xla_tuple %v3, %v4
  %6 = xla_tuple %5
  %v7 = vsub.f32 %v3, %v4
  %8 = xla_tuple %v7
  %9 = vst [vmem:[%s2] sm:$0x1] %v7

// kernel: vit_dino_loss.1
$region0: #{vit_dino_loss.1}
  #allocation0 [shape = 'u32[]', space=smem, size = 0x4, offset = 0x4, fixed_abs, tag = 'smem constant byte address 0x4 - core index']
  #allocation1 [shape = 'u32[144,128]{1,0:T(1,128)}', space=vmem, size = 0x12000, scoped, tag = 'internal scratch']
  %s0 = inlined_call_operand.vmem [shape: f32[32,640], index: 0, kind: input, shape index: {}]
  %s1 = inlined_call_operand.vmem [shape: f32[32,128], index: 1, kind: input, shape index: {}]
  %s2 = inlined_call_operand.vmem [shape: f32[8,8], index: 2, kind: input, shape index: {}]
  %s3 = inlined_call_operand.vmem [shape: bf16[640,128], index: 3, kind: input, shape index: {}]
  %s4 = inlined_call_operand.vmem [shape: f32[2,1,128], index: 4, kind: input, shape index: {}]
  %s5 = inlined_call_operand.vmem [shape: f32[2,1,128], index: 5, kind: input, shape index: {}]
  %s6 = inlined_call_operand.vmem [shape: bf16[2,128,384], index: 6, kind: input, shape index: {}]
  %s7 = inlined_call_operand.vmem [shape: f32[2,1,384], index: 7, kind: input, shape index: {}]
  %s8 = inlined_call_operand.vmem [shape: bf16[2,128,128], index: 8, kind: input, shape index: {}]
  %s9 = inlined_call_operand.vmem [shape: f32[2,1,128], index: 9, kind: input, shape index: {}]
  %s10 = inlined_call_operand.vmem [shape: f32[2,1,128], index: 10, kind: input, shape index: {}]
  %s11 = inlined_call_operand.vmem [shape: f32[2,1,128], index: 11, kind: input, shape index: {}]
  %s12 = inlined_call_operand.vmem [shape: f32[2,1,128], index: 12, kind: input, shape index: {}]
  %s13 = inlined_call_operand.vmem [shape: bf16[2,128,512], index: 13, kind: input, shape index: {}]
  %s14 = inlined_call_operand.vmem [shape: f32[2,1,512], index: 14, kind: input, shape index: {}]
  %s15 = inlined_call_operand.vmem [shape: bf16[2,512,128], index: 15, kind: input, shape index: {}]
  %s16 = inlined_call_operand.vmem [shape: f32[2,1,128], index: 16, kind: input, shape index: {}]
  %s17 = inlined_call_operand.vmem [shape: f32[2,1,128], index: 17, kind: input, shape index: {}]
  %s18 = inlined_call_operand.vmem [shape: f32[1,128], index: 18, kind: input, shape index: {}]
  %s19 = inlined_call_operand.vmem [shape: f32[1,128], index: 19, kind: input, shape index: {}]
  %s20 = inlined_call_operand.hbm [shape: f32[1,1], index: 20, kind: output, shape index: {}]
  %s21 = sld [smem:[#allocation0]]
  $region90: #{vit_dino_loss.1} parent=0
    _
  %s23 = ssub.s32 1, %s21
  %s24 = scalar_select 0, %s23, %s21
  $region1: #{vit_dino_loss.1} parent=0
    #allocation2 [shape = 'u8[512]{0}', space=vmem, size = 0x400, scoped, tag = 'output window, operand 0, single buffered']
    #allocation3 [shape = 's32[1]{0}', space=sflag, size = 0x4, scoped, tag = 'scoped memory for vit_dino_loss.1']
    %25 = vsyncpa [#allocation3], 0
    // Predicated region
    $region2: #{vit_dino_loss.1} parent=1 // pred_check
      _
    $region3: #{vit_dino_loss.1} parent=1 // pred_check_branch
      %27 = sbr.rel (0) target = $region5
    $region4: #{vit_dino_loss.1} parent=1 // pred_region
      _
    $region5: #{vit_dino_loss.1} parent=1 // pred_fallthru
      _
    // Predicated region
    $region6: #{vit_dino_loss.1} parent=1 // pred_check
      _
    $region7: #{vit_dino_loss.1} parent=1 // pred_check_branch
      %29 = sbr.rel (0) target = $region9
    $region8: #{vit_dino_loss.1} parent=1 // pred_region
      _
    $region9: #{vit_dino_loss.1} parent=1 // pred_fallthru
      _
    // Predicated region
    $region10: #{vit_dino_loss.1} parent=1 // pred_check
      _
    $region11: #{vit_dino_loss.1} parent=1 // pred_check_branch
      %31 = sbr.rel (0) target = $region13
    $region12: #{vit_dino_loss.1} parent=1 // pred_region
      _
    $region13: #{vit_dino_loss.1} parent=1 // pred_fallthru
      _
    // Predicated region
    $region14: #{vit_dino_loss.1} parent=1 // pred_check
      _
    $region15: #{vit_dino_loss.1} parent=1 // pred_check_branch
      %33 = sbr.rel (0) target = $region17
    $region16: #{vit_dino_loss.1} parent=1 // pred_region
      _
    $region17: #{vit_dino_loss.1} parent=1 // pred_fallthru
      _
    // Predicated region
    $region18: #{vit_dino_loss.1} parent=1 // pred_check
      _
    $region19: #{vit_dino_loss.1} parent=1 // pred_check_branch
      %35 = sbr.rel (0) target = $region21
    $region20: #{vit_dino_loss.1} parent=1 // pred_region
      _
    $region21: #{vit_dino_loss.1} parent=1 // pred_fallthru
      _
    // Predicated region
    $region22: #{vit_dino_loss.1} parent=1 // pred_check
      _
    $region23: #{vit_dino_loss.1} parent=1 // pred_check_branch
      %37 = sbr.rel (0) target = $region25
    $region24: #{vit_dino_loss.1} parent=1 // pred_region
      _
    $region25: #{vit_dino_loss.1} parent=1 // pred_fallthru
      _
    // Predicated region
    $region26: #{vit_dino_loss.1} parent=1 // pred_check
      _
    $region27: #{vit_dino_loss.1} parent=1 // pred_check_branch
      %39 = sbr.rel (0) target = $region29
    $region28: #{vit_dino_loss.1} parent=1 // pred_region
      _
    $region29: #{vit_dino_loss.1} parent=1 // pred_fallthru
      _
    // Predicated region
    $region30: #{vit_dino_loss.1} parent=1 // pred_check
      _
    $region31: #{vit_dino_loss.1} parent=1 // pred_check_branch
      %41 = sbr.rel (0) target = $region33
    $region32: #{vit_dino_loss.1} parent=1 // pred_region
      _
    $region33: #{vit_dino_loss.1} parent=1 // pred_fallthru
      _
    // Predicated region
    $region34: #{vit_dino_loss.1} parent=1 // pred_check
      _
    $region35: #{vit_dino_loss.1} parent=1 // pred_check_branch
      %43 = sbr.rel (0) target = $region37
    $region36: #{vit_dino_loss.1} parent=1 // pred_region
      _
    $region37: #{vit_dino_loss.1} parent=1 // pred_fallthru
      _
    // Predicated region
    $region38: #{vit_dino_loss.1} parent=1 // pred_check
      _
    $region39: #{vit_dino_loss.1} parent=1 // pred_check_branch
      %45 = sbr.rel (0) target = $region41
    $region40: #{vit_dino_loss.1} parent=1 // pred_region
      _
    $region41: #{vit_dino_loss.1} parent=1 // pred_fallthru
      _
    // Predicated region
    $region42: #{vit_dino_loss.1} parent=1 // pred_check
      _
    $region43: #{vit_dino_loss.1} parent=1 // pred_check_branch
      %47 = sbr.rel (0) target = $region45
    $region44: #{vit_dino_loss.1} parent=1 // pred_region
      _
    $region45: #{vit_dino_loss.1} parent=1 // pred_fallthru
      _
    // Predicated region
    $region46: #{vit_dino_loss.1} parent=1 // pred_check
      _
    $region47: #{vit_dino_loss.1} parent=1 // pred_check_branch
      %49 = sbr.rel (0) target = $region49
    $region48: #{vit_dino_loss.1} parent=1 // pred_region
      _
    $region49: #{vit_dino_loss.1} parent=1 // pred_fallthru
      _
    // Predicated region
    $region50: #{vit_dino_loss.1} parent=1 // pred_check
      _
    $region51: #{vit_dino_loss.1} parent=1 // pred_check_branch
      %51 = sbr.rel (0) target = $region53
    $region52: #{vit_dino_loss.1} parent=1 // pred_region
      _
    $region53: #{vit_dino_loss.1} parent=1 // pred_fallthru
      _
    // Predicated region
    $region54: #{vit_dino_loss.1} parent=1 // pred_check
      _
    $region55: #{vit_dino_loss.1} parent=1 // pred_check_branch
      %53 = sbr.rel (0) target = $region57
    $region56: #{vit_dino_loss.1} parent=1 // pred_region
      _
    $region57: #{vit_dino_loss.1} parent=1 // pred_fallthru
      _
    // Predicated region
    $region58: #{vit_dino_loss.1} parent=1 // pred_check
      _
    $region59: #{vit_dino_loss.1} parent=1 // pred_check_branch
      %55 = sbr.rel (0) target = $region61
    $region60: #{vit_dino_loss.1} parent=1 // pred_region
      _
    $region61: #{vit_dino_loss.1} parent=1 // pred_fallthru
      _
    // Predicated region
    $region62: #{vit_dino_loss.1} parent=1 // pred_check
      _
    $region63: #{vit_dino_loss.1} parent=1 // pred_check_branch
      %57 = sbr.rel (0) target = $region65
    $region64: #{vit_dino_loss.1} parent=1 // pred_region
      _
    $region65: #{vit_dino_loss.1} parent=1 // pred_fallthru
      _
    // Predicated region
    $region66: #{vit_dino_loss.1} parent=1 // pred_check
      _
    $region67: #{vit_dino_loss.1} parent=1 // pred_check_branch
      %59 = sbr.rel (0) target = $region69
    $region68: #{vit_dino_loss.1} parent=1 // pred_region
      _
    $region69: #{vit_dino_loss.1} parent=1 // pred_fallthru
      _
    // Predicated region
    $region70: #{vit_dino_loss.1} parent=1 // pred_check
      _
    $region71: #{vit_dino_loss.1} parent=1 // pred_check_branch
      %61 = sbr.rel (0) target = $region73
    $region72: #{vit_dino_loss.1} parent=1 // pred_region
      _
    $region73: #{vit_dino_loss.1} parent=1 // pred_fallthru
      _
    // Predicated region
    $region74: #{vit_dino_loss.1} parent=1 // pred_check
      _
    $region75: #{vit_dino_loss.1} parent=1 // pred_check_branch
      %63 = sbr.rel (0) target = $region77
    $region76: #{vit_dino_loss.1} parent=1 // pred_region
      _
    $region77: #{vit_dino_loss.1} parent=1 // pred_fallthru
      _
    // Predicated region
    $region78: #{vit_dino_loss.1} parent=1 // pred_check
      _
    $region79: #{vit_dino_loss.1} parent=1 // pred_check_branch
      %65 = sbr.rel (0) target = $region81
    $region80: #{vit_dino_loss.1} parent=1 // pred_region
      _
    $region81: #{vit_dino_loss.1} parent=1 // pred_fallthru
      _
    %v67 = vld [vmem:[%s0] sm:$0xff]
    %v68 = vld [vmem:[%s0 + $0x8] sm:$0xff]
    %v69 = vld [vmem:[%s0 + $0x10] sm:$0xff]
    %v70 = vld [vmem:[%s0 + $0x18] sm:$0xff]
    %v71 = vld [vmem:[%s0 + $0x20] sm:$0xff]
    %v72 = vld [vmem:[%s0 + $0x28] sm:$0xff]
    %v73 = vld [vmem:[%s0 + $0x30] sm:$0xff]
    %v74 = vld [vmem:[%s0 + $0x38] sm:$0xff]
    %v75 = vld [vmem:[%s0 + $0x40] sm:$0xff]
    %v76 = vld [vmem:[%s0 + $0x48] sm:$0xff]
    %v77 = vld [vmem:[%s0 + $0x50] sm:$0xff]
    %v78 = vld [vmem:[%s0 + $0x58] sm:$0xff]
    %v79 = vld [vmem:[%s0 + $0x60] sm:$0xff]
    %v80 = vld [vmem:[%s0 + $0x68] sm:$0xff]
    %v81 = vld [vmem:[%s0 + $0x70] sm:$0xff]
    %v82 = vld [vmem:[%s0 + $0x78] sm:$0xff]
    %v83 = vld [vmem:[%s0 + $0x80] sm:$0xff]
    %v84 = vld [vmem:[%s0 + $0x88] sm:$0xff]
    %v85 = vld [vmem:[%s0 + $0x90] sm:$0xff]
    %v86 = vld [vmem:[%s0 + $0x98] sm:$0xff]
    %v87 = vld [vmem:[%s3] sm:$0xf]
    %v88 = vld [vmem:[%s3 + $0x4] sm:$0xf]
    %v89 = vld [vmem:[%s3 + $0x8] sm:$0xf]
    %v90 = vld [vmem:[%s3 + $0xc] sm:$0xf]
    %v91 = vld [vmem:[%s3 + $0x10] sm:$0xf]
    %v92 = vld [vmem:[%s3 + $0x14] sm:$0xf]
    %v93 = vld [vmem:[%s3 + $0x18] sm:$0xf]
    %v94 = vld [vmem:[%s3 + $0x1c] sm:$0xf]
    %v95 = vld [vmem:[%s3 + $0x20] sm:$0xf]
    %v96 = vld [vmem:[%s3 + $0x24] sm:$0xf]
    %v97 = vld [vmem:[%s3 + $0x28] sm:$0xf]
    %v98 = vld [vmem:[%s3 + $0x2c] sm:$0xf]
    %v99 = vld [vmem:[%s3 + $0x30] sm:$0xf]
    %v100 = vld [vmem:[%s3 + $0x34] sm:$0xf]
    %v101 = vld [vmem:[%s3 + $0x38] sm:$0xf]
    %v102 = vld [vmem:[%s3 + $0x3c] sm:$0xf]
    %v103 = vld [vmem:[%s3 + $0x40] sm:$0xf]
    %v104 = vld [vmem:[%s3 + $0x44] sm:$0xf]
    %v105 = vld [vmem:[%s3 + $0x48] sm:$0xf]
    %v106 = vld [vmem:[%s3 + $0x4c] sm:$0xf]
    %v107 = vld [vmem:[%s3 + $0x50] sm:$0xf]
    %v108 = vld [vmem:[%s3 + $0x54] sm:$0xf]
    %v109 = vld [vmem:[%s3 + $0x58] sm:$0xf]
    %v110 = vld [vmem:[%s3 + $0x5c] sm:$0xf]
    %v111 = vld [vmem:[%s3 + $0x60] sm:$0xf]
    %v112 = vld [vmem:[%s3 + $0x64] sm:$0xf]
    %v113 = vld [vmem:[%s3 + $0x68] sm:$0xf]
    %v114 = vld [vmem:[%s3 + $0x6c] sm:$0xf]
    %v115 = vld [vmem:[%s3 + $0x70] sm:$0xf]
    %v116 = vld [vmem:[%s3 + $0x74] sm:$0xf]
    %v117 = vld [vmem:[%s3 + $0x78] sm:$0xf]
    %v118 = vld [vmem:[%s3 + $0x7c] sm:$0xf]
    %v119 = vld [vmem:[%s3 + $0x80] sm:$0xf]
    %v120 = vld [vmem:[%s3 + $0x84] sm:$0xf]
    %v121 = vld [vmem:[%s3 + $0x88] sm:$0xf]
    %v122 = vld [vmem:[%s3 + $0x8c] sm:$0xf]
    %v123 = vld [vmem:[%s3 + $0x90] sm:$0xf]
    %v124 = vld [vmem:[%s3 + $0x94] sm:$0xf]
    %v125 = vld [vmem:[%s3 + $0x98] sm:$0xf]
    %v126 = vld [vmem:[%s3 + $0x9c] sm:$0xf]
    %v127 = vld [vmem:[%s3 + $0xa0] sm:$0xf]
    %v128 = vld [vmem:[%s3 + $0xa4] sm:$0xf]
    %v129 = vld [vmem:[%s3 + $0xa8] sm:$0xf]
    %v130 = vld [vmem:[%s3 + $0xac] sm:$0xf]
    %v131 = vld [vmem:[%s3 + $0xb0] sm:$0xf]
    %v132 = vld [vmem:[%s3 + $0xb4] sm:$0xf]
    %v133 = vld [vmem:[%s3 + $0xb8] sm:$0xf]
    %v134 = vld [vmem:[%s3 + $0xbc] sm:$0xf]
    %v135 = vld [vmem:[%s3 + $0xc0] sm:$0xf]
    %v136 = vld [vmem:[%s3 + $0xc4] sm:$0xf]
    %v137 = vld [vmem:[%s3 + $0xc8] sm:$0xf]
    %v138 = vld [vmem:[%s3 + $0xcc] sm:$0xf]
    %v139 = vld [vmem:[%s3 + $0xd0] sm:$0xf]
    %v140 = vld [vmem:[%s3 + $0xd4] sm:$0xf]
    %v141 = vld [vmem:[%s3 + $0xd8] sm:$0xf]
    %v142 = vld [vmem:[%s3 + $0xdc] sm:$0xf]
    %v143 = vld [vmem:[%s3 + $0xe0] sm:$0xf]
    %v144 = vld [vmem:[%s3 + $0xe4] sm:$0xf]
    %v145 = vld [vmem:[%s3 + $0xe8] sm:$0xf]
    %v146 = vld [vmem:[%s3 + $0xec] sm:$0xf]
    %v147 = vld [vmem:[%s3 + $0xf0] sm:$0xf]
    %v148 = vld [vmem:[%s3 + $0xf4] sm:$0xf]
    %v149 = vld [vmem:[%s3 + $0xf8] sm:$0xf]
    %v150 = vld [vmem:[%s3 + $0xfc] sm:$0xf]
    %v151 = vld [vmem:[%s3 + $0x100] sm:$0xf]
    %v152 = vld [vmem:[%s3 + $0x104] sm:$0xf]
    %v153 = vld [vmem:[%s3 + $0x108] sm:$0xf]
    %v154 = vld [vmem:[%s3 + $0x10c] sm:$0xf]
    %v155 = vld [vmem:[%s3 + $0x110] sm:$0xf]
    %v156 = vld [vmem:[%s3 + $0x114] sm:$0xf]
    %v157 = vld [vmem:[%s3 + $0x118] sm:$0xf]
    %v158 = vld [vmem:[%s3 + $0x11c] sm:$0xf]
    %v159 = vld [vmem:[%s3 + $0x120] sm:$0xf]
    %v160 = vld [vmem:[%s3 + $0x124] sm:$0xf]
    %v161 = vld [vmem:[%s3 + $0x128] sm:$0xf]
    %v162 = vld [vmem:[%s3 + $0x12c] sm:$0xf]
    %v163 = vld [vmem:[%s3 + $0x130] sm:$0xf]
    %v164 = vld [vmem:[%s3 + $0x134] sm:$0xf]
    %v165 = vld [vmem:[%s3 + $0x138] sm:$0xf]
    %v166 = vld [vmem:[%s3 + $0x13c] sm:$0xf]
    %v167 = vpack.c.bf16 %v72, %v67
    %v168 = vpack.c.bf16 %v73, %v68
    %v169 = vpack.c.bf16 %v74, %v69
    %v170 = vpack.c.bf16 %v75, %v70
    %v171 = vpack.c.bf16 %v76, %v71
    %v172 = vpack.c.bf16 %v82, %v77
    %v173 = vpack.c.bf16 %v83, %v78
    %v174 = vpack.c.bf16 %v84, %v79
    %v175 = vpack.c.bf16 %v85, %v80
    %v176 = vpack.c.bf16 %v86, %v81
    %v177 = vld [vmem:[%s1] sm:$0xff]
    %v178 = vld [vmem:[%s1 + $0x8] sm:$0xff]
    %v179 = vld [vmem:[%s1 + $0x10] sm:$0xff]
    %v180 = vld [vmem:[%s1 + $0x18] sm:$0xff]
    %v261 = vunpack.c.l.b16 %v87
    %v262 = vunpack.c.l.b16 %v88
    %v263 = vunpack.c.l.b16 %v89
    %v264 = vunpack.c.l.b16 %v90
    %v265 = vunpack.c.l.b16 %v91
    %v266 = vunpack.c.l.b16 %v92
    %v267 = vunpack.c.l.b16 %v93
    %v268 = vunpack.c.l.b16 %v94
    %v269 = vunpack.c.l.b16 %v95
    %v270 = vunpack.c.l.b16 %v96
    %v271 = vunpack.c.l.b16 %v97
    %v272 = vunpack.c.l.b16 %v98
    %v273 = vunpack.c.l.b16 %v99
    %v274 = vunpack.c.l.b16 %v100
    %v275 = vunpack.c.l.b16 %v101
    %v276 = vunpack.c.l.b16 %v102
    %v277 = vunpack.c.l.b16 %v103
    %v278 = vunpack.c.l.b16 %v104
    %v279 = vunpack.c.l.b16 %v105
    %v280 = vunpack.c.l.b16 %v106
    %v281 = vunpack.c.l.b16 %v107
    %v282 = vunpack.c.l.b16 %v108
    %v283 = vunpack.c.l.b16 %v109
    %v284 = vunpack.c.l.b16 %v110
    %v285 = vunpack.c.l.b16 %v111
    %v286 = vunpack.c.l.b16 %v112
    %v287 = vunpack.c.l.b16 %v113
    %v288 = vunpack.c.l.b16 %v114
    %v289 = vunpack.c.l.b16 %v115
    %v290 = vunpack.c.l.b16 %v116
    %v291 = vunpack.c.l.b16 %v117
    %v292 = vunpack.c.l.b16 %v118
    %v293 = vunpack.c.l.b16 %v119
    %v294 = vunpack.c.l.b16 %v120
    %v295 = vunpack.c.l.b16 %v121
    %v296 = vunpack.c.l.b16 %v122
    %v297 = vunpack.c.l.b16 %v123
    %v298 = vunpack.c.l.b16 %v124
    %v299 = vunpack.c.l.b16 %v125
    %v300 = vunpack.c.l.b16 %v126
    %v301 = vunpack.c.l.b16 %v127
    %v302 = vunpack.c.l.b16 %v128
    %v303 = vunpack.c.l.b16 %v129
    %v304 = vunpack.c.l.b16 %v130
    %v305 = vunpack.c.l.b16 %v131
    %v306 = vunpack.c.l.b16 %v132
    %v307 = vunpack.c.l.b16 %v133
    %v308 = vunpack.c.l.b16 %v134
    %v309 = vunpack.c.l.b16 %v135
    %v310 = vunpack.c.l.b16 %v136
    %v311 = vunpack.c.l.b16 %v137
    %v312 = vunpack.c.l.b16 %v138
    %v313 = vunpack.c.l.b16 %v139
    %v314 = vunpack.c.l.b16 %v140
    %v315 = vunpack.c.l.b16 %v141
    %v316 = vunpack.c.l.b16 %v142
    %v317 = vunpack.c.l.b16 %v143
    %v318 = vunpack.c.l.b16 %v144
    %v319 = vunpack.c.l.b16 %v145
    %v320 = vunpack.c.l.b16 %v146
    %v321 = vunpack.c.l.b16 %v147
    %v322 = vunpack.c.l.b16 %v148
    %v323 = vunpack.c.l.b16 %v149
    %v324 = vunpack.c.l.b16 %v150
    %v325 = vunpack.c.l.b16 %v151
    %v326 = vunpack.c.l.b16 %v152
    %v327 = vunpack.c.l.b16 %v153
    %v328 = vunpack.c.l.b16 %v154
    %v329 = vunpack.c.l.b16 %v155
    %v330 = vunpack.c.l.b16 %v156
    %v331 = vunpack.c.l.b16 %v157
    %v332 = vunpack.c.l.b16 %v158
    %v333 = vunpack.c.l.b16 %v159
    %v334 = vunpack.c.l.b16 %v160
    %v335 = vunpack.c.l.b16 %v161
    %v336 = vunpack.c.l.b16 %v162
    %v337 = vunpack.c.l.b16 %v163
    %v338 = vunpack.c.l.b16 %v164
    %v339 = vunpack.c.l.b16 %v165
    %v340 = vunpack.c.l.b16 %v166
    %v341 = vpack.c.b16 %v262, %v261
    %v342 = vpack.c.b16 %v264, %v263
    %v343 = vpack.c.b16 %v266, %v265
    %v344 = vpack.c.b16 %v268, %v267
    %v345 = vpack.c.b16 %v270, %v269
    %v346 = vpack.c.b16 %v272, %v271
    %v347 = vpack.c.b16 %v274, %v273
    %v348 = vpack.c.b16 %v276, %v275
    %v349 = vpack.c.b16 %v278, %v277
    %v350 = vpack.c.b16 %v280, %v279
    %v351 = vpack.c.b16 %v282, %v281
    %v352 = vpack.c.b16 %v284, %v283
    %v353 = vpack.c.b16 %v286, %v285
    %v354 = vpack.c.b16 %v288, %v287
    %v355 = vpack.c.b16 %v290, %v289
    %v356 = vpack.c.b16 %v292, %v291
    %v357 = vpack.c.b16 %v294, %v293
    %v358 = vpack.c.b16 %v296, %v295
    %v359 = vpack.c.b16 %v298, %v297
    %v360 = vpack.c.b16 %v300, %v299
    %v361 = vpack.c.b16 %v302, %v301
    %v362 = vpack.c.b16 %v304, %v303
    %v363 = vpack.c.b16 %v306, %v305
    %v364 = vpack.c.b16 %v308, %v307
    %v365 = vpack.c.b16 %v310, %v309
    %v366 = vpack.c.b16 %v312, %v311
    %v367 = vpack.c.b16 %v314, %v313
    %v368 = vpack.c.b16 %v316, %v315
    %v369 = vpack.c.b16 %v318, %v317
    %v370 = vpack.c.b16 %v320, %v319
    %v371 = vpack.c.b16 %v322, %v321
    %v372 = vpack.c.b16 %v324, %v323
    %v373 = vpack.c.b16 %v326, %v325
    %v374 = vpack.c.b16 %v328, %v327
    %v375 = vpack.c.b16 %v330, %v329
    %v376 = vpack.c.b16 %v332, %v331
    %v377 = vpack.c.b16 %v334, %v333
    %v378 = vpack.c.b16 %v336, %v335
    %v379 = vpack.c.b16 %v338, %v337
    %v380 = vpack.c.b16 %v340, %v339
    %421 = vmatprep.subr.bf16.mxu0 0
    %422 = vmatpush1.bf16.msra.mxu0 %v341
    %423 = vmatprep.subr.bf16.mxu0 0
    %424 = vmatpush1.bf16.msra.mxu0 %v342
    %425 = vmatprep.subr.bf16.mxu0 0
    %426 = vmatpush1.bf16.msra.mxu0 %v343
    %427 = vmatprep.subr.bf16.mxu0 0
    %428 = vmatpush1.bf16.msra.mxu0 %v344
    %429 = vmatprep.subr.bf16.mxu0 0
    %430 = vmatpush1.bf16.msra.mxu0 %v345
    %431 = vmatprep.subr.bf16.mxu0 0
    %432 = vmatpush1.bf16.msra.mxu0 %v346
    %433 = vmatprep.subr.bf16.mxu0 0
    %434 = vmatpush1.bf16.msra.mxu0 %v347
    %435 = vmatprep.subr.bf16.mxu0 0
    %436 = vmatpush1.bf16.msra.mxu0 %v348
    %437 = vmatprep.subr.bf16.mxu0 0
    %438 = vmatpush1.bf16.msra.mxu0 %v349
    %439 = vmatprep.subr.bf16.mxu0 0
    %440 = vmatpush1.bf16.msra.mxu0 %v350
    %441 = vmatprep.subr.bf16.mxu0 0
    %442 = vmatpush1.bf16.msra.mxu0 %v351
    %443 = vmatprep.subr.bf16.mxu0 0
    %444 = vmatpush1.bf16.msra.mxu0 %v352
    %445 = vmatprep.subr.bf16.mxu0 0
    %446 = vmatpush1.bf16.msra.mxu0 %v353
    %447 = vmatprep.subr.bf16.mxu0 0
    %448 = vmatpush1.bf16.msra.mxu0 %v354
    %449 = vmatprep.subr.bf16.mxu0 0
    %450 = vmatpush1.bf16.msra.mxu0 %v355
    %451 = vmatprep.subr.bf16.mxu0 0
    %452 = vmatpush1.bf16.msra.mxu0 %v356
    %453 = vmatprep.mubr.bf16.mxu0 %v168
    %454 = vmatmul.mubr.bf16.gmra.mrb[0].mxu0 %v167
    %v455 = vpop.f32.mrb[0].mxu0
    %v456 = vadd.f32 %v177, %v455
    %v457 = vpop.f32.mrb[0].mxu0
    %v458 = vpop.f32.mrb[0].mxu0
    %v459 = vadd.f32 %v178, %v458
    %v460 = vpop.f32.mrb[0].mxu0
    %461 = vmatprep.mubr.bf16.mxu0 %v173
    %462 = vmatmul.mubr.bf16.gmra.mrb[0].mxu0 %v172
    %v463 = vpop.f32.mrb[0].mxu0
    %v464 = vadd.f32 %v179, %v463
    %v465 = vpop.f32.mrb[0].mxu0
    %v466 = vpop.f32.mrb[0].mxu0
    %v467 = vadd.f32 %v180, %v466
    %v468 = vpop.f32.mrb[0].mxu0
    %469 = vdwg.mxu0
    %470 = vmatprep.subr.bf16.mxu0 0
    %471 = vmatpush1.bf16.msra.mxu0 %v357
    %472 = vmatprep.subr.bf16.mxu0 0
    %473 = vmatpush1.bf16.msra.mxu0 %v358
    %474 = vmatprep.subr.bf16.mxu0 0
    %475 = vmatpush1.bf16.msra.mxu0 %v359
    %476 = vmatprep.subr.bf16.mxu0 0
    %477 = vmatpush1.bf16.msra.mxu0 %v360
    %478 = vmatprep.subr.bf16.mxu0 0
    %479 = vmatpush1.bf16.msra.mxu0 %v361
    %480 = vmatprep.subr.bf16.mxu0 0
    %481 = vmatpush1.bf16.msra.mxu0 %v362
    %482 = vmatprep.subr.bf16.mxu0 0
    %483 = vmatpush1.bf16.msra.mxu0 %v363
    %484 = vmatprep.subr.bf16.mxu0 0
    %485 = vmatpush1.bf16.msra.mxu0 %v364
    %486 = vmatprep.subr.bf16.mxu0 0
    %487 = vmatpush1.bf16.msra.mxu0 %v365
    %488 = vmatprep.subr.bf16.mxu0 0
    %489 = vmatpush1.bf16.msra.mxu0 %v366
    %490 = vmatprep.subr.bf16.mxu0 0
    %491 = vmatpush1.bf16.msra.mxu0 %v367
    %492 = vmatprep.subr.bf16.mxu0 0
    %493 = vmatpush1.bf16.msra.mxu0 %v368
    %494 = vmatprep.subr.bf16.mxu0 0
    %495 = vmatpush1.bf16.msra.mxu0 %v369
    %496 = vmatprep.subr.bf16.mxu0 0
    %497 = vmatpush1.bf16.msra.mxu0 %v370
    %498 = vmatprep.subr.bf16.mxu0 0
    %499 = vmatpush1.bf16.msra.mxu0 %v371
    %500 = vmatprep.subr.bf16.mxu0 0
    %501 = vmatpush1.bf16.msra.mxu0 %v372
    %502 = vmatprep.mubr.bf16.mxu0 %v170
    %503 = vmatmul.mubr.bf16.gmra.mrb[0].mxu0 %v169
    %v504 = vpop.f32.mrb[0].mxu0
    %v505 = vadd.f32 %v456, %v504
    %v506 = vpop.f32.mrb[0].mxu0
    %v507 = vpop.f32.mrb[0].mxu0
    %v508 = vadd.f32 %v459, %v507
    %v509 = vpop.f32.mrb[0].mxu0
    %510 = vmatprep.mubr.bf16.mxu0 %v175
    %511 = vmatmul.mubr.bf16.gmra.mrb[0].mxu0 %v174
    %v512 = vpop.f32.mrb[0].mxu0
    %v513 = vadd.f32 %v464, %v512
    %v514 = vpop.f32.mrb[0].mxu0
    %v515 = vpop.f32.mrb[0].mxu0
    %v516 = vadd.f32 %v467, %v515
    %v517 = vpop.f32.mrb[0].mxu0
    %518 = vdwg.mxu0
    %519 = vmatprep.subr.bf16.mxu0 0
    %520 = vmatpush1.bf16.msra.mxu0 %v373
    %521 = vmatprep.subr.bf16.mxu0 0
    %522 = vmatpush1.bf16.msra.mxu0 %v374
    %523 = vmatprep.subr.bf16.mxu0 0
    %524 = vmatpush1.bf16.msra.mxu0 %v375
    %525 = vmatprep.subr.bf16.mxu0 0
    %526 = vmatpush1.bf16.msra.mxu0 %v376
    %527 = vmatprep.subr.bf16.mxu0 0
    %528 = vmatpush1.bf16.msra.mxu0 %v377
    %529 = vmatprep.subr.bf16.mxu0 0
    %530 = vmatpush1.bf16.msra.mxu0 %v378
    %531 = vmatprep.subr.bf16.mxu0 0
    %532 = vmatpush1.bf16.msra.mxu0 %v379
    %533 = vmatprep.subr.bf16.mxu0 0
    %534 = vmatpush1.bf16.msra.mxu0 %v380
    %535 = vmatprep.subr.bf16.mxu0 0
    %536 = vmatpush1.bf16.msra.mxu0 0
    %537 = vmatprep.subr.bf16.mxu0 0
    %538 = vmatpush1.bf16.msra.mxu0 0
    %539 = vmatprep.subr.bf16.mxu0 0
    %540 = vmatpush1.bf16.msra.mxu0 0
    %541 = vmatprep.subr.bf16.mxu0 0
    %542 = vmatpush1.bf16.msra.mxu0 0
    %543 = vmatprep.subr.bf16.mxu0 0
    %544 = vmatpush1.bf16.msra.mxu0 0
    %545 = vmatprep.subr.bf16.mxu0 0
    %546 = vmatpush1.bf16.msra.mxu0 0
    %547 = vmatprep.subr.bf16.mxu0 0
    %548 = vmatpush1.bf16.msra.mxu0 0
    %549 = vmatprep.subr.bf16.mxu0 0
    %550 = vmatpush1.bf16.msra.mxu0 0
    %551 = vmatprep.mubr.bf16.mxu0 0
    %552 = vmatmul.mubr.bf16.gmra.mrb[0].mxu0 %v171
    %v553 = vpop.f32.mrb[0].mxu0
    %v554 = vadd.f32 %v505, %v553
    %v555 = vpop.f32.mrb[0].mxu0
    %v556 = vpop.f32.mrb[0].mxu0
    %v557 = vadd.f32 %v508, %v556
    %v558 = vpop.f32.mrb[0].mxu0
    %559 = vmatprep.mubr.bf16.mxu0 0
    %560 = vmatmul.mubr.bf16.gmra.mrb[0].mxu0 %v176
    %v561 = vpop.f32.mrb[0].mxu0
    %v562 = vadd.f32 %v513, %v561
    %v563 = vpop.f32.mrb[0].mxu0
    %v564 = vpop.f32.mrb[0].mxu0
    %v565 = vadd.f32 %v516, %v564
    %v566 = vpop.f32.mrb[0].mxu0
    %567 = vdwg.mxu0
    %v568 = vld [vmem:[%s2] sm:$0xff]
    %v569 = vld [vmem:[%s4] sm:$0x1]
    %v570 = vld [vmem:[%s5] sm:$0x1]
    %571 = vadd.xlane.f32.xlu0 %v554
    %v572 = vpop.xlane.xlu0 %571
    %573 = vadd.xlane.f32.xlu0 %v557
    %v574 = vpop.xlane.xlu0 %573
    %575 = vadd.xlane.f32.xlu0 %v562
    %v576 = vpop.xlane.xlu0 %575
    %577 = vadd.xlane.f32.xlu0 %v565
    %v578 = vpop.xlane.xlu0 %577
    %v579 = vrcp.pop 128.0
    %v580 = vmul.f32 %v572, %v579
    %v581 = vmul.f32 %v574, %v579
    %v582 = vmul.f32 %v576, %v579
    %v583 = vmul.f32 %v578, %v579
    %v584 = vmul.f32 %v554, %v554
    %v585 = vmul.f32 %v557, %v557
    %v586 = vmul.f32 %v562, %v562
    %v587 = vmul.f32 %v565, %v565
    %588 = vadd.xlane.f32.xlu0 %v584
    %v589 = vpop.xlane.xlu0 %588
    %590 = vadd.xlane.f32.xlu0 %v585
    %v591 = vpop.xlane.xlu0 %590
    %592 = vadd.xlane.f32.xlu0 %v586
    %v593 = vpop.xlane.xlu0 %592
    %594 = vadd.xlane.f32.xlu0 %v587
    %v595 = vpop.xlane.xlu0 %594
    %v596 = vmul.f32 %v589, %v579
    %v597 = vmul.f32 %v591, %v579
    %v598 = vmul.f32 %v593, %v579
    %v599 = vmul.f32 %v595, %v579
    %v600 = vmul.f32 %v580, %v580
    %v601 = vmul.f32 %v581, %v581
    %v602 = vmul.f32 %v582, %v582
    %v603 = vmul.f32 %v583, %v583
    %v604 = vsub.f32 %v596, %v600
    %v605 = vsub.f32 %v597, %v601
    %v606 = vsub.f32 %v598, %v602
    %v607 = vsub.f32 %v599, %v603
    %v608 = vsub.f32 %v554, %v580
    %v609 = vsub.f32 %v557, %v581
    %v610 = vsub.f32 %v562, %v582
    %v611 = vsub.f32 %v565, %v583
    %v612 = vadd.f32 %v604, 1e-06
    %v613 = vadd.f32 %v605, 1e-06
    %v614 = vadd.f32 %v606, 1e-06
    %v615 = vadd.f32 %v607, 1e-06
    %v616 = vrsqrt.pop %v612
    %v617 = vrsqrt.pop %v613
    %v618 = vrsqrt.pop %v614
    %v619 = vrsqrt.pop %v615
    %v620 = vmul.f32 %v608, %v616
    %v621 = vmul.f32 %v609, %v617
    %v622 = vmul.f32 %v610, %v618
    %v623 = vmul.f32 %v611, %v619
    %v625 = vlaneseq
    %v626 = vshrl.u32 %v625, 7
    %v627 = vsub.s32 0, %v626
    %v628 = vrot.slane %v569, %v627
    %v630 = vmul.f32 %v620, %v628
    %v631 = vmul.f32 %v621, %v628
    %v632 = vmul.f32 %v622, %v628
    %v633 = vmul.f32 %v623, %v628
    %v635 = vlaneseq
    %v636 = vshrl.u32 %v635, 7
    %v637 = vsub.s32 0, %v636
    %v638 = vrot.slane %v570, %v637
    %v640 = vadd.f32 %v630, %v638
    %v641 = vadd.f32 %v631, %v638
    %v642 = vadd.f32 %v632, %v638
    %v643 = vadd.f32 %v633, %v638
    %v644 = vld [vmem:[%s6] sm:$0xff]
    %v645 = vld [vmem:[%s6 + $0x8] sm:$0xf]
    %v646 = vld [vmem:[%s6 + $0xc] sm:$0xff]
    %v647 = vld [vmem:[%s6 + $0x14] sm:$0xf]
    %v648 = vld [vmem:[%s6 + $0x18] sm:$0xff]
    %v649 = vld [vmem:[%s6 + $0x20] sm:$0xf]
    %v650 = vld [vmem:[%s6 + $0x24] sm:$0xff]
    %v651 = vld [vmem:[%s6 + $0x2c] sm:$0xf]
    %v652 = vld [vmem:[%s6 + $0x30] sm:$0xff]
    %v653 = vld [vmem:[%s6 + $0x38] sm:$0xf]
    %v654 = vld [vmem:[%s6 + $0x3c] sm:$0xff]
    %v655 = vld [vmem:[%s6 + $0x44] sm:$0xf]
    %v656 = vld [vmem:[%s6 + $0x48] sm:$0xff]
    %v657 = vld [vmem:[%s6 + $0x50] sm:$0xf]
    %v658 = vld [vmem:[%s6 + $0x54] sm:$0xff]
    %v659 = vld [vmem:[%s6 + $0x5c] sm:$0xf]
    %v660 = vld [vmem:[%s6 + $0x60] sm:$0xff]
    %v661 = vld [vmem:[%s6 + $0x68] sm:$0xf]
    %v662 = vld [vmem:[%s6 + $0x6c] sm:$0xff]
    %v663 = vld [vmem:[%s6 + $0x74] sm:$0xf]
    %v664 = vld [vmem:[%s6 + $0x78] sm:$0xff]
    %v665 = vld [vmem:[%s6 + $0x80] sm:$0xf]
    %v666 = vld [vmem:[%s6 + $0x84] sm:$0xff]
    %v667 = vld [vmem:[%s6 + $0x8c] sm:$0xf]
    %v668 = vld [vmem:[%s6 + $0x90] sm:$0xff]
    %v669 = vld [vmem:[%s6 + $0x98] sm:$0xf]
    %v670 = vld [vmem:[%s6 + $0x9c] sm:$0xff]
    %v671 = vld [vmem:[%s6 + $0xa4] sm:$0xf]
    %v672 = vld [vmem:[%s6 + $0xa8] sm:$0xff]
    %v673 = vld [vmem:[%s6 + $0xb0] sm:$0xf]
    %v674 = vld [vmem:[%s6 + $0xb4] sm:$0xff]
    %v675 = vld [vmem:[%s6 + $0xbc] sm:$0xf]
    %v676 = vpack.c.bf16 %v641, %v640
    %v677 = vpack.c.bf16 %v643, %v642
    %v678 = vld [vmem:[%s7] sm:$0x7]
    %v680 = vlaneseq
    %v681 = vshrl.u32 %v680, 7
    %v682 = vsub.s32 0, %v681
    %v683 = vrot.slane %v678, %v682
    %v684 = vlaneseq
    %v685 = vshrl.u32 %v684, 7
    %v686 = vsub.s32 1, %v685
    %v687 = vrot.slane %v678, %v686
    %v688 = vlaneseq
    %v689 = vshrl.u32 %v688, 7
    %v690 = vsub.s32 2, %v689
    %v691 = vrot.slane %v678, %v690
    %v727 = vunpack.c.l.b16 %v644
    %v728 = vunpack.c.h.b16 %v644
    %v729 = vunpack.c.l.b16 %v645
    %v730 = vunpack.c.l.b16 %v646
    %v731 = vunpack.c.h.b16 %v646
    %v732 = vunpack.c.l.b16 %v647
    %v733 = vunpack.c.l.b16 %v648
    %v734 = vunpack.c.h.b16 %v648
    %v735 = vunpack.c.l.b16 %v649
    %v736 = vunpack.c.l.b16 %v650
    %v737 = vunpack.c.h.b16 %v650
    %v738 = vunpack.c.l.b16 %v651
    %v739 = vunpack.c.l.b16 %v652
    %v740 = vunpack.c.h.b16 %v652
    %v741 = vunpack.c.l.b16 %v653
    %v742 = vunpack.c.l.b16 %v654
    %v743 = vunpack.c.h.b16 %v654
    %v744 = vunpack.c.l.b16 %v655
    %v745 = vunpack.c.l.b16 %v656
    %v746 = vunpack.c.h.b16 %v656
    %v747 = vunpack.c.l.b16 %v657
    %v748 = vunpack.c.l.b16 %v658
    %v749 = vunpack.c.h.b16 %v658
    %v750 = vunpack.c.l.b16 %v659
    %v751 = vunpack.c.l.b16 %v660
    %v752 = vunpack.c.h.b16 %v660
    %v753 = vunpack.c.l.b16 %v661
    %v754 = vunpack.c.l.b16 %v662
    %v755 = vunpack.c.h.b16 %v662
    %v756 = vunpack.c.l.b16 %v663
    %v757 = vunpack.c.l.b16 %v664
    %v758 = vunpack.c.h.b16 %v664
    %v759 = vunpack.c.l.b16 %v665
    %v760 = vunpack.c.l.b16 %v666
    %v761 = vunpack.c.h.b16 %v666
    %v762 = vunpack.c.l.b16 %v667
    %v763 = vunpack.c.l.b16 %v668
    %v764 = vunpack.c.h.b16 %v668
    %v765 = vunpack.c.l.b16 %v669
    %v766 = vunpack.c.l.b16 %v670
    %v767 = vunpack.c.h.b16 %v670
    %v768 = vunpack.c.l.b16 %v671
    %v769 = vunpack.c.l.b16 %v672
    %v770 = vunpack.c.h.b16 %v672
    %v771 = vunpack.c.l.b16 %v673
    %v772 = vunpack.c.l.b16 %v674
    %v773 = vunpack.c.h.b16 %v674
    %v774 = vunpack.c.l.b16 %v675
    %v775 = vpack.c.b16 %v730, %v727
    %v776 = vpack.c.b16 %v731, %v728
    %v777 = vpack.c.b16 %v732, %v729
    %v778 = vpack.c.b16 %v736, %v733
    %v779 = vpack.c.b16 %v737, %v734
    %v780 = vpack.c.b16 %v738, %v735
    %v781 = vpack.c.b16 %v742, %v739
    %v782 = vpack.c.b16 %v743, %v740
    %v783 = vpack.c.b16 %v744, %v741
    %v784 = vpack.c.b16 %v748, %v745
    %v785 = vpack.c.b16 %v749, %v746
    %v786 = vpack.c.b16 %v750, %v747
    %v787 = vpack.c.b16 %v754, %v751
    %v788 = vpack.c.b16 %v755, %v752
    %v789 = vpack.c.b16 %v756, %v753
    %v790 = vpack.c.b16 %v760, %v757
    %v791 = vpack.c.b16 %v761, %v758
    %v792 = vpack.c.b16 %v762, %v759
    %v793 = vpack.c.b16 %v766, %v763
    %v794 = vpack.c.b16 %v767, %v764
    %v795 = vpack.c.b16 %v768, %v765
    %v796 = vpack.c.b16 %v772, %v769
    %v797 = vpack.c.b16 %v773, %v770
    %v798 = vpack.c.b16 %v774, %v771
    %823 = vmatprep.subr.bf16.mxu0 %v776
    %824 = vmatpush1.bf16.msra.mxu0 %v775
    %825 = vmatprep.subr.bf16.mxu0 %v779
    %826 = vmatpush1.bf16.msra.mxu0 %v778
    %827 = vmatprep.subr.bf16.mxu0 %v782
    %828 = vmatpush1.bf16.msra.mxu0 %v781
    %829 = vmatprep.subr.bf16.mxu0 %v785
    %830 = vmatpush1.bf16.msra.mxu0 %v784
    %831 = vmatprep.subr.bf16.mxu0 %v788
    %832 = vmatpush1.bf16.msra.mxu0 %v787
    %833 = vmatprep.subr.bf16.mxu0 %v791
    %834 = vmatpush1.bf16.msra.mxu0 %v790
    %835 = vmatprep.subr.bf16.mxu0 %v794
    %836 = vmatpush1.bf16.msra.mxu0 %v793
    %837 = vmatprep.subr.bf16.mxu0 %v797
    %838 = vmatpush1.bf16.msra.mxu0 %v796
    %839 = vmatprep.subr.bf16.mxu0 0
    %840 = vmatpush1.bf16.msra.mxu0 0
    %841 = vmatprep.subr.bf16.mxu0 0
    %842 = vmatpush1.bf16.msra.mxu0 0
    %843 = vmatprep.subr.bf16.mxu0 0
    %844 = vmatpush1.bf16.msra.mxu0 0
    %845 = vmatprep.subr.bf16.mxu0 0
    %846 = vmatpush1.bf16.msra.mxu0 0
    %847 = vmatprep.subr.bf16.mxu0 0
    %848 = vmatpush1.bf16.msra.mxu0 0
    %849 = vmatprep.subr.bf16.mxu0 0
    %850 = vmatpush1.bf16.msra.mxu0 0
    %851 = vmatprep.subr.bf16.mxu0 0
    %852 = vmatpush1.bf16.msra.mxu0 0
    %853 = vmatprep.subr.bf16.mxu0 0
    %854 = vmatpush1.bf16.msra.mxu0 0
    %855 = vmatprep.mubr.bf16.mxu0 0
    %856 = vmatmul.mubr.bf16.gmra.mrb[0].mxu0 %v676
    %v857 = vpop.f32.mrb[0].mxu0
    %v858 = vadd.f32 %v683, %v857
    %v859 = vpop.f32.mrb[0].mxu0
    %v860 = vadd.f32 %v687, %v859
    %v861 = vpop.f32.mrb[0].mxu0
    %v862 = vadd.f32 %v683, %v861
    %v863 = vpop.f32.mrb[0].mxu0
    %v864 = vadd.f32 %v687, %v863
    %865 = vmatprep.mubr.bf16.mxu0 0
    %866 = vmatmul.mubr.bf16.gmra.mrb[0].mxu0 %v677
    %v867 = vpop.f32.mrb[0].mxu0
    %v868 = vadd.f32 %v683, %v867
    %v869 = vpop.f32.mrb[0].mxu0
    %v870 = vadd.f32 %v687, %v869
    %v871 = vpop.f32.mrb[0].mxu0
    %v872 = vadd.f32 %v683, %v871
    %v873 = vpop.f32.mrb[0].mxu0
    %v874 = vadd.f32 %v687, %v873
    %875 = vdwg.mxu0
    %876 = vmatprep.subr.bf16.mxu0 0
    %877 = vmatpush1.bf16.msra.mxu0 %v777
    %878 = vmatprep.subr.bf16.mxu0 0
    %879 = vmatpush1.bf16.msra.mxu0 %v780
    %880 = vmatprep.subr.bf16.mxu0 0
    %881 = vmatpush1.bf16.msra.mxu0 %v783
    %882 = vmatprep.subr.bf16.mxu0 0
    %883 = vmatpush1.bf16.msra.mxu0 %v786
    %884 = vmatprep.subr.bf16.mxu0 0
    %885 = vmatpush1.bf16.msra.mxu0 %v789
    %886 = vmatprep.subr.bf16.mxu0 0
    %887 = vmatpush1.bf16.msra.mxu0 %v792
    %888 = vmatprep.subr.bf16.mxu0 0
    %889 = vmatpush1.bf16.msra.mxu0 %v795
    %890 = vmatprep.subr.bf16.mxu0 0
    %891 = vmatpush1.bf16.msra.mxu0 %v798
    %892 = vmatprep.subr.bf16.mxu0 0
    %893 = vmatpush1.bf16.msra.mxu0 0
    %894 = vmatprep.subr.bf16.mxu0 0
    %895 = vmatpush1.bf16.msra.mxu0 0
    %896 = vmatprep.subr.bf16.mxu0 0
    %897 = vmatpush1.bf16.msra.mxu0 0
    %898 = vmatprep.subr.bf16.mxu0 0
    %899 = vmatpush1.bf16.msra.mxu0 0
    %900 = vmatprep.subr.bf16.mxu0 0
    %901 = vmatpush1.bf16.msra.mxu0 0
    %902 = vmatprep.subr.bf16.mxu0 0
    %903 = vmatpush1.bf16.msra.mxu0 0
    %904 = vmatprep.subr.bf16.mxu0 0
    %905 = vmatpush1.bf16.msra.mxu0 0
    %906 = vmatprep.subr.bf16.mxu0 0
    %907 = vmatpush1.bf16.msra.mxu0 0
    %908 = vmatprep.mubr.bf16.mxu0 0
    %909 = vmatmul.mubr.bf16.gmra.mrb[0].mxu0 %v676
    %v910 = vpop.f32.mrb[0].mxu0
    %v911 = vadd.f32 %v691, %v910
    %v912 = vpop.f32.mrb[0].mxu0
    %v913 = vpop.f32.mrb[0].mxu0
    %v914 = vadd.f32 %v691, %v913
    %v915 = vpop.f32.mrb[0].mxu0
    %916 = vmatprep.mubr.bf16.mxu0 0
    %917 = vmatmul.mubr.bf16.gmra.mrb[0].mxu0 %v677
    %v918 = vpop.f32.mrb[0].mxu0
    %v919 = vadd.f32 %v691, %v918
    %v920 = vpop.f32.mrb[0].mxu0
    %v921 = vpop.f32.mrb[0].mxu0
    %v922 = vadd.f32 %v691, %v921
    %v923 = vpop.f32.mrb[0].mxu0
    %924 = vdwg.mxu0
    %v925 = vpack.c.bf16 %v858, %v858
    %v926 = vpack.c.bf16 %v862, %v862
    %v927 = vpack.c.bf16 %v868, %v868
    %v928 = vpack.c.bf16 %v872, %v872
    %v929 = vpack.c.bf16 %v860, %v860
    %v930 = vpack.c.bf16 %v864, %v864
    %v931 = vpack.c.bf16 %v870, %v870
    %v932 = vpack.c.bf16 %v874, %v874
    %vm933 = vcmask 523264
    %v935 = vsel %vm933, %v925, 0
    %v938 = vsel %vm933, %v929, 0
    %940 = vmatprep.subr.bf16.mxu0 0
    %941 = vmatpush1.bf16.xpose.msra.mxu0 %v938
    %942 = vmatprep.subr.bf16.mxu0 0
    %943 = vmatpush1.bf16.xpose.msra.mxu0 0
    %944 = vmatprep.subr.bf16.mxu0 0
    %945 = vmatpush1.bf16.xpose.msra.mxu0 0
    %946 = vmatprep.subr.bf16.mxu0 0
    %947 = vmatpush1.bf16.xpose.msra.mxu0 0
    %948 = vmatprep.subr.bf16.mxu0 0
    %949 = vmatpush1.bf16.xpose.msra.mxu0 0
    %950 = vmatprep.subr.bf16.mxu0 0
    %951 = vmatpush1.bf16.xpose.msra.mxu0 0
    %952 = vmatprep.subr.bf16.mxu0 0
    %953 = vmatpush1.bf16.xpose.msra.mxu0 0
    %954 = vmatprep.subr.bf16.mxu0 0
    %955 = vmatpush1.bf16.xpose.msra.mxu0 0
    %956 = vmatprep.subr.bf16.mxu0 0
    %957 = vmatpush1.bf16.xpose.msra.mxu0 0
    %958 = vmatprep.subr.bf16.mxu0 0
    %959 = vmatpush1.bf16.xpose.msra.mxu0 0
    %960 = vmatprep.subr.bf16.mxu0 0
    %961 = vmatpush1.bf16.xpose.msra.mxu0 0
    %962 = vmatprep.subr.bf16.mxu0 0
    %963 = vmatpush1.bf16.xpose.msra.mxu0 0
    %964 = vmatprep.subr.bf16.mxu0 0
    %965 = vmatpush1.bf16.xpose.msra.mxu0 0
    %966 = vmatprep.subr.bf16.mxu0 0
    %967 = vmatpush1.bf16.xpose.msra.mxu0 0
    %968 = vmatprep.subr.bf16.mxu0 0
    %969 = vmatpush1.bf16.xpose.msra.mxu0 0
    %970 = vmatprep.subr.bf16.mxu0 0
    %971 = vmatpush1.bf16.xpose.msra.mxu0 0
    %972 = vmatprep.mubr.bf16.mxu0 0
    %973 = vmatmul.mubr.bf16.gmra.mrb[0].mxu0 %v935
    %v974 = vpop.f32.mrb[0].mxu0
    %v975 = vadd.f32 0.0, %v974
    %v976 = vpop.f32.mrb[0].mxu0
    %v977 = vpop.f32.mrb[0].mxu0
    %v978 = vpop.f32.mrb[0].mxu0
    %979 = vdwg.mxu0
    %v981 = vsel %vm933, %v926, 0
    %v984 = vsel %vm933, %v930, 0
    %986 = vmatprep.subr.bf16.mxu0 0
    %987 = vmatpush1.bf16.xpose.msra.mxu0 %v984
    %988 = vmatprep.subr.bf16.mxu0 0
    %989 = vmatpush1.bf16.xpose.msra.mxu0 0
    %990 = vmatprep.subr.bf16.mxu0 0
    %991 = vmatpush1.bf16.xpose.msra.mxu0 0
    %992 = vmatprep.subr.bf16.mxu0 0
    %993 = vmatpush1.bf16.xpose.msra.mxu0 0
    %994 = vmatprep.subr.bf16.mxu0 0
    %995 = vmatpush1.bf16.xpose.msra.mxu0 0
    %996 = vmatprep.subr.bf16.mxu0 0
    %997 = vmatpush1.bf16.xpose.msra.mxu0 0
    %998 = vmatprep.subr.bf16.mxu0 0
    %999 = vmatpush1.bf16.xpose.msra.mxu0 0
    %1000 = vmatprep.subr.bf16.mxu0 0
    %1001 = vmatpush1.bf16.xpose.msra.mxu0 0
    %1002 = vmatprep.subr.bf16.mxu0 0
    %1003 = vmatpush1.bf16.xpose.msra.mxu0 0
    %1004 = vmatprep.subr.bf16.mxu0 0
    %1005 = vmatpush1.bf16.xpose.msra.mxu0 0
    %1006 = vmatprep.subr.bf16.mxu0 0
    %1007 = vmatpush1.bf16.xpose.msra.mxu0 0
    %1008 = vmatprep.subr.bf16.mxu0 0
    %1009 = vmatpush1.bf16.xpose.msra.mxu0 0
    %1010 = vmatprep.subr.bf16.mxu0 0
    %1011 = vmatpush1.bf16.xpose.msra.mxu0 0
    %1012 = vmatprep.subr.bf16.mxu0 0
    %1013 = vmatpush1.bf16.xpose.msra.mxu0 0
    %1014 = vmatprep.subr.bf16.mxu0 0
    %1015 = vmatpush1.bf16.xpose.msra.mxu0 0
    %1016 = vmatprep.subr.bf16.mxu0 0
    %1017 = vmatpush1.bf16.xpose.msra.mxu0 0
    %1018 = vmatprep.mubr.bf16.mxu0 0
    %1019 = vmatmul.mubr.bf16.gmra.mrb[0].mxu0 %v981
    %v1020 = vpop.f32.mrb[0].mxu0
    %v1021 = vadd.f32 0.0, %v1020
    %v1022 = vpop.f32.mrb[0].mxu0
    %v1023 = vpop.f32.mrb[0].mxu0
    %v1024 = vpop.f32.mrb[0].mxu0
    %1025 = vdwg.mxu0
    %v1027 = vsel %vm933, %v927, 0
    %v1030 = vsel %vm933, %v931, 0
    %1032 = vmatprep.subr.bf16.mxu0 0
    %1033 = vmatpush1.bf16.xpose.msra.mxu0 %v1030
    %1034 = vmatprep.subr.bf16.mxu0 0
    %1035 = vmatpush1.bf16.xpose.msra.mxu0 0
    %1036 = vmatprep.subr.bf16.mxu0 0
    %1037 = vmatpush1.bf16.xpose.msra.mxu0 0
    %1038 = vmatprep.subr.bf16.mxu0 0
    %1039 = vmatpush1.bf16.xpose.msra.mxu0 0
    %1040 = vmatprep.subr.bf16.mxu0 0
    %1041 = vmatpush1.bf16.xpose.msra.mxu0 0
    %1042 = vmatprep.subr.bf16.mxu0 0
    %1043 = vmatpush1.bf16.xpose.msra.mxu0 0
    %1044 = vmatprep.subr.bf16.mxu0 0
    %1045 = vmatpush1.bf16.xpose.msra.mxu0 0
    %1046 = vmatprep.subr.bf16.mxu0 0
    %1047 = vmatpush1.bf16.xpose.msra.mxu0 0
    %1048 = vmatprep.subr.bf16.mxu0 0
    %1049 = vmatpush1.bf16.xpose.msra.mxu0 0
    %1050 = vmatprep.subr.bf16.mxu0 0
    %1051 = vmatpush1.bf16.xpose.msra.mxu0 0
    %1052 = vmatprep.subr.bf16.mxu0 0
    %1053 = vmatpush1.bf16.xpose.msra.mxu0 0
    %1054 = vmatprep.subr.bf16.mxu0 0
    %1055 = vmatpush1.bf16.xpose.msra.mxu0 0
    %1056 = vmatprep.subr.bf16.mxu0 0
    %1057 = vmatpush1.bf16.xpose.msra.mxu0 0
    %1058 = vmatprep.subr.bf16.mxu0 0
    %1059 = vmatpush1.bf16.xpose.msra.mxu0 0
    %1060 = vmatprep.subr.bf16.mxu0 0
    %1061 = vmatpush1.bf16.xpose.msra.mxu0 0
    %1062 = vmatprep.subr.bf16.mxu0 0
    %1063 = vmatpush1.bf16.xpose.msra.mxu0 0
    %1064 = vmatprep.mubr.bf16.mxu0 0
    %1065 = vmatmul.mubr.bf16.gmra.mrb[0].mxu0 %v1027
    %v1066 = vpop.f32.mrb[0].mxu0
    %v1067 = vadd.f32 0.0, %v1066
    %v1068 = vpop.f32.mrb[0].mxu0
    %v1069 = vpop.f32.mrb[0].mxu0
    %v1070 = vpop.f32.mrb[0].mxu0
    %1071 = vdwg.mxu0
    %v1073 = vsel %vm933, %v928, 0
    %v1076 = vsel %vm933, %v932, 0
    %1078 = vmatprep.subr.bf16.mxu0 0
    %1079 = vmatpush1.bf16.xpose.msra.mxu0 %v1076
    %1080 = vmatprep.subr.bf16.mxu0 0
    %1081 = vmatpush1.bf16.xpose.msra.mxu0 0
    %1082 = vmatprep.subr.bf16.mxu0 0
    %1083 = vmatpush1.bf16.xpose.msra.mxu0 0
    %1084 = vmatprep.subr.bf16.mxu0 0
    %1085 = vmatpush1.bf16.xpose.msra.mxu0 0
    %1086 = vmatprep.subr.bf16.mxu0 0
    %1087 = vmatpush1.bf16.xpose.msra.mxu0 0
    %1088 = vmatprep.subr.bf16.mxu0 0
    %1089 = vmatpush1.bf16.xpose.msra.mxu0 0
    %1090 = vmatprep.subr.bf16.mxu0 0
    %1091 = vmatpush1.bf16.xpose.msra.mxu0 0
    %1092 = vmatprep.subr.bf16.mxu0 0
    %1093 = vmatpush1.bf16.xpose.msra.mxu0 0
    %1094 = vmatprep.subr.bf16.mxu0 0
    %1095 = vmatpush1.bf16.xpose.msra.mxu0 0
    %1096 = vmatprep.subr.bf16.mxu0 0
    %1097 = vmatpush1.bf16.xpose.msra.mxu0 0
    %1098 = vmatprep.subr.bf16.mxu0 0
    %1099 = vmatpush1.bf16.xpose.msra.mxu0 0
    %1100 = vmatprep.subr.bf16.mxu0 0
    %1101 = vmatpush1.bf16.xpose.msra.mxu0 0
    %1102 = vmatprep.subr.bf16.mxu0 0
    %1103 = vmatpush1.bf16.xpose.msra.mxu0 0
    %1104 = vmatprep.subr.bf16.mxu0 0
    %1105 = vmatpush1.bf16.xpose.msra.mxu0 0
    %1106 = vmatprep.subr.bf16.mxu0 0
    %1107 = vmatpush1.bf16.xpose.msra.mxu0 0
    %1108 = vmatprep.subr.bf16.mxu0 0
    %1109 = vmatpush1.bf16.xpose.msra.mxu0 0
    %1110 = vmatprep.mubr.bf16.mxu0 0
    %1111 = vmatmul.mubr.bf16.gmra.mrb[0].mxu0 %v1073
    %v1112 = vpop.f32.mrb[0].mxu0
    %v1113 = vadd.f32 0.0, %v1112
    %v1114 = vpop.f32.mrb[0].mxu0
    %v1115 = vpop.f32.mrb[0].mxu0
    %v1116 = vpop.f32.mrb[0].mxu0
    %1117 = vdwg.mxu0
    %v1118 = vmul.f32 %v975, 0.125
    %v1119 = vmul.f32 %v1021, 0.125
    %v1120 = vmul.f32 %v1067, 0.125
    %v1121 = vmul.f32 %v1113, 0.125
    %v1122 = vadd.f32 %v1118, %v568
    %v1123 = vadd.f32 %v1119, %v568
    %v1124 = vadd.f32 %v1120, %v568
    %v1125 = vadd.f32 %v1121, %v568
    %vm1126 = vcmask 64512
    %v1127 = vsel %vm1126, %v1122, -inf
    %1128 = vmax.xlane.f32.xlu0 %v1127
    %v1129 = vpop.xlane.xlu0 %1128
    %v1130 = vsel %vm1126, %v1123, -inf
    %1131 = vmax.xlane.f32.xlu0 %v1130
    %v1132 = vpop.xlane.xlu0 %1131
    %v1133 = vsel %vm1126, %v1124, -inf
    %1134 = vmax.xlane.f32.xlu0 %v1133
    %v1135 = vpop.xlane.xlu0 %1134
    %v1136 = vsel %vm1126, %v1125, -inf
    %1137 = vmax.xlane.f32.xlu0 %v1136
    %v1138 = vpop.xlane.xlu0 %1137
    %v1139 = vsub.f32 %v1122, %v1129
    %v1140 = vsub.f32 %v1123, %v1132
    %v1141 = vsub.f32 %v1124, %v1135
    %v1142 = vsub.f32 %v1125, %v1138
    %v1143 = vmul.f32 %v1139, 1.442695
    %v1144 = vpow.pop %v1143
    %v1145 = vmul.f32 %v1140, 1.442695
    %v1146 = vpow.pop %v1145
    %v1147 = vmul.f32 %v1141, 1.442695
    %v1148 = vpow.pop %v1147
    %v1149 = vmul.f32 %v1142, 1.442695
    %v1150 = vpow.pop %v1149
    %v1151 = vsel %vm1126, %v1144, 0.0
    %1152 = vadd.xlane.f32.xlu0 %v1151
    %v1153 = vpop.xlane.xlu0 %1152
    %v1154 = vsel %vm1126, %v1146, 0.0
    %1155 = vadd.xlane.f32.xlu0 %v1154
    %v1156 = vpop.xlane.xlu0 %1155
    %v1157 = vsel %vm1126, %v1148, 0.0
    %1158 = vadd.xlane.f32.xlu0 %v1157
    %v1159 = vpop.xlane.xlu0 %1158
    %v1160 = vsel %vm1126, %v1150, 0.0
    %1161 = vadd.xlane.f32.xlu0 %v1160
    %v1162 = vpop.xlane.xlu0 %1161
    %v1163 = vrcp.pop %v1153
    %v1164 = vrcp.pop %v1156
    %v1165 = vrcp.pop %v1159
    %v1166 = vrcp.pop %v1162
    %v1167 = vmul.f32 %v1144, %v1163
    %v1168 = vmul.f32 %v1146, %v1164
    %v1169 = vmul.f32 %v1148, %v1165
    %v1170 = vmul.f32 %v1150, %v1166
    %v1171 = vpack.c.bf16 %v1167, %v1167
    %v1172 = vpack.c.bf16 %v1168, %v1168
    %v1173 = vpack.c.bf16 %v1169, %v1169
    %v1174 = vpack.c.bf16 %v1170, %v1170
    %v1175 = vpack.c.bf16 %v911, %v911
    %v1176 = vpack.c.bf16 %v914, %v914
    %v1177 = vpack.c.bf16 %v919, %v919
    %v1178 = vpack.c.bf16 %v922, %v922
    %v1180 = vsel %vm1126, %v1171, 0
    %vm1182 = vcmask 1043456
    %v1184 = vsel %vm1182, %v1175, 0
    %1186 = vmatprep.subr.bf16.mxu0 0
    %1187 = vmatpush1.bf16.msra.mxu0 %v1184
    %1188 = vmatprep.subr.bf16.mxu0 0
    %1189 = vmatpush1.bf16.msra.mxu0 0
    %1190 = vmatprep.subr.bf16.mxu0 0
    %1191 = vmatpush1.bf16.msra.mxu0 0
    %1192 = vmatprep.subr.bf16.mxu0 0
    %1193 = vmatpush1.bf16.msra.mxu0 0
    %1194 = vmatprep.subr.bf16.mxu0 0
    %1195 = vmatpush1.bf16.msra.mxu0 0
    %1196 = vmatprep.subr.bf16.mxu0 0
    %1197 = vmatpush1.bf16.msra.mxu0 0
    %1198 = vmatprep.subr.bf16.mxu0 0
    %1199 = vmatpush1.bf16.msra.mxu0 0
    %1200 = vmatprep.subr.bf16.mxu0 0
    %1201 = vmatpush1.bf16.msra.mxu0 0
    %1202 = vmatprep.subr.bf16.mxu0 0
    %1203 = vmatpush1.bf16.msra.mxu0 0
    %1204 = vmatprep.subr.bf16.mxu0 0
    %1205 = vmatpush1.bf16.msra.mxu0 0
    %1206 = vmatprep.subr.bf16.mxu0 0
    %1207 = vmatpush1.bf16.msra.mxu0 0
    %1208 = vmatprep.subr.bf16.mxu0 0
    %1209 = vmatpush1.bf16.msra.mxu0 0
    %1210 = vmatprep.subr.bf16.mxu0 0
    %1211 = vmatpush1.bf16.msra.mxu0 0
    %1212 = vmatprep.subr.bf16.mxu0 0
    %1213 = vmatpush1.bf16.msra.mxu0 0
    %1214 = vmatprep.subr.bf16.mxu0 0
    %1215 = vmatpush1.bf16.msra.mxu0 0
    %1216 = vmatprep.subr.bf16.mxu0 0
    %1217 = vmatpush1.bf16.msra.mxu0 0
    %1218 = vmatprep.mubr.bf16.mxu0 0
    %1219 = vmatmul.mubr.bf16.gmra.mrb[0].mxu0 %v1180
    %v1220 = vpop.f32.mrb[0].mxu0
    %v1221 = vadd.f32 0.0, %v1220
    %v1222 = vpop.f32.mrb[0].mxu0
    %v1223 = vpop.f32.mrb[0].mxu0
    %v1224 = vpop.f32.mrb[0].mxu0
    %1225 = vdwg.mxu0
    %v1227 = vsel %vm1126, %v1172, 0
    %v1230 = vsel %vm1182, %v1176, 0
    %1232 = vmatprep.subr.bf16.mxu0 0
    %1233 = vmatpush1.bf16.msra.mxu0 %v1230
    %1234 = vmatprep.subr.bf16.mxu0 0
    %1235 = vmatpush1.bf16.msra.mxu0 0
    %1236 = vmatprep.subr.bf16.mxu0 0
    %1237 = vmatpush1.bf16.msra.mxu0 0
    %1238 = vmatprep.subr.bf16.mxu0 0
    %1239 = vmatpush1.bf16.msra.mxu0 0
    %1240 = vmatprep.subr.bf16.mxu0 0
    %1241 = vmatpush1.bf16.msra.mxu0 0
    %1242 = vmatprep.subr.bf16.mxu0 0
    %1243 = vmatpush1.bf16.msra.mxu0 0
    %1244 = vmatprep.subr.bf16.mxu0 0
    %1245 = vmatpush1.bf16.msra.mxu0 0
    %1246 = vmatprep.subr.bf16.mxu0 0
    %1247 = vmatpush1.bf16.msra.mxu0 0
    %1248 = vmatprep.subr.bf16.mxu0 0
    %1249 = vmatpush1.bf16.msra.mxu0 0
    %1250 = vmatprep.subr.bf16.mxu0 0
    %1251 = vmatpush1.bf16.msra.mxu0 0
    %1252 = vmatprep.subr.bf16.mxu0 0
    %1253 = vmatpush1.bf16.msra.mxu0 0
    %1254 = vmatprep.subr.bf16.mxu0 0
    %1255 = vmatpush1.bf16.msra.mxu0 0
    %1256 = vmatprep.subr.bf16.mxu0 0
    %1257 = vmatpush1.bf16.msra.mxu0 0
    %1258 = vmatprep.subr.bf16.mxu0 0
    %1259 = vmatpush1.bf16.msra.mxu0 0
    %1260 = vmatprep.subr.bf16.mxu0 0
    %1261 = vmatpush1.bf16.msra.mxu0 0
    %1262 = vmatprep.subr.bf16.mxu0 0
    %1263 = vmatpush1.bf16.msra.mxu0 0
    %1264 = vmatprep.mubr.bf16.mxu0 0
    %1265 = vmatmul.mubr.bf16.gmra.mrb[0].mxu0 %v1227
    %v1266 = vpop.f32.mrb[0].mxu0
    %v1267 = vadd.f32 0.0, %v1266
    %v1268 = vpop.f32.mrb[0].mxu0
    %v1269 = vpop.f32.mrb[0].mxu0
    %v1270 = vpop.f32.mrb[0].mxu0
    %1271 = vdwg.mxu0
    %v1273 = vsel %vm1126, %v1173, 0
    %v1276 = vsel %vm1182, %v1177, 0
    %1278 = vmatprep.subr.bf16.mxu0 0
    %1279 = vmatpush1.bf16.msra.mxu0 %v1276
    %1280 = vmatprep.subr.bf16.mxu0 0
    %1281 = vmatpush1.bf16.msra.mxu0 0
    %1282 = vmatprep.subr.bf16.mxu0 0
    %1283 = vmatpush1.bf16.msra.mxu0 0
    %1284 = vmatprep.subr.bf16.mxu0 0
    %1285 = vmatpush1.bf16.msra.mxu0 0
    %1286 = vmatprep.subr.bf16.mxu0 0
    %1287 = vmatpush1.bf16.msra.mxu0 0
    %1288 = vmatprep.subr.bf16.mxu0 0
    %1289 = vmatpush1.bf16.msra.mxu0 0
    %1290 = vmatprep.subr.bf16.mxu0 0
    %1291 = vmatpush1.bf16.msra.mxu0 0
    %1292 = vmatprep.subr.bf16.mxu0 0
    %1293 = vmatpush1.bf16.msra.mxu0 0
    %1294 = vmatprep.subr.bf16.mxu0 0
    %1295 = vmatpush1.bf16.msra.mxu0 0
    %1296 = vmatprep.subr.bf16.mxu0 0
    %1297 = vmatpush1.bf16.msra.mxu0 0
    %1298 = vmatprep.subr.bf16.mxu0 0
    %1299 = vmatpush1.bf16.msra.mxu0 0
    %1300 = vmatprep.subr.bf16.mxu0 0
    %1301 = vmatpush1.bf16.msra.mxu0 0
    %1302 = vmatprep.subr.bf16.mxu0 0
    %1303 = vmatpush1.bf16.msra.mxu0 0
    %1304 = vmatprep.subr.bf16.mxu0 0
    %1305 = vmatpush1.bf16.msra.mxu0 0
    %1306 = vmatprep.subr.bf16.mxu0 0
    %1307 = vmatpush1.bf16.msra.mxu0 0
    %1308 = vmatprep.subr.bf16.mxu0 0
    %1309 = vmatpush1.bf16.msra.mxu0 0
    %1310 = vmatprep.mubr.bf16.mxu0 0
    %1311 = vmatmul.mubr.bf16.gmra.mrb[0].mxu0 %v1273
    %v1312 = vpop.f32.mrb[0].mxu0
    %v1313 = vadd.f32 0.0, %v1312
    %v1314 = vpop.f32.mrb[0].mxu0
    %v1315 = vpop.f32.mrb[0].mxu0
    %v1316 = vpop.f32.mrb[0].mxu0
    %1317 = vdwg.mxu0
    %v1319 = vsel %vm1126, %v1174, 0
    %v1322 = vsel %vm1182, %v1178, 0
    %1324 = vmatprep.subr.bf16.mxu0 0
    %1325 = vmatpush1.bf16.msra.mxu0 %v1322
    %1326 = vmatprep.subr.bf16.mxu0 0
    %1327 = vmatpush1.bf16.msra.mxu0 0
    %1328 = vmatprep.subr.bf16.mxu0 0
    %1329 = vmatpush1.bf16.msra.mxu0 0
    %1330 = vmatprep.subr.bf16.mxu0 0
    %1331 = vmatpush1.bf16.msra.mxu0 0
    %1332 = vmatprep.subr.bf16.mxu0 0
    %1333 = vmatpush1.bf16.msra.mxu0 0
    %1334 = vmatprep.subr.bf16.mxu0 0
    %1335 = vmatpush1.bf16.msra.mxu0 0
    %1336 = vmatprep.subr.bf16.mxu0 0
    %1337 = vmatpush1.bf16.msra.mxu0 0
    %1338 = vmatprep.subr.bf16.mxu0 0
    %1339 = vmatpush1.bf16.msra.mxu0 0
    %1340 = vmatprep.subr.bf16.mxu0 0
    %1341 = vmatpush1.bf16.msra.mxu0 0
    %1342 = vmatprep.subr.bf16.mxu0 0
    %1343 = vmatpush1.bf16.msra.mxu0 0
    %1344 = vmatprep.subr.bf16.mxu0 0
    %1345 = vmatpush1.bf16.msra.mxu0 0
    %1346 = vmatprep.subr.bf16.mxu0 0
    %1347 = vmatpush1.bf16.msra.mxu0 0
    %1348 = vmatprep.subr.bf16.mxu0 0
    %1349 = vmatpush1.bf16.msra.mxu0 0
    %1350 = vmatprep.subr.bf16.mxu0 0
    %1351 = vmatpush1.bf16.msra.mxu0 0
    %1352 = vmatprep.subr.bf16.mxu0 0
    %1353 = vmatpush1.bf16.msra.mxu0 0
    %1354 = vmatprep.subr.bf16.mxu0 0
    %1355 = vmatpush1.bf16.msra.mxu0 0
    %1356 = vmatprep.mubr.bf16.mxu0 0
    %1357 = vmatmul.mubr.bf16.gmra.mrb[0].mxu0 %v1319
    %v1358 = vpop.f32.mrb[0].mxu0
    %v1359 = vadd.f32 0.0, %v1358
    %v1360 = vpop.f32.mrb[0].mxu0
    %v1361 = vpop.f32.mrb[0].mxu0
    %v1362 = vpop.f32.mrb[0].mxu0
    %1363 = vdwg.mxu0
    %1365 = vrot.lane.b32.xlu0 %v925, 64
    %v1366 = vpop.permute.xlu0 %1365
    %1368 = vrot.lane.b32.xlu0 %v929, 64
    %v1369 = vpop.permute.xlu0 %1368
    %v1371 = vsel %vm933, %v1366, 0
    %v1374 = vsel %vm933, %v1369, 0
    %1376 = vmatprep.subr.bf16.mxu0 0
    %1377 = vmatpush1.bf16.xpose.msra.mxu0 %v1374
    %1378 = vmatprep.subr.bf16.mxu0 0
    %1379 = vmatpush1.bf16.xpose.msra.mxu0 0
    %1380 = vmatprep.subr.bf16.mxu0 0
    %1381 = vmatpush1.bf16.xpose.msra.mxu0 0
    %1382 = vmatprep.subr.bf16.mxu0 0
    %1383 = vmatpush1.bf16.xpose.msra.mxu0 0
    %1384 = vmatprep.subr.bf16.mxu0 0
    %1385 = vmatpush1.bf16.xpose.msra.mxu0 0
    %1386 = vmatprep.subr.bf16.mxu0 0
    %1387 = vmatpush1.bf16.xpose.msra.mxu0 0
    %1388 = vmatprep.subr.bf16.mxu0 0
    %1389 = vmatpush1.bf16.xpose.msra.mxu0 0
    %1390 = vmatprep.subr.bf16.mxu0 0
    %1391 = vmatpush1.bf16.xpose.msra.mxu0 0
    %1392 = vmatprep.subr.bf16.mxu0 0
    %1393 = vmatpush1.bf16.xpose.msra.mxu0 0
    %1394 = vmatprep.subr.bf16.mxu0 0
    %1395 = vmatpush1.bf16.xpose.msra.mxu0 0
    %1396 = vmatprep.subr.bf16.mxu0 0
    %1397 = vmatpush1.bf16.xpose.msra.mxu0 0
    %1398 = vmatprep.subr.bf16.mxu0 0
    %1399 = vmatpush1.bf16.xpose.msra.mxu0 0
    %1400 = vmatprep.subr.bf16.mxu0 0
    %1401 = vmatpush1.bf16.xpose.msra.mxu0 0
    %1402 = vmatprep.subr.bf16.mxu0 0
    %1403 = vmatpush1.bf16.xpose.msra.mxu0 0
    %1404 = vmatprep.subr.bf16.mxu0 0
    %1405 = vmatpush1.bf16.xpose.msra.mxu0 0
    %1406 = vmatprep.subr.bf16.mxu0 0
    %1407 = vmatpush1.bf16.xpose.msra.mxu0 0
    %1408 = vmatprep.mubr.bf16.mxu0 0
    %1409 = vmatmul.mubr.bf16.gmra.mrb[0].mxu0 %v1371
    %v1410 = vpop.f32.mrb[0].mxu0
    %v1411 = vadd.f32 0.0, %v1410
    %v1412 = vpop.f32.mrb[0].mxu0
    %v1413 = vpop.f32.mrb[0].mxu0
    %v1414 = vpop.f32.mrb[0].mxu0
    %1415 = vdwg.mxu0
    %1417 = vrot.lane.b32.xlu0 %v926, 64
    %v1418 = vpop.permute.xlu0 %1417
    %1420 = vrot.lane.b32.xlu0 %v930, 64
    %v1421 = vpop.permute.xlu0 %1420
    %v1423 = vsel %vm933, %v1418, 0
    %v1426 = vsel %vm933, %v1421, 0
    %1428 = vmatprep.subr.bf16.mxu0 0
    %1429 = vmatpush1.bf16.xpose.msra.mxu0 %v1426
    %1430 = vmatprep.subr.bf16.mxu0 0
    %1431 = vmatpush1.bf16.xpose.msra.mxu0 0
    %1432 = vmatprep.subr.bf16.mxu0 0
    %1433 = vmatpush1.bf16.xpose.msra.mxu0 0
    %1434 = vmatprep.subr.bf16.mxu0 0
    %1435 = vmatpush1.bf16.xpose.msra.mxu0 0
    %1436 = vmatprep.subr.bf16.mxu0 0
    %1437 = vmatpush1.bf16.xpose.msra.mxu0 0
    %1438 = vmatprep.subr.bf16.mxu0 0
    %1439 = vmatpush1.bf16.xpose.msra.mxu0 0
    %1440 = vmatprep.subr.bf16.mxu0 0
    %1441 = vmatpush1.bf16.xpose.msra.mxu0 0
    %1442 = vmatprep.subr.bf16.mxu0 0
    %1443 = vmatpush1.bf16.xpose.msra.mxu0 0
    %1444 = vmatprep.subr.bf16.mxu0 0
    %1445 = vmatpush1.bf16.xpose.msra.mxu0 0
    %1446 = vmatprep.subr.bf16.mxu0 0
    %1447 = vmatpush1.bf16.xpose.msra.mxu0 0
    %1448 = vmatprep.subr.bf16.mxu0 0
    %1449 = vmatpush1.bf16.xpose.msra.mxu0 0
    %1450 = vmatprep.subr.bf16.mxu0 0
    %1451 = vmatpush1.bf16.xpose.msra.mxu0 0
    %1452 = vmatprep.subr.bf16.mxu0 0
    %1453 = vmatpush1.bf16.xpose.msra.mxu0 0
    %1454 = vmatprep.subr.bf16.mxu0 0
    %1455 = vmatpush1.bf16.xpose.msra.mxu0 0
    %1456 = vmatprep.subr.bf16.mxu0 0
    %1457 = vmatpush1.bf16.xpose.msra.mxu0 0
    %1458 = vmatprep.subr.bf16.mxu0 0
    %1459 = vmatpush1.bf16.xpose.msra.mxu0 0
    %1460 = vmatprep.mubr.bf16.mxu0 0
    %1461 = vmatmul.mubr.bf16.gmra.mrb[0].mxu0 %v1423
    %v1462 = vpop.f32.mrb[0].mxu0
    %v1463 = vadd.f32 0.0, %v1462
    %v1464 = vpop.f32.mrb[0].mxu0
    %v1465 = vpop.f32.mrb[0].mxu0
    %v1466 = vpop.f32.mrb[0].mxu0
    %1467 = vdwg.mxu0
    %1469 = vrot.lane.b32.xlu0 %v927, 64
    %v1470 = vpop.permute.xlu0 %1469
    %1472 = vrot.lane.b32.xlu0 %v931, 64
    %v1473 = vpop.permute.xlu0 %1472
    %v1475 = vsel %vm933, %v1470, 0
    %v1478 = vsel %vm933, %v1473, 0
    %1480 = vmatprep.subr.bf16.mxu0 0
    %1481 = vmatpush1.bf16.xpose.msra.mxu0 %v1478
    %1482 = vmatprep.subr.bf16.mxu0 0
    %1483 = vmatpush1.bf16.xpose.msra.mxu0 0
    %1484 = vmatprep.subr.bf16.mxu0 0
    %1485 = vmatpush1.bf16.xpose.msra.mxu0 0
    %1486 = vmatprep.subr.bf16.mxu0 0
    %1487 = vmatpush1.bf16.xpose.msra.mxu0 0
    %1488 = vmatprep.subr.bf16.mxu0 0
    %1489 = vmatpush1.bf16.xpose.msra.mxu0 0
    %1490 = vmatprep.subr.bf16.mxu0 0
    %1491 = vmatpush1.bf16.xpose.msra.mxu0 0
    %1492 = vmatprep.subr.bf16.mxu0 0
    %1493 = vmatpush1.bf16.xpose.msra.mxu0 0
    %1494 = vmatprep.subr.bf16.mxu0 0
    %1495 = vmatpush1.bf16.xpose.msra.mxu0 0
    %1496 = vmatprep.subr.bf16.mxu0 0
    %1497 = vmatpush1.bf16.xpose.msra.mxu0 0
    %1498 = vmatprep.subr.bf16.mxu0 0
    %1499 = vmatpush1.bf16.xpose.msra.mxu0 0
    %1500 = vmatprep.subr.bf16.mxu0 0
    %1501 = vmatpush1.bf16.xpose.msra.mxu0 0
    %1502 = vmatprep.subr.bf16.mxu0 0
    %1503 = vmatpush1.bf16.xpose.msra.mxu0 0
    %1504 = vmatprep.subr.bf16.mxu0 0
    %1505 = vmatpush1.bf16.xpose.msra.mxu0 0
    %1506 = vmatprep.subr.bf16.mxu0 0
    %1507 = vmatpush1.bf16.xpose.msra.mxu0 0
    %1508 = vmatprep.subr.bf16.mxu0 0
    %1509 = vmatpush1.bf16.xpose.msra.mxu0 0
    %1510 = vmatprep.subr.bf16.mxu0 0
    %1511 = vmatpush1.bf16.xpose.msra.mxu0 0
    %1512 = vmatprep.mubr.bf16.mxu0 0
    %1513 = vmatmul.mubr.bf16.gmra.mrb[0].mxu0 %v1475
    %v1514 = vpop.f32.mrb[0].mxu0
    %v1515 = vadd.f32 0.0, %v1514
    %v1516 = vpop.f32.mrb[0].mxu0
    %v1517 = vpop.f32.mrb[0].mxu0
    %v1518 = vpop.f32.mrb[0].mxu0
    %1519 = vdwg.mxu0
    %1521 = vrot.lane.b32.xlu0 %v928, 64
    %v1522 = vpop.permute.xlu0 %1521
    %1524 = vrot.lane.b32.xlu0 %v932, 64
    %v1525 = vpop.permute.xlu0 %1524
    %v1527 = vsel %vm933, %v1522, 0
    %v1530 = vsel %vm933, %v1525, 0
    %1532 = vmatprep.subr.bf16.mxu0 0
    %1533 = vmatpush1.bf16.xpose.msra.mxu0 %v1530
    %1534 = vmatprep.subr.bf16.mxu0 0
    %1535 = vmatpush1.bf16.xpose.msra.mxu0 0
    %1536 = vmatprep.subr.bf16.mxu0 0
    %1537 = vmatpush1.bf16.xpose.msra.mxu0 0
    %1538 = vmatprep.subr.bf16.mxu0 0
    %1539 = vmatpush1.bf16.xpose.msra.mxu0 0
    %1540 = vmatprep.subr.bf16.mxu0 0
    %1541 = vmatpush1.bf16.xpose.msra.mxu0 0
    %1542 = vmatprep.subr.bf16.mxu0 0
    %1543 = vmatpush1.bf16.xpose.msra.mxu0 0
    %1544 = vmatprep.subr.bf16.mxu0 0
    %1545 = vmatpush1.bf16.xpose.msra.mxu0 0
    %1546 = vmatprep.subr.bf16.mxu0 0
    %1547 = vmatpush1.bf16.xpose.msra.mxu0 0
    %1548 = vmatprep.subr.bf16.mxu0 0
    %1549 = vmatpush1.bf16.xpose.msra.mxu0 0
    %1550 = vmatprep.subr.bf16.mxu0 0
    %1551 = vmatpush1.bf16.xpose.msra.mxu0 0
    %1552 = vmatprep.subr.bf16.mxu0 0
    %1553 = vmatpush1.bf16.xpose.msra.mxu0 0
    %1554 = vmatprep.subr.bf16.mxu0 0
    %1555 = vmatpush1.bf16.xpose.msra.mxu0 0
    %1556 = vmatprep.subr.bf16.mxu0 0
    %1557 = vmatpush1.bf16.xpose.msra.mxu0 0
    %1558 = vmatprep.subr.bf16.mxu0 0
    %1559 = vmatpush1.bf16.xpose.msra.mxu0 0
    %1560 = vmatprep.subr.bf16.mxu0 0
    %1561 = vmatpush1.bf16.xpose.msra.mxu0 0
    %1562 = vmatprep.subr.bf16.mxu0 0
    %1563 = vmatpush1.bf16.xpose.msra.mxu0 0
    %1564 = vmatprep.mubr.bf16.mxu0 0
    %1565 = vmatmul.mubr.bf16.gmra.mrb[0].mxu0 %v1527
    %v1566 = vpop.f32.mrb[0].mxu0
    %v1567 = vadd.f32 0.0, %v1566
    %v1568 = vpop.f32.mrb[0].mxu0
    %v1569 = vpop.f32.mrb[0].mxu0
    %v1570 = vpop.f32.mrb[0].mxu0
    %1571 = vdwg.mxu0
    %v1572 = vmul.f32 %v1411, 0.125
    %v1573 = vmul.f32 %v1463, 0.125
    %v1574 = vmul.f32 %v1515, 0.125
    %v1575 = vmul.f32 %v1567, 0.125
    %v1576 = vadd.f32 %v1572, %v568
    %v1577 = vadd.f32 %v1573, %v568
    %v1578 = vadd.f32 %v1574, %v568
    %v1579 = vadd.f32 %v1575, %v568
    %v1580 = vsel %vm1126, %v1576, -inf
    %1581 = vmax.xlane.f32.xlu0 %v1580
    %v1582 = vpop.xlane.xlu0 %1581
    %v1583 = vsel %vm1126, %v1577, -inf
    %1584 = vmax.xlane.f32.xlu0 %v1583
    %v1585 = vpop.xlane.xlu0 %1584
    %v1586 = vsel %vm1126, %v1578, -inf
    %1587 = vmax.xlane.f32.xlu0 %v1586
    %v1588 = vpop.xlane.xlu0 %1587
    %v1589 = vsel %vm1126, %v1579, -inf
    %1590 = vmax.xlane.f32.xlu0 %v1589
    %v1591 = vpop.xlane.xlu0 %1590
    %v1592 = vsub.f32 %v1576, %v1582
    %v1593 = vsub.f32 %v1577, %v1585
    %v1594 = vsub.f32 %v1578, %v1588
    %v1595 = vsub.f32 %v1579, %v1591
    %v1596 = vmul.f32 %v1592, 1.442695
    %v1597 = vpow.pop %v1596
    %v1598 = vmul.f32 %v1593, 1.442695
    %v1599 = vpow.pop %v1598
    %v1600 = vmul.f32 %v1594, 1.442695
    %v1601 = vpow.pop %v1600
    %v1602 = vmul.f32 %v1595, 1.442695
    %v1603 = vpow.pop %v1602
    %v1604 = vsel %vm1126, %v1597, 0.0
    %1605 = vadd.xlane.f32.xlu0 %v1604
    %v1606 = vpop.xlane.xlu0 %1605
    %v1607 = vsel %vm1126, %v1599, 0.0
    %1608 = vadd.xlane.f32.xlu0 %v1607
    %v1609 = vpop.xlane.xlu0 %1608
    %v1610 = vsel %vm1126, %v1601, 0.0
    %1611 = vadd.xlane.f32.xlu0 %v1610
    %v1612 = vpop.xlane.xlu0 %1611
    %v1613 = vsel %vm1126, %v1603, 0.0
    %1614 = vadd.xlane.f32.xlu0 %v1613
    %v1615 = vpop.xlane.xlu0 %1614
    %v1616 = vrcp.pop %v1606
    %v1617 = vrcp.pop %v1609
    %v1618 = vrcp.pop %v1612
    %v1619 = vrcp.pop %v1615
    %v1620 = vmul.f32 %v1597, %v1616
    %v1621 = vmul.f32 %v1599, %v1617
    %v1622 = vmul.f32 %v1601, %v1618
    %v1623 = vmul.f32 %v1603, %v1619
    %v1624 = vpack.c.bf16 %v1620, %v1620
    %v1625 = vpack.c.bf16 %v1621, %v1621
    %v1626 = vpack.c.bf16 %v1622, %v1622
    %v1627 = vpack.c.bf16 %v1623, %v1623
    %1629 = vrot.lane.b32.xlu0 %v1175, 64
    %v1630 = vpop.permute.xlu0 %1629
    %v1632 = vsel %vm1126, %v1624, 0
    %v1635 = vsel %vm1182, %v1630, 0
    %1637 = vmatprep.subr.bf16.mxu0 0
    %1638 = vmatpush1.bf16.msra.mxu0 %v1635
    %1639 = vmatprep.subr.bf16.mxu0 0
    %1640 = vmatpush1.bf16.msra.mxu0 0
    %1641 = vmatprep.subr.bf16.mxu0 0
    %1642 = vmatpush1.bf16.msra.mxu0 0
    %1643 = vmatprep.subr.bf16.mxu0 0
    %1644 = vmatpush1.bf16.msra.mxu0 0
    %1645 = vmatprep.subr.bf16.mxu0 0
    %1646 = vmatpush1.bf16.msra.mxu0 0
    %1647 = vmatprep.subr.bf16.mxu0 0
    %1648 = vmatpush1.bf16.msra.mxu0 0
    %1649 = vmatprep.subr.bf16.mxu0 0
    %1650 = vmatpush1.bf16.msra.mxu0 0
    %1651 = vmatprep.subr.bf16.mxu0 0
    %1652 = vmatpush1.bf16.msra.mxu0 0
    %1653 = vmatprep.subr.bf16.mxu0 0
    %1654 = vmatpush1.bf16.msra.mxu0 0
    %1655 = vmatprep.subr.bf16.mxu0 0
    %1656 = vmatpush1.bf16.msra.mxu0 0
    %1657 = vmatprep.subr.bf16.mxu0 0
    %1658 = vmatpush1.bf16.msra.mxu0 0
    %1659 = vmatprep.subr.bf16.mxu0 0
    %1660 = vmatpush1.bf16.msra.mxu0 0
    %1661 = vmatprep.subr.bf16.mxu0 0
    %1662 = vmatpush1.bf16.msra.mxu0 0
    %1663 = vmatprep.subr.bf16.mxu0 0
    %1664 = vmatpush1.bf16.msra.mxu0 0
    %1665 = vmatprep.subr.bf16.mxu0 0
    %1666 = vmatpush1.bf16.msra.mxu0 0
    %1667 = vmatprep.subr.bf16.mxu0 0
    %1668 = vmatpush1.bf16.msra.mxu0 0
    %1669 = vmatprep.mubr.bf16.mxu0 0
    %1670 = vmatmul.mubr.bf16.gmra.mrb[0].mxu0 %v1632
    %v1671 = vpop.f32.mrb[0].mxu0
    %v1672 = vadd.f32 0.0, %v1671
    %v1673 = vpop.f32.mrb[0].mxu0
    %v1674 = vpop.f32.mrb[0].mxu0
    %v1675 = vpop.f32.mrb[0].mxu0
    %1676 = vdwg.mxu0
    %1678 = vrot.lane.b32.xlu0 %v1176, 64
    %v1679 = vpop.permute.xlu0 %1678
    %v1681 = vsel %vm1126, %v1625, 0
    %v1684 = vsel %vm1182, %v1679, 0
    %1686 = vmatprep.subr.bf16.mxu0 0
    %1687 = vmatpush1.bf16.msra.mxu0 %v1684
    %1688 = vmatprep.subr.bf16.mxu0 0
    %1689 = vmatpush1.bf16.msra.mxu0 0
    %1690 = vmatprep.subr.bf16.mxu0 0
    %1691 = vmatpush1.bf16.msra.mxu0 0
    %1692 = vmatprep.subr.bf16.mxu0 0
    %1693 = vmatpush1.bf16.msra.mxu0 0
    %1694 = vmatprep.subr.bf16.mxu0 0
    %1695 = vmatpush1.bf16.msra.mxu0 0
    %1696 = vmatprep.subr.bf16.mxu0 0
    %1697 = vmatpush1.bf16.msra.mxu0 0
    %1698 = vmatprep.subr.bf16.mxu0 0
    %1699 = vmatpush1.bf16.msra.mxu0 0
    %1700 = vmatprep.subr.bf16.mxu0 0
    %1701 = vmatpush1.bf16.msra.mxu0 0
    %1702 = vmatprep.subr.bf16.mxu0 0
    %1703 = vmatpush1.bf16.msra.mxu0 0
    %1704 = vmatprep.subr.bf16.mxu0 0
    %1705 = vmatpush1.bf16.msra.mxu0 0
    %1706 = vmatprep.subr.bf16.mxu0 0
    %1707 = vmatpush1.bf16.msra.mxu0 0
    %1708 = vmatprep.subr.bf16.mxu0 0
    %1709 = vmatpush1.bf16.msra.mxu0 0
    %1710 = vmatprep.subr.bf16.mxu0 0
    %1711 = vmatpush1.bf16.msra.mxu0 0
    %1712 = vmatprep.subr.bf16.mxu0 0
    %1713 = vmatpush1.bf16.msra.mxu0 0
    %1714 = vmatprep.subr.bf16.mxu0 0
    %1715 = vmatpush1.bf16.msra.mxu0 0
    %1716 = vmatprep.subr.bf16.mxu0 0
    %1717 = vmatpush1.bf16.msra.mxu0 0
    %1718 = vmatprep.mubr.bf16.mxu0 0
    %1719 = vmatmul.mubr.bf16.gmra.mrb[0].mxu0 %v1681
    %v1720 = vpop.f32.mrb[0].mxu0
    %v1721 = vadd.f32 0.0, %v1720
    %v1722 = vpop.f32.mrb[0].mxu0
    %v1723 = vpop.f32.mrb[0].mxu0
    %v1724 = vpop.f32.mrb[0].mxu0
    %1725 = vdwg.mxu0
    %1727 = vrot.lane.b32.xlu0 %v1177, 64
    %v1728 = vpop.permute.xlu0 %1727
    %v1730 = vsel %vm1126, %v1626, 0
    %v1733 = vsel %vm1182, %v1728, 0
    %1735 = vmatprep.subr.bf16.mxu0 0
    %1736 = vmatpush1.bf16.msra.mxu0 %v1733
    %1737 = vmatprep.subr.bf16.mxu0 0
    %1738 = vmatpush1.bf16.msra.mxu0 0
    %1739 = vmatprep.subr.bf16.mxu0 0
    %1740 = vmatpush1.bf16.msra.mxu0 0
    %1741 = vmatprep.subr.bf16.mxu0 0
    %1742 = vmatpush1.bf16.msra.mxu0 0
    %1743 = vmatprep.subr.bf16.mxu0 0
    %1744 = vmatpush1.bf16.msra.mxu0 0
    %1745 = vmatprep.subr.bf16.mxu0 0
    %1746 = vmatpush1.bf16.msra.mxu0 0
    %1747 = vmatprep.subr.bf16.mxu0 0
    %1748 = vmatpush1.bf16.msra.mxu0 0
    %1749 = vmatprep.subr.bf16.mxu0 0
    %1750 = vmatpush1.bf16.msra.mxu0 0
    %1751 = vmatprep.subr.bf16.mxu0 0
    %1752 = vmatpush1.bf16.msra.mxu0 0
    %1753 = vmatprep.subr.bf16.mxu0 0
    %1754 = vmatpush1.bf16.msra.mxu0 0
    %1755 = vmatprep.subr.bf16.mxu0 0
    %1756 = vmatpush1.bf16.msra.mxu0 0
    %1757 = vmatprep.subr.bf16.mxu0 0
    %1758 = vmatpush1.bf16.msra.mxu0 0
    %1759 = vmatprep.subr.bf16.mxu0 0
    %1760 = vmatpush1.bf16.msra.mxu0 0
    %1761 = vmatprep.subr.bf16.mxu0 0
    %1762 = vmatpush1.bf16.msra.mxu0 0
    %1763 = vmatprep.subr.bf16.mxu0 0
    %1764 = vmatpush1.bf16.msra.mxu0 0
    %1765 = vmatprep.subr.bf16.mxu0 0
    %1766 = vmatpush1.bf16.msra.mxu0 0
    %1767 = vmatprep.mubr.bf16.mxu0 0
    %1768 = vmatmul.mubr.bf16.gmra.mrb[0].mxu0 %v1730
    %v1769 = vpop.f32.mrb[0].mxu0
    %v1770 = vadd.f32 0.0, %v1769
    %v1771 = vpop.f32.mrb[0].mxu0
    %v1772 = vpop.f32.mrb[0].mxu0
    %v1773 = vpop.f32.mrb[0].mxu0
    %1774 = vdwg.mxu0
    %1776 = vrot.lane.b32.xlu0 %v1178, 64
    %v1777 = vpop.permute.xlu0 %1776
    %v1779 = vsel %vm1126, %v1627, 0
    %v1782 = vsel %vm1182, %v1777, 0
    %1784 = vmatprep.subr.bf16.mxu0 0
    %1785 = vmatpush1.bf16.msra.mxu0 %v1782
    %1786 = vmatprep.subr.bf16.mxu0 0
    %1787 = vmatpush1.bf16.msra.mxu0 0
    %1788 = vmatprep.subr.bf16.mxu0 0
    %1789 = vmatpush1.bf16.msra.mxu0 0
    %1790 = vmatprep.subr.bf16.mxu0 0
    %1791 = vmatpush1.bf16.msra.mxu0 0
    %1792 = vmatprep.subr.bf16.mxu0 0
    %1793 = vmatpush1.bf16.msra.mxu0 0
    %1794 = vmatprep.subr.bf16.mxu0 0
    %1795 = vmatpush1.bf16.msra.mxu0 0
    %1796 = vmatprep.subr.bf16.mxu0 0
    %1797 = vmatpush1.bf16.msra.mxu0 0
    %1798 = vmatprep.subr.bf16.mxu0 0
    %1799 = vmatpush1.bf16.msra.mxu0 0
    %1800 = vmatprep.subr.bf16.mxu0 0
    %1801 = vmatpush1.bf16.msra.mxu0 0
    %1802 = vmatprep.subr.bf16.mxu0 0
    %1803 = vmatpush1.bf16.msra.mxu0 0
    %1804 = vmatprep.subr.bf16.mxu0 0
    %1805 = vmatpush1.bf16.msra.mxu0 0
    %1806 = vmatprep.subr.bf16.mxu0 0
    %1807 = vmatpush1.bf16.msra.mxu0 0
    %1808 = vmatprep.subr.bf16.mxu0 0
    %1809 = vmatpush1.bf16.msra.mxu0 0
    %1810 = vmatprep.subr.bf16.mxu0 0
    %1811 = vmatpush1.bf16.msra.mxu0 0
    %1812 = vmatprep.subr.bf16.mxu0 0
    %1813 = vmatpush1.bf16.msra.mxu0 0
    %1814 = vmatprep.subr.bf16.mxu0 0
    %1815 = vmatpush1.bf16.msra.mxu0 0
    %1816 = vmatprep.mubr.bf16.mxu0 0
    %1817 = vmatmul.mubr.bf16.gmra.mrb[0].mxu0 %v1779
    %v1818 = vpop.f32.mrb[0].mxu0
    %v1819 = vadd.f32 0.0, %v1818
    %v1820 = vpop.f32.mrb[0].mxu0
    %v1821 = vpop.f32.mrb[0].mxu0
    %v1822 = vpop.f32.mrb[0].mxu0
    %1823 = vdwg.mxu0
    %1828 = vrot.lane.b32.xlu0 %v1672, 64
    %v1829 = vpop.permute.xlu0 %1828
    %1830 = vrot.lane.b32.xlu0 %v1721, 64
    %v1831 = vpop.permute.xlu0 %1830
    %1832 = vrot.lane.b32.xlu0 %v1770, 64
    %v1833 = vpop.permute.xlu0 %1832
    %1834 = vrot.lane.b32.xlu0 %v1819, 64
    %v1835 = vpop.permute.xlu0 %1834
    %v1840 = vsel %vm933, %v1221, %v1829
    %v1841 = vsel %vm933, %v1267, %v1831
    %v1842 = vsel %vm933, %v1313, %v1833
    %v1843 = vsel %vm933, %v1359, %v1835
    %v1844 = vld [vmem:[%s8] sm:$0xf]
    %v1845 = vld [vmem:[%s8 + $0x4] sm:$0xf]
    %v1846 = vld [vmem:[%s8 + $0x8] sm:$0xf]
    %v1847 = vld [vmem:[%s8 + $0xc] sm:$0xf]
    %v1848 = vld [vmem:[%s8 + $0x10] sm:$0xf]
    %v1849 = vld [vmem:[%s8 + $0x14] sm:$0xf]
    %v1850 = vld [vmem:[%s8 + $0x18] sm:$0xf]
    %v1851 = vld [vmem:[%s8 + $0x1c] sm:$0xf]
    %v1852 = vld [vmem:[%s8 + $0x20] sm:$0xf]
    %v1853 = vld [vmem:[%s8 + $0x24] sm:$0xf]
    %v1854 = vld [vmem:[%s8 + $0x28] sm:$0xf]
    %v1855 = vld [vmem:[%s8 + $0x2c] sm:$0xf]
    %v1856 = vld [vmem:[%s8 + $0x30] sm:$0xf]
    %v1857 = vld [vmem:[%s8 + $0x34] sm:$0xf]
    %v1858 = vld [vmem:[%s8 + $0x38] sm:$0xf]
    %v1859 = vld [vmem:[%s8 + $0x3c] sm:$0xf]
    %v1860 = vpack.c.bf16 %v1841, %v1840
    %v1861 = vpack.c.bf16 %v1843, %v1842
    %v1862 = vld [vmem:[%s9] sm:$0x1]
    %v1864 = vlaneseq
    %v1865 = vshrl.u32 %v1864, 7
    %v1866 = vsub.s32 0, %v1865
    %v1867 = vrot.slane %v1862, %v1866
    %v1885 = vunpack.c.l.b16 %v1844
    %v1886 = vunpack.c.l.b16 %v1845
    %v1887 = vunpack.c.l.b16 %v1846
    %v1888 = vunpack.c.l.b16 %v1847
    %v1889 = vunpack.c.l.b16 %v1848
    %v1890 = vunpack.c.l.b16 %v1849
    %v1891 = vunpack.c.l.b16 %v1850
    %v1892 = vunpack.c.l.b16 %v1851
    %v1893 = vunpack.c.l.b16 %v1852
    %v1894 = vunpack.c.l.b16 %v1853
    %v1895 = vunpack.c.l.b16 %v1854
    %v1896 = vunpack.c.l.b16 %v1855
    %v1897 = vunpack.c.l.b16 %v1856
    %v1898 = vunpack.c.l.b16 %v1857
    %v1899 = vunpack.c.l.b16 %v1858
    %v1900 = vunpack.c.l.b16 %v1859
    %v1901 = vpack.c.b16 %v1886, %v1885
    %v1902 = vpack.c.b16 %v1888, %v1887
    %v1903 = vpack.c.b16 %v1890, %v1889
    %v1904 = vpack.c.b16 %v1892, %v1891
    %v1905 = vpack.c.b16 %v1894, %v1893
    %v1906 = vpack.c.b16 %v1896, %v1895
    %v1907 = vpack.c.b16 %v1898, %v1897
    %v1908 = vpack.c.b16 %v1900, %v1899
    %1917 = vmatprep.subr.bf16.mxu0 0
    %1918 = vmatpush1.bf16.msra.mxu0 %v1901
    %1919 = vmatprep.subr.bf16.mxu0 0
    %1920 = vmatpush1.bf16.msra.mxu0 %v1902
    %1921 = vmatprep.subr.bf16.mxu0 0
    %1922 = vmatpush1.bf16.msra.mxu0 %v1903
    %1923 = vmatprep.subr.bf16.mxu0 0
    %1924 = vmatpush1.bf16.msra.mxu0 %v1904
    %1925 = vmatprep.subr.bf16.mxu0 0
    %1926 = vmatpush1.bf16.msra.mxu0 %v1905
    %1927 = vmatprep.subr.bf16.mxu0 0
    %1928 = vmatpush1.bf16.msra.mxu0 %v1906
    %1929 = vmatprep.subr.bf16.mxu0 0
    %1930 = vmatpush1.bf16.msra.mxu0 %v1907
    %1931 = vmatprep.subr.bf16.mxu0 0
    %1932 = vmatpush1.bf16.msra.mxu0 %v1908
    %1933 = vmatprep.subr.bf16.mxu0 0
    %1934 = vmatpush1.bf16.msra.mxu0 0
    %1935 = vmatprep.subr.bf16.mxu0 0
    %1936 = vmatpush1.bf16.msra.mxu0 0
    %1937 = vmatprep.subr.bf16.mxu0 0
    %1938 = vmatpush1.bf16.msra.mxu0 0
    %1939 = vmatprep.subr.bf16.mxu0 0
    %1940 = vmatpush1.bf16.msra.mxu0 0
    %1941 = vmatprep.subr.bf16.mxu0 0
    %1942 = vmatpush1.bf16.msra.mxu0 0
    %1943 = vmatprep.subr.bf16.mxu0 0
    %1944 = vmatpush1.bf16.msra.mxu0 0
    %1945 = vmatprep.subr.bf16.mxu0 0
    %1946 = vmatpush1.bf16.msra.mxu0 0
    %1947 = vmatprep.subr.bf16.mxu0 0
    %1948 = vmatpush1.bf16.msra.mxu0 0
    %1949 = vmatprep.mubr.bf16.mxu0 0
    %1950 = vmatmul.mubr.bf16.gmra.mrb[0].mxu0 %v1860
    %v1951 = vpop.f32.mrb[0].mxu0
    %v1952 = vadd.f32 %v1867, %v1951
    %v1953 = vpop.f32.mrb[0].mxu0
    %v1954 = vpop.f32.mrb[0].mxu0
    %v1955 = vadd.f32 %v1867, %v1954
    %v1956 = vpop.f32.mrb[0].mxu0
    %1957 = vmatprep.mubr.bf16.mxu0 0
    %1958 = vmatmul.mubr.bf16.gmra.mrb[0].mxu0 %v1861
    %v1959 = vpop.f32.mrb[0].mxu0
    %v1960 = vadd.f32 %v1867, %v1959
    %v1961 = vpop.f32.mrb[0].mxu0
    %v1962 = vpop.f32.mrb[0].mxu0
    %v1963 = vadd.f32 %v1867, %v1962
    %v1964 = vpop.f32.mrb[0].mxu0
    %1965 = vdwg.mxu0
    %v1966 = vld [vmem:[%s10] sm:$0x1]
    %v1968 = vlaneseq
    %v1969 = vshrl.u32 %v1968, 7
    %v1970 = vsub.s32 0, %v1969
    %v1971 = vrot.slane %v1966, %v1970
    %v1973 = vmul.f32 %v1971, %v1952
    %v1974 = vmul.f32 %v1971, %v1955
    %v1975 = vmul.f32 %v1971, %v1960
    %v1976 = vmul.f32 %v1971, %v1963
    %v1977 = vadd.f32 %v554, %v1973
    %v1978 = vadd.f32 %v557, %v1974
    %v1979 = vadd.f32 %v562, %v1975
    %v1980 = vadd.f32 %v565, %v1976
    %v1981 = vld [vmem:[%s11] sm:$0x1]
    %v1982 = vld [vmem:[%s12] sm:$0x1]
    %1983 = vadd.xlane.f32.xlu0 %v1977
    %v1984 = vpop.xlane.xlu0 %1983
    %1985 = vadd.xlane.f32.xlu0 %v1978
    %v1986 = vpop.xlane.xlu0 %1985
    %1987 = vadd.xlane.f32.xlu0 %v1979
    %v1988 = vpop.xlane.xlu0 %1987
    %1989 = vadd.xlane.f32.xlu0 %v1980
    %v1990 = vpop.xlane.xlu0 %1989
    %v1991 = vmul.f32 %v1984, %v579
    %v1992 = vmul.f32 %v1986, %v579
    %v1993 = vmul.f32 %v1988, %v579
    %v1994 = vmul.f32 %v1990, %v579
    %v1995 = vmul.f32 %v1977, %v1977
    %v1996 = vmul.f32 %v1978, %v1978
    %v1997 = vmul.f32 %v1979, %v1979
    %v1998 = vmul.f32 %v1980, %v1980
    %1999 = vadd.xlane.f32.xlu0 %v1995
    %v2000 = vpop.xlane.xlu0 %1999
    %2001 = vadd.xlane.f32.xlu0 %v1996
    %v2002 = vpop.xlane.xlu0 %2001
    %2003 = vadd.xlane.f32.xlu0 %v1997
    %v2004 = vpop.xlane.xlu0 %2003
    %2005 = vadd.xlane.f32.xlu0 %v1998
    %v2006 = vpop.xlane.xlu0 %2005
    %v2007 = vmul.f32 %v2000, %v579
    %v2008 = vmul.f32 %v2002, %v579
    %v2009 = vmul.f32 %v2004, %v579
    %v2010 = vmul.f32 %v2006, %v579
    %v2011 = vmul.f32 %v1991, %v1991
    %v2012 = vmul.f32 %v1992, %v1992
    %v2013 = vmul.f32 %v1993, %v1993
    %v2014 = vmul.f32 %v1994, %v1994
    %v2015 = vsub.f32 %v2007, %v2011
    %v2016 = vsub.f32 %v2008, %v2012
    %v2017 = vsub.f32 %v2009, %v2013
    %v2018 = vsub.f32 %v2010, %v2014
    %v2019 = vsub.f32 %v1977, %v1991
    %v2020 = vsub.f32 %v1978, %v1992
    %v2021 = vsub.f32 %v1979, %v1993
    %v2022 = vsub.f32 %v1980, %v1994
    %v2023 = vadd.f32 %v2015, 1e-06
    %v2024 = vadd.f32 %v2016, 1e-06
    %v2025 = vadd.f32 %v2017, 1e-06
    %v2026 = vadd.f32 %v2018, 1e-06
    %v2027 = vrsqrt.pop %v2023
    %v2028 = vrsqrt.pop %v2024
    %v2029 = vrsqrt.pop %v2025
    %v2030 = vrsqrt.pop %v2026
    %v2031 = vmul.f32 %v2019, %v2027
    %v2032 = vmul.f32 %v2020, %v2028
    %v2033 = vmul.f32 %v2021, %v2029
    %v2034 = vmul.f32 %v2022, %v2030
    %v2036 = vlaneseq
    %v2037 = vshrl.u32 %v2036, 7
    %v2038 = vsub.s32 0, %v2037
    %v2039 = vrot.slane %v1981, %v2038
    %v2041 = vmul.f32 %v2031, %v2039
    %v2042 = vmul.f32 %v2032, %v2039
    %v2043 = vmul.f32 %v2033, %v2039
    %v2044 = vmul.f32 %v2034, %v2039
    %v2046 = vlaneseq
    %v2047 = vshrl.u32 %v2046, 7
    %v2048 = vsub.s32 0, %v2047
    %v2049 = vrot.slane %v1982, %v2048
    %v2051 = vadd.f32 %v2041, %v2049
    %v2052 = vadd.f32 %v2042, %v2049
    %v2053 = vadd.f32 %v2043, %v2049
    %v2054 = vadd.f32 %v2044, %v2049
    %v2055 = vld [vmem:[%s13] sm:$0xff]
    %v2056 = vld [vmem:[%s13 + $0x8] sm:$0xff]
    %v2057 = vld [vmem:[%s13 + $0x10] sm:$0xff]
    %v2058 = vld [vmem:[%s13 + $0x18] sm:$0xff]
    %v2059 = vld [vmem:[%s13 + $0x20] sm:$0xff]
    %v2060 = vld [vmem:[%s13 + $0x28] sm:$0xff]
    %v2061 = vld [vmem:[%s13 + $0x30] sm:$0xff]
    %v2062 = vld [vmem:[%s13 + $0x38] sm:$0xff]
    %v2063 = vld [vmem:[%s13 + $0x40] sm:$0xff]
    %v2064 = vld [vmem:[%s13 + $0x48] sm:$0xff]
    %v2065 = vld [vmem:[%s13 + $0x50] sm:$0xff]
    %v2066 = vld [vmem:[%s13 + $0x58] sm:$0xff]
    %v2067 = vld [vmem:[%s13 + $0x60] sm:$0xff]
    %v2068 = vld [vmem:[%s13 + $0x68] sm:$0xff]
    %v2069 = vld [vmem:[%s13 + $0x70] sm:$0xff]
    %v2070 = vld [vmem:[%s13 + $0x78] sm:$0xff]
    %v2071 = vld [vmem:[%s13 + $0x80] sm:$0xff]
    %v2072 = vld [vmem:[%s13 + $0x88] sm:$0xff]
    %v2073 = vld [vmem:[%s13 + $0x90] sm:$0xff]
    %v2074 = vld [vmem:[%s13 + $0x98] sm:$0xff]
    %v2075 = vld [vmem:[%s13 + $0xa0] sm:$0xff]
    %v2076 = vld [vmem:[%s13 + $0xa8] sm:$0xff]
    %v2077 = vld [vmem:[%s13 + $0xb0] sm:$0xff]
    %v2078 = vld [vmem:[%s13 + $0xb8] sm:$0xff]
    %v2079 = vld [vmem:[%s13 + $0xc0] sm:$0xff]
    %v2080 = vld [vmem:[%s13 + $0xc8] sm:$0xff]
    %v2081 = vld [vmem:[%s13 + $0xd0] sm:$0xff]
    %v2082 = vld [vmem:[%s13 + $0xd8] sm:$0xff]
    %v2083 = vld [vmem:[%s13 + $0xe0] sm:$0xff]
    %v2084 = vld [vmem:[%s13 + $0xe8] sm:$0xff]
    %v2085 = vld [vmem:[%s13 + $0xf0] sm:$0xff]
    %v2086 = vld [vmem:[%s13 + $0xf8] sm:$0xff]
    %v2087 = vpack.c.bf16 %v2052, %v2051
    %v2088 = vpack.c.bf16 %v2054, %v2053
    %v2089 = vld [vmem:[%s14] sm:$0xf]
    %v2091 = vlaneseq
    %v2092 = vshrl.u32 %v2091, 7
    %v2093 = vsub.s32 0, %v2092
    %v2094 = vrot.slane %v2089, %v2093
    %v2095 = vlaneseq
    %v2096 = vshrl.u32 %v2095, 7
    %v2097 = vsub.s32 1, %v2096
    %v2098 = vrot.slane %v2089, %v2097
    %v2099 = vlaneseq
    %v2100 = vshrl.u32 %v2099, 7
    %v2101 = vsub.s32 2, %v2100
    %v2102 = vrot.slane %v2089, %v2101
    %v2103 = vlaneseq
    %v2104 = vshrl.u32 %v2103, 7
    %v2105 = vsub.s32 3, %v2104
    %v2106 = vrot.slane %v2089, %v2105
    %v2143 = vunpack.c.l.b16 %v2055
    %v2144 = vunpack.c.h.b16 %v2055
    %v2145 = vunpack.c.l.b16 %v2056
    %v2146 = vunpack.c.h.b16 %v2056
    %v2147 = vunpack.c.l.b16 %v2057
    %v2148 = vunpack.c.h.b16 %v2057
    %v2149 = vunpack.c.l.b16 %v2058
    %v2150 = vunpack.c.h.b16 %v2058
    %v2151 = vunpack.c.l.b16 %v2059
    %v2152 = vunpack.c.h.b16 %v2059
    %v2153 = vunpack.c.l.b16 %v2060
    %v2154 = vunpack.c.h.b16 %v2060
    %v2155 = vunpack.c.l.b16 %v2061
    %v2156 = vunpack.c.h.b16 %v2061
    %v2157 = vunpack.c.l.b16 %v2062
    %v2158 = vunpack.c.h.b16 %v2062
    %v2159 = vunpack.c.l.b16 %v2063
    %v2160 = vunpack.c.h.b16 %v2063
    %v2161 = vunpack.c.l.b16 %v2064
    %v2162 = vunpack.c.h.b16 %v2064
    %v2163 = vunpack.c.l.b16 %v2065
    %v2164 = vunpack.c.h.b16 %v2065
    %v2165 = vunpack.c.l.b16 %v2066
    %v2166 = vunpack.c.h.b16 %v2066
    %v2167 = vunpack.c.l.b16 %v2067
    %v2168 = vunpack.c.h.b16 %v2067
    %v2169 = vunpack.c.l.b16 %v2068
    %v2170 = vunpack.c.h.b16 %v2068
    %v2171 = vunpack.c.l.b16 %v2069
    %v2172 = vunpack.c.h.b16 %v2069
    %v2173 = vunpack.c.l.b16 %v2070
    %v2174 = vunpack.c.h.b16 %v2070
    %v2175 = vunpack.c.l.b16 %v2071
    %v2176 = vunpack.c.h.b16 %v2071
    %v2177 = vunpack.c.l.b16 %v2072
    %v2178 = vunpack.c.h.b16 %v2072
    %v2179 = vunpack.c.l.b16 %v2073
    %v2180 = vunpack.c.h.b16 %v2073
    %v2181 = vunpack.c.l.b16 %v2074
    %v2182 = vunpack.c.h.b16 %v2074
    %v2183 = vunpack.c.l.b16 %v2075
    %v2184 = vunpack.c.h.b16 %v2075
    %v2185 = vunpack.c.l.b16 %v2076
    %v2186 = vunpack.c.h.b16 %v2076
    %v2187 = vunpack.c.l.b16 %v2077
    %v2188 = vunpack.c.h.b16 %v2077
    %v2189 = vunpack.c.l.b16 %v2078
    %v2190 = vunpack.c.h.b16 %v2078
    %v2191 = vunpack.c.l.b16 %v2079
    %v2192 = vunpack.c.h.b16 %v2079
    %v2193 = vunpack.c.l.b16 %v2080
    %v2194 = vunpack.c.h.b16 %v2080
    %v2195 = vunpack.c.l.b16 %v2081
    %v2196 = vunpack.c.h.b16 %v2081
    %v2197 = vunpack.c.l.b16 %v2082
    %v2198 = vunpack.c.h.b16 %v2082
    %v2199 = vunpack.c.l.b16 %v2083
    %v2200 = vunpack.c.h.b16 %v2083
    %v2201 = vunpack.c.l.b16 %v2084
    %v2202 = vunpack.c.h.b16 %v2084
    %v2203 = vunpack.c.l.b16 %v2085
    %v2204 = vunpack.c.h.b16 %v2085
    %v2205 = vunpack.c.l.b16 %v2086
    %v2206 = vunpack.c.h.b16 %v2086
    %v2207 = vpack.c.b16 %v2147, %v2143
    %v2208 = vpack.c.b16 %v2148, %v2144
    %v2209 = vpack.c.b16 %v2149, %v2145
    %v2210 = vpack.c.b16 %v2150, %v2146
    %v2211 = vpack.c.b16 %v2155, %v2151
    %v2212 = vpack.c.b16 %v2156, %v2152
    %v2213 = vpack.c.b16 %v2157, %v2153
    %v2214 = vpack.c.b16 %v2158, %v2154
    %v2215 = vpack.c.b16 %v2163, %v2159
    %v2216 = vpack.c.b16 %v2164, %v2160
    %v2217 = vpack.c.b16 %v2165, %v2161
    %v2218 = vpack.c.b16 %v2166, %v2162
    %v2219 = vpack.c.b16 %v2171, %v2167
    %v2220 = vpack.c.b16 %v2172, %v2168
    %v2221 = vpack.c.b16 %v2173, %v2169
    %v2222 = vpack.c.b16 %v2174, %v2170
    %v2223 = vpack.c.b16 %v2179, %v2175
    %v2224 = vpack.c.b16 %v2180, %v2176
    %v2225 = vpack.c.b16 %v2181, %v2177
    %v2226 = vpack.c.b16 %v2182, %v2178
    %v2227 = vpack.c.b16 %v2187, %v2183
    %v2228 = vpack.c.b16 %v2188, %v2184
    %v2229 = vpack.c.b16 %v2189, %v2185
    %v2230 = vpack.c.b16 %v2190, %v2186
    %v2231 = vpack.c.b16 %v2195, %v2191
    %v2232 = vpack.c.b16 %v2196, %v2192
    %v2233 = vpack.c.b16 %v2197, %v2193
    %v2234 = vpack.c.b16 %v2198, %v2194
    %v2235 = vpack.c.b16 %v2203, %v2199
    %v2236 = vpack.c.b16 %v2204, %v2200
    %v2237 = vpack.c.b16 %v2205, %v2201
    %v2238 = vpack.c.b16 %v2206, %v2202
    %2271 = vmatprep.subr.bf16.mxu0 %v2208
    %2272 = vmatpush1.bf16.msra.mxu0 %v2207
    %2273 = vmatprep.subr.bf16.mxu0 %v2212
    %2274 = vmatpush1.bf16.msra.mxu0 %v2211
    %2275 = vmatprep.subr.bf16.mxu0 %v2216
    %2276 = vmatpush1.bf16.msra.mxu0 %v2215
    %2277 = vmatprep.subr.bf16.mxu0 %v2220
    %2278 = vmatpush1.bf16.msra.mxu0 %v2219
    %2279 = vmatprep.subr.bf16.mxu0 %v2224
    %2280 = vmatpush1.bf16.msra.mxu0 %v2223
    %2281 = vmatprep.subr.bf16.mxu0 %v2228
    %2282 = vmatpush1.bf16.msra.mxu0 %v2227
    %2283 = vmatprep.subr.bf16.mxu0 %v2232
    %2284 = vmatpush1.bf16.msra.mxu0 %v2231
    %2285 = vmatprep.subr.bf16.mxu0 %v2236
    %2286 = vmatpush1.bf16.msra.mxu0 %v2235
    %2287 = vmatprep.subr.bf16.mxu0 0
    %2288 = vmatpush1.bf16.msra.mxu0 0
    %2289 = vmatprep.subr.bf16.mxu0 0
    %2290 = vmatpush1.bf16.msra.mxu0 0
    %2291 = vmatprep.subr.bf16.mxu0 0
    %2292 = vmatpush1.bf16.msra.mxu0 0
    %2293 = vmatprep.subr.bf16.mxu0 0
    %2294 = vmatpush1.bf16.msra.mxu0 0
    %2295 = vmatprep.subr.bf16.mxu0 0
    %2296 = vmatpush1.bf16.msra.mxu0 0
    %2297 = vmatprep.subr.bf16.mxu0 0
    %2298 = vmatpush1.bf16.msra.mxu0 0
    %2299 = vmatprep.subr.bf16.mxu0 0
    %2300 = vmatpush1.bf16.msra.mxu0 0
    %2301 = vmatprep.subr.bf16.mxu0 0
    %2302 = vmatpush1.bf16.msra.mxu0 0
    %2303 = vmatprep.mubr.bf16.mxu0 0
    %2304 = vmatmul.mubr.bf16.gmra.mrb[0].mxu0 %v2087
    %v2305 = vpop.f32.mrb[0].mxu0
    %v2306 = vadd.f32 %v2094, %v2305
    %v2307 = vpop.f32.mrb[0].mxu0
    %v2308 = vadd.f32 %v2098, %v2307
    %v2309 = vpop.f32.mrb[0].mxu0
    %v2310 = vadd.f32 %v2094, %v2309
    %v2311 = vpop.f32.mrb[0].mxu0
    %v2312 = vadd.f32 %v2098, %v2311
    %2313 = vmatprep.mubr.bf16.mxu0 0
    %2314 = vmatmul.mubr.bf16.gmra.mrb[0].mxu0 %v2088
    %v2315 = vpop.f32.mrb[0].mxu0
    %v2316 = vadd.f32 %v2094, %v2315
    %v2317 = vpop.f32.mrb[0].mxu0
    %v2318 = vadd.f32 %v2098, %v2317
    %v2319 = vpop.f32.mrb[0].mxu0
    %v2320 = vadd.f32 %v2094, %v2319
    %v2321 = vpop.f32.mrb[0].mxu0
    %v2322 = vadd.f32 %v2098, %v2321
    %2323 = vdwg.mxu0
    %2324 = vmatprep.subr.bf16.mxu0 %v2210
    %2325 = vmatpush1.bf16.msra.mxu0 %v2209
    %2326 = vmatprep.subr.bf16.mxu0 %v2214
    %2327 = vmatpush1.bf16.msra.mxu0 %v2213
    %2328 = vmatprep.subr.bf16.mxu0 %v2218
    %2329 = vmatpush1.bf16.msra.mxu0 %v2217
    %2330 = vmatprep.subr.bf16.mxu0 %v2222
    %2331 = vmatpush1.bf16.msra.mxu0 %v2221
    %2332 = vmatprep.subr.bf16.mxu0 %v2226
    %2333 = vmatpush1.bf16.msra.mxu0 %v2225
    %2334 = vmatprep.subr.bf16.mxu0 %v2230
    %2335 = vmatpush1.bf16.msra.mxu0 %v2229
    %2336 = vmatprep.subr.bf16.mxu0 %v2234
    %2337 = vmatpush1.bf16.msra.mxu0 %v2233
    %2338 = vmatprep.subr.bf16.mxu0 %v2238
    %2339 = vmatpush1.bf16.msra.mxu0 %v2237
    %2340 = vmatprep.subr.bf16.mxu0 0
    %2341 = vmatpush1.bf16.msra.mxu0 0
    %2342 = vmatprep.subr.bf16.mxu0 0
    %2343 = vmatpush1.bf16.msra.mxu0 0
    %2344 = vmatprep.subr.bf16.mxu0 0
    %2345 = vmatpush1.bf16.msra.mxu0 0
    %2346 = vmatprep.subr.bf16.mxu0 0
    %2347 = vmatpush1.bf16.msra.mxu0 0
    %2348 = vmatprep.subr.bf16.mxu0 0
    %2349 = vmatpush1.bf16.msra.mxu0 0
    %2350 = vmatprep.subr.bf16.mxu0 0
    %2351 = vmatpush1.bf16.msra.mxu0 0
    %2352 = vmatprep.subr.bf16.mxu0 0
    %2353 = vmatpush1.bf16.msra.mxu0 0
    %2354 = vmatprep.subr.bf16.mxu0 0
    %2355 = vmatpush1.bf16.msra.mxu0 0
    %2356 = vmatprep.mubr.bf16.mxu0 0
    %2357 = vmatmul.mubr.bf16.gmra.mrb[0].mxu0 %v2087
    %v2358 = vpop.f32.mrb[0].mxu0
    %v2359 = vadd.f32 %v2102, %v2358
    %v2360 = vpop.f32.mrb[0].mxu0
    %v2361 = vadd.f32 %v2106, %v2360
    %v2362 = vpop.f32.mrb[0].mxu0
    %v2363 = vadd.f32 %v2102, %v2362
    %v2364 = vpop.f32.mrb[0].mxu0
    %v2365 = vadd.f32 %v2106, %v2364
    %2366 = vmatprep.mubr.bf16.mxu0 0
    %2367 = vmatmul.mubr.bf16.gmra.mrb[0].mxu0 %v2088
    %v2368 = vpop.f32.mrb[0].mxu0
    %v2369 = vadd.f32 %v2102, %v2368
    %v2370 = vpop.f32.mrb[0].mxu0
    %v2371 = vadd.f32 %v2106, %v2370
    %v2372 = vpop.f32.mrb[0].mxu0
    %v2373 = vadd.f32 %v2102, %v2372
    %v2374 = vpop.f32.mrb[0].mxu0
    %v2375 = vadd.f32 %v2106, %v2374
    %2376 = vdwg.mxu0
    %v2377 = vmul.f32 %v2306, %v2306
    %v2378 = vmul.f32 %v2308, %v2308
    %v2379 = vmul.f32 %v2359, %v2359
    %v2380 = vmul.f32 %v2361, %v2361
    %v2381 = vmul.f32 %v2310, %v2310
    %v2382 = vmul.f32 %v2312, %v2312
    %v2383 = vmul.f32 %v2363, %v2363
    %v2384 = vmul.f32 %v2365, %v2365
    %v2385 = vmul.f32 %v2316, %v2316
    %v2386 = vmul.f32 %v2318, %v2318
    %v2387 = vmul.f32 %v2369, %v2369
    %v2388 = vmul.f32 %v2371, %v2371
    %v2389 = vmul.f32 %v2320, %v2320
    %v2390 = vmul.f32 %v2322, %v2322
    %v2391 = vmul.f32 %v2373, %v2373
    %v2392 = vmul.f32 %v2375, %v2375
    %v2393 = vmul.f32 %v2306, %v2377
    %v2394 = vmul.f32 %v2308, %v2378
    %v2395 = vmul.f32 %v2359, %v2379
    %v2396 = vmul.f32 %v2361, %v2380
    %v2397 = vmul.f32 %v2310, %v2381
    %v2398 = vmul.f32 %v2312, %v2382
    %v2399 = vmul.f32 %v2363, %v2383
    %v2400 = vmul.f32 %v2365, %v2384
    %v2401 = vmul.f32 %v2316, %v2385
    %v2402 = vmul.f32 %v2318, %v2386
    %v2403 = vmul.f32 %v2369, %v2387
    %v2404 = vmul.f32 %v2371, %v2388
    %v2405 = vmul.f32 %v2320, %v2389
    %v2406 = vmul.f32 %v2322, %v2390
    %v2407 = vmul.f32 %v2373, %v2391
    %v2408 = vmul.f32 %v2375, %v2392
    %v2409 = vmul.f32 %v2393, 0.044715
    %v2410 = vmul.f32 %v2394, 0.044715
    %v2411 = vmul.f32 %v2395, 0.044715
    %v2412 = vmul.f32 %v2396, 0.044715
    %v2413 = vmul.f32 %v2397, 0.044715
    %v2414 = vmul.f32 %v2398, 0.044715
    %v2415 = vmul.f32 %v2399, 0.044715
    %v2416 = vmul.f32 %v2400, 0.044715
    %v2417 = vmul.f32 %v2401, 0.044715
    %v2418 = vmul.f32 %v2402, 0.044715
    %v2419 = vmul.f32 %v2403, 0.044715
    %v2420 = vmul.f32 %v2404, 0.044715
    %v2421 = vmul.f32 %v2405, 0.044715
    %v2422 = vmul.f32 %v2406, 0.044715
    %v2423 = vmul.f32 %v2407, 0.044715
    %v2424 = vmul.f32 %v2408, 0.044715
    %v2425 = vadd.f32 %v2306, %v2409
    %v2426 = vadd.f32 %v2308, %v2410
    %v2427 = vadd.f32 %v2359, %v2411
    %v2428 = vadd.f32 %v2361, %v2412
    %v2429 = vadd.f32 %v2310, %v2413
    %v2430 = vadd.f32 %v2312, %v2414
    %v2431 = vadd.f32 %v2363, %v2415
    %v2432 = vadd.f32 %v2365, %v2416
    %v2433 = vadd.f32 %v2316, %v2417
    %v2434 = vadd.f32 %v2318, %v2418
    %v2435 = vadd.f32 %v2369, %v2419
    %v2436 = vadd.f32 %v2371, %v2420
    %v2437 = vadd.f32 %v2320, %v2421
    %v2438 = vadd.f32 %v2322, %v2422
    %v2439 = vadd.f32 %v2373, %v2423
    %v2440 = vadd.f32 %v2375, %v2424
    %v2441 = vmul.f32 %v2425, 0.7978846
    %v2442 = vmul.f32 %v2426, 0.7978846
    %v2443 = vmul.f32 %v2427, 0.7978846
    %v2444 = vmul.f32 %v2428, 0.7978846
    %v2445 = vmul.f32 %v2429, 0.7978846
    %v2446 = vmul.f32 %v2430, 0.7978846
    %v2447 = vmul.f32 %v2431, 0.7978846
    %v2448 = vmul.f32 %v2432, 0.7978846
    %v2449 = vmul.f32 %v2433, 0.7978846
    %v2450 = vmul.f32 %v2434, 0.7978846
    %v2451 = vmul.f32 %v2435, 0.7978846
    %v2452 = vmul.f32 %v2436, 0.7978846
    %v2453 = vmul.f32 %v2437, 0.7978846
    %v2454 = vmul.f32 %v2438, 0.7978846
    %v2455 = vmul.f32 %v2439, 0.7978846
    %v2456 = vmul.f32 %v2440, 0.7978846
    %v2457 = vtanh.pop %v2441
    %v2458 = vtanh.pop %v2442
    %v2459 = vtanh.pop %v2443
    %v2460 = vtanh.pop %v2444
    %v2461 = vtanh.pop %v2445
    %v2462 = vtanh.pop %v2446
    %v2463 = vtanh.pop %v2447
    %v2464 = vtanh.pop %v2448
    %v2465 = vtanh.pop %v2449
    %v2466 = vtanh.pop %v2450
    %v2467 = vtanh.pop %v2451
    %v2468 = vtanh.pop %v2452
    %v2469 = vtanh.pop %v2453
    %v2470 = vtanh.pop %v2454
    %v2471 = vtanh.pop %v2455
    %v2472 = vtanh.pop %v2456
    %v2473 = vadd.f32 %v2457, 1.0
    %v2474 = vadd.f32 %v2458, 1.0
    %v2475 = vadd.f32 %v2459, 1.0
    %v2476 = vadd.f32 %v2460, 1.0
    %v2477 = vadd.f32 %v2461, 1.0
    %v2478 = vadd.f32 %v2462, 1.0
    %v2479 = vadd.f32 %v2463, 1.0
    %v2480 = vadd.f32 %v2464, 1.0
    %v2481 = vadd.f32 %v2465, 1.0
    %v2482 = vadd.f32 %v2466, 1.0
    %v2483 = vadd.f32 %v2467, 1.0
    %v2484 = vadd.f32 %v2468, 1.0
    %v2485 = vadd.f32 %v2469, 1.0
    %v2486 = vadd.f32 %v2470, 1.0
    %v2487 = vadd.f32 %v2471, 1.0
    %v2488 = vadd.f32 %v2472, 1.0
    %v2489 = vmul.f32 %v2473, 0.5
    %v2490 = vmul.f32 %v2474, 0.5
    %v2491 = vmul.f32 %v2475, 0.5
    %v2492 = vmul.f32 %v2476, 0.5
    %v2493 = vmul.f32 %v2477, 0.5
    %v2494 = vmul.f32 %v2478, 0.5
    %v2495 = vmul.f32 %v2479, 0.5
    %v2496 = vmul.f32 %v2480, 0.5
    %v2497 = vmul.f32 %v2481, 0.5
    %v2498 = vmul.f32 %v2482, 0.5
    %v2499 = vmul.f32 %v2483, 0.5
    %v2500 = vmul.f32 %v2484, 0.5
    %v2501 = vmul.f32 %v2485, 0.5
    %v2502 = vmul.f32 %v2486, 0.5
    %v2503 = vmul.f32 %v2487, 0.5
    %v2504 = vmul.f32 %v2488, 0.5
    %v2505 = vmul.f32 %v2306, %v2489
    %v2506 = vmul.f32 %v2308, %v2490
    %v2507 = vmul.f32 %v2359, %v2491
    %v2508 = vmul.f32 %v2361, %v2492
    %v2509 = vmul.f32 %v2310, %v2493
    %v2510 = vmul.f32 %v2312, %v2494
    %v2511 = vmul.f32 %v2363, %v2495
    %v2512 = vmul.f32 %v2365, %v2496
    %v2513 = vmul.f32 %v2316, %v2497
    %v2514 = vmul.f32 %v2318, %v2498
    %v2515 = vmul.f32 %v2369, %v2499
    %v2516 = vmul.f32 %v2371, %v2500
    %v2517 = vmul.f32 %v2320, %v2501
    %v2518 = vmul.f32 %v2322, %v2502
    %v2519 = vmul.f32 %v2373, %v2503
    %v2520 = vmul.f32 %v2375, %v2504
    %v2521 = vld [vmem:[%s15] sm:$0xf]
    %v2522 = vld [vmem:[%s15 + $0x4] sm:$0xf]
    %v2523 = vld [vmem:[%s15 + $0x8] sm:$0xf]
    %v2524 = vld [vmem:[%s15 + $0xc] sm:$0xf]
    %v2525 = vld [vmem:[%s15 + $0x10] sm:$0xf]
    %v2526 = vld [vmem:[%s15 + $0x14] sm:$0xf]
    %v2527 = vld [vmem:[%s15 + $0x18] sm:$0xf]
    %v2528 = vld [vmem:[%s15 + $0x1c] sm:$0xf]
    %v2529 = vld [vmem:[%s15 + $0x20] sm:$0xf]
    %v2530 = vld [vmem:[%s15 + $0x24] sm:$0xf]
    %v2531 = vld [vmem:[%s15 + $0x28] sm:$0xf]
    %v2532 = vld [vmem:[%s15 + $0x2c] sm:$0xf]
    %v2533 = vld [vmem:[%s15 + $0x30] sm:$0xf]
    %v2534 = vld [vmem:[%s15 + $0x34] sm:$0xf]
    %v2535 = vld [vmem:[%s15 + $0x38] sm:$0xf]
    %v2536 = vld [vmem:[%s15 + $0x3c] sm:$0xf]
    %v2537 = vld [vmem:[%s15 + $0x40] sm:$0xf]
    %v2538 = vld [vmem:[%s15 + $0x44] sm:$0xf]
    %v2539 = vld [vmem:[%s15 + $0x48] sm:$0xf]
    %v2540 = vld [vmem:[%s15 + $0x4c] sm:$0xf]
    %v2541 = vld [vmem:[%s15 + $0x50] sm:$0xf]
    %v2542 = vld [vmem:[%s15 + $0x54] sm:$0xf]
    %v2543 = vld [vmem:[%s15 + $0x58] sm:$0xf]
    %v2544 = vld [vmem:[%s15 + $0x5c] sm:$0xf]
    %v2545 = vld [vmem:[%s15 + $0x60] sm:$0xf]
    %v2546 = vld [vmem:[%s15 + $0x64] sm:$0xf]
    %v2547 = vld [vmem:[%s15 + $0x68] sm:$0xf]
    %v2548 = vld [vmem:[%s15 + $0x6c] sm:$0xf]
    %v2549 = vld [vmem:[%s15 + $0x70] sm:$0xf]
    %v2550 = vld [vmem:[%s15 + $0x74] sm:$0xf]
    %v2551 = vld [vmem:[%s15 + $0x78] sm:$0xf]
    %v2552 = vld [vmem:[%s15 + $0x7c] sm:$0xf]
    %v2553 = vld [vmem:[%s15 + $0x80] sm:$0xf]
    %v2554 = vld [vmem:[%s15 + $0x84] sm:$0xf]
    %v2555 = vld [vmem:[%s15 + $0x88] sm:$0xf]
    %v2556 = vld [vmem:[%s15 + $0x8c] sm:$0xf]
    %v2557 = vld [vmem:[%s15 + $0x90] sm:$0xf]
    %v2558 = vld [vmem:[%s15 + $0x94] sm:$0xf]
    %v2559 = vld [vmem:[%s15 + $0x98] sm:$0xf]
    %v2560 = vld [vmem:[%s15 + $0x9c] sm:$0xf]
    %v2561 = vld [vmem:[%s15 + $0xa0] sm:$0xf]
    %v2562 = vld [vmem:[%s15 + $0xa4] sm:$0xf]
    %v2563 = vld [vmem:[%s15 + $0xa8] sm:$0xf]
    %v2564 = vld [vmem:[%s15 + $0xac] sm:$0xf]
    %v2565 = vld [vmem:[%s15 + $0xb0] sm:$0xf]
    %v2566 = vld [vmem:[%s15 + $0xb4] sm:$0xf]
    %v2567 = vld [vmem:[%s15 + $0xb8] sm:$0xf]
    %v2568 = vld [vmem:[%s15 + $0xbc] sm:$0xf]
    %v2569 = vld [vmem:[%s15 + $0xc0] sm:$0xf]
    %v2570 = vld [vmem:[%s15 + $0xc4] sm:$0xf]
    %v2571 = vld [vmem:[%s15 + $0xc8] sm:$0xf]
    %v2572 = vld [vmem:[%s15 + $0xcc] sm:$0xf]
    %v2573 = vld [vmem:[%s15 + $0xd0] sm:$0xf]
    %v2574 = vld [vmem:[%s15 + $0xd4] sm:$0xf]
    %v2575 = vld [vmem:[%s15 + $0xd8] sm:$0xf]
    %v2576 = vld [vmem:[%s15 + $0xdc] sm:$0xf]
    %v2577 = vld [vmem:[%s15 + $0xe0] sm:$0xf]
    %v2578 = vld [vmem:[%s15 + $0xe4] sm:$0xf]
    %v2579 = vld [vmem:[%s15 + $0xe8] sm:$0xf]
    %v2580 = vld [vmem:[%s15 + $0xec] sm:$0xf]
    %v2581 = vld [vmem:[%s15 + $0xf0] sm:$0xf]
    %v2582 = vld [vmem:[%s15 + $0xf4] sm:$0xf]
    %v2583 = vld [vmem:[%s15 + $0xf8] sm:$0xf]
    %v2584 = vld [vmem:[%s15 + $0xfc] sm:$0xf]
    %v2585 = vpack.c.bf16 %v2509, %v2505
    %v2586 = vpack.c.bf16 %v2510, %v2506
    %v2587 = vpack.c.bf16 %v2511, %v2507
    %v2588 = vpack.c.bf16 %v2512, %v2508
    %v2589 = vpack.c.bf16 %v2517, %v2513
    %v2590 = vpack.c.bf16 %v2518, %v2514
    %v2591 = vpack.c.bf16 %v2519, %v2515
    %v2592 = vpack.c.bf16 %v2520, %v2516
    %v2593 = vld [vmem:[%s16] sm:$0x1]
    %v2595 = vlaneseq
    %v2596 = vshrl.u32 %v2595, 7
    %v2597 = vsub.s32 0, %v2596
    %v2598 = vrot.slane %v2593, %v2597
    %v2664 = vunpack.c.l.b16 %v2521
    %v2665 = vunpack.c.l.b16 %v2522
    %v2666 = vunpack.c.l.b16 %v2523
    %v2667 = vunpack.c.l.b16 %v2524
    %v2668 = vunpack.c.l.b16 %v2525
    %v2669 = vunpack.c.l.b16 %v2526
    %v2670 = vunpack.c.l.b16 %v2527
    %v2671 = vunpack.c.l.b16 %v2528
    %v2672 = vunpack.c.l.b16 %v2529
    %v2673 = vunpack.c.l.b16 %v2530
    %v2674 = vunpack.c.l.b16 %v2531
    %v2675 = vunpack.c.l.b16 %v2532
    %v2676 = vunpack.c.l.b16 %v2533
    %v2677 = vunpack.c.l.b16 %v2534
    %v2678 = vunpack.c.l.b16 %v2535
    %v2679 = vunpack.c.l.b16 %v2536
    %v2680 = vunpack.c.l.b16 %v2537
    %v2681 = vunpack.c.l.b16 %v2538
    %v2682 = vunpack.c.l.b16 %v2539
    %v2683 = vunpack.c.l.b16 %v2540
    %v2684 = vunpack.c.l.b16 %v2541
    %v2685 = vunpack.c.l.b16 %v2542
    %v2686 = vunpack.c.l.b16 %v2543
    %v2687 = vunpack.c.l.b16 %v2544
    %v2688 = vunpack.c.l.b16 %v2545
    %v2689 = vunpack.c.l.b16 %v2546
    %v2690 = vunpack.c.l.b16 %v2547
    %v2691 = vunpack.c.l.b16 %v2548
    %v2692 = vunpack.c.l.b16 %v2549
    %v2693 = vunpack.c.l.b16 %v2550
    %v2694 = vunpack.c.l.b16 %v2551
    %v2695 = vunpack.c.l.b16 %v2552
    %v2696 = vunpack.c.l.b16 %v2553
    %v2697 = vunpack.c.l.b16 %v2554
    %v2698 = vunpack.c.l.b16 %v2555
    %v2699 = vunpack.c.l.b16 %v2556
    %v2700 = vunpack.c.l.b16 %v2557
    %v2701 = vunpack.c.l.b16 %v2558
    %v2702 = vunpack.c.l.b16 %v2559
    %v2703 = vunpack.c.l.b16 %v2560
    %v2704 = vunpack.c.l.b16 %v2561
    %v2705 = vunpack.c.l.b16 %v2562
    %v2706 = vunpack.c.l.b16 %v2563
    %v2707 = vunpack.c.l.b16 %v2564
    %v2708 = vunpack.c.l.b16 %v2565
    %v2709 = vunpack.c.l.b16 %v2566
    %v2710 = vunpack.c.l.b16 %v2567
    %v2711 = vunpack.c.l.b16 %v2568
    %v2712 = vunpack.c.l.b16 %v2569
    %v2713 = vunpack.c.l.b16 %v2570
    %v2714 = vunpack.c.l.b16 %v2571
    %v2715 = vunpack.c.l.b16 %v2572
    %v2716 = vunpack.c.l.b16 %v2573
    %v2717 = vunpack.c.l.b16 %v2574
    %v2718 = vunpack.c.l.b16 %v2575
    %v2719 = vunpack.c.l.b16 %v2576
    %v2720 = vunpack.c.l.b16 %v2577
    %v2721 = vunpack.c.l.b16 %v2578
    %v2722 = vunpack.c.l.b16 %v2579
    %v2723 = vunpack.c.l.b16 %v2580
    %v2724 = vunpack.c.l.b16 %v2581
    %v2725 = vunpack.c.l.b16 %v2582
    %v2726 = vunpack.c.l.b16 %v2583
    %v2727 = vunpack.c.l.b16 %v2584
    %v2728 = vpack.c.b16 %v2665, %v2664
    %v2729 = vpack.c.b16 %v2667, %v2666
    %v2730 = vpack.c.b16 %v2669, %v2668
    %v2731 = vpack.c.b16 %v2671, %v2670
    %v2732 = vpack.c.b16 %v2673, %v2672
    %v2733 = vpack.c.b16 %v2675, %v2674
    %v2734 = vpack.c.b16 %v2677, %v2676
    %v2735 = vpack.c.b16 %v2679, %v2678
    %v2736 = vpack.c.b16 %v2681, %v2680
    %v2737 = vpack.c.b16 %v2683, %v2682
    %v2738 = vpack.c.b16 %v2685, %v2684
    %v2739 = vpack.c.b16 %v2687, %v2686
    %v2740 = vpack.c.b16 %v2689, %v2688
    %v2741 = vpack.c.b16 %v2691, %v2690
    %v2742 = vpack.c.b16 %v2693, %v2692
    %v2743 = vpack.c.b16 %v2695, %v2694
    %v2744 = vpack.c.b16 %v2697, %v2696
    %v2745 = vpack.c.b16 %v2699, %v2698
    %v2746 = vpack.c.b16 %v2701, %v2700
    %v2747 = vpack.c.b16 %v2703, %v2702
    %v2748 = vpack.c.b16 %v2705, %v2704
    %v2749 = vpack.c.b16 %v2707, %v2706
    %v2750 = vpack.c.b16 %v2709, %v2708
    %v2751 = vpack.c.b16 %v2711, %v2710
    %v2752 = vpack.c.b16 %v2713, %v2712
    %v2753 = vpack.c.b16 %v2715, %v2714
    %v2754 = vpack.c.b16 %v2717, %v2716
    %v2755 = vpack.c.b16 %v2719, %v2718
    %v2756 = vpack.c.b16 %v2721, %v2720
    %v2757 = vpack.c.b16 %v2723, %v2722
    %v2758 = vpack.c.b16 %v2725, %v2724
    %v2759 = vpack.c.b16 %v2727, %v2726
    %2792 = vmatprep.subr.bf16.mxu0 0
    %2793 = vmatpush1.bf16.msra.mxu0 %v2728
    %2794 = vmatprep.subr.bf16.mxu0 0
    %2795 = vmatpush1.bf16.msra.mxu0 %v2729
    %2796 = vmatprep.subr.bf16.mxu0 0
    %2797 = vmatpush1.bf16.msra.mxu0 %v2730
    %2798 = vmatprep.subr.bf16.mxu0 0
    %2799 = vmatpush1.bf16.msra.mxu0 %v2731
    %2800 = vmatprep.subr.bf16.mxu0 0
    %2801 = vmatpush1.bf16.msra.mxu0 %v2732
    %2802 = vmatprep.subr.bf16.mxu0 0
    %2803 = vmatpush1.bf16.msra.mxu0 %v2733
    %2804 = vmatprep.subr.bf16.mxu0 0
    %2805 = vmatpush1.bf16.msra.mxu0 %v2734
    %2806 = vmatprep.subr.bf16.mxu0 0
    %2807 = vmatpush1.bf16.msra.mxu0 %v2735
    %2808 = vmatprep.subr.bf16.mxu0 0
    %2809 = vmatpush1.bf16.msra.mxu0 %v2736
    %2810 = vmatprep.subr.bf16.mxu0 0
    %2811 = vmatpush1.bf16.msra.mxu0 %v2737
    %2812 = vmatprep.subr.bf16.mxu0 0
    %2813 = vmatpush1.bf16.msra.mxu0 %v2738
    %2814 = vmatprep.subr.bf16.mxu0 0
    %2815 = vmatpush1.bf16.msra.mxu0 %v2739
    %2816 = vmatprep.subr.bf16.mxu0 0
    %2817 = vmatpush1.bf16.msra.mxu0 %v2740
    %2818 = vmatprep.subr.bf16.mxu0 0
    %2819 = vmatpush1.bf16.msra.mxu0 %v2741
    %2820 = vmatprep.subr.bf16.mxu0 0
    %2821 = vmatpush1.bf16.msra.mxu0 %v2742
    %2822 = vmatprep.subr.bf16.mxu0 0
    %2823 = vmatpush1.bf16.msra.mxu0 %v2743
    %2824 = vmatprep.mubr.bf16.mxu0 %v2586
    %2825 = vmatmul.mubr.bf16.gmra.mrb[0].mxu0 %v2585
    %v2826 = vpop.f32.mrb[0].mxu0
    %v2827 = vadd.f32 %v2598, %v2826
    %v2828 = vpop.f32.mrb[0].mxu0
    %v2829 = vpop.f32.mrb[0].mxu0
    %v2830 = vadd.f32 %v2598, %v2829
    %v2831 = vpop.f32.mrb[0].mxu0
    %2832 = vmatprep.mubr.bf16.mxu0 %v2590
    %2833 = vmatmul.mubr.bf16.gmra.mrb[0].mxu0 %v2589
    %v2834 = vpop.f32.mrb[0].mxu0
    %v2835 = vadd.f32 %v2598, %v2834
    %v2836 = vpop.f32.mrb[0].mxu0
    %v2837 = vpop.f32.mrb[0].mxu0
    %v2838 = vadd.f32 %v2598, %v2837
    %v2839 = vpop.f32.mrb[0].mxu0
    %2840 = vdwg.mxu0
    %2841 = vmatprep.subr.bf16.mxu0 0
    %2842 = vmatpush1.bf16.msra.mxu0 %v2744
    %2843 = vmatprep.subr.bf16.mxu0 0
    %2844 = vmatpush1.bf16.msra.mxu0 %v2745
    %2845 = vmatprep.subr.bf16.mxu0 0
    %2846 = vmatpush1.bf16.msra.mxu0 %v2746
    %2847 = vmatprep.subr.bf16.mxu0 0
    %2848 = vmatpush1.bf16.msra.mxu0 %v2747
    %2849 = vmatprep.subr.bf16.mxu0 0
    %2850 = vmatpush1.bf16.msra.mxu0 %v2748
    %2851 = vmatprep.subr.bf16.mxu0 0
    %2852 = vmatpush1.bf16.msra.mxu0 %v2749
    %2853 = vmatprep.subr.bf16.mxu0 0
    %2854 = vmatpush1.bf16.msra.mxu0 %v2750
    %2855 = vmatprep.subr.bf16.mxu0 0
    %2856 = vmatpush1.bf16.msra.mxu0 %v2751
    %2857 = vmatprep.subr.bf16.mxu0 0
    %2858 = vmatpush1.bf16.msra.mxu0 %v2752
    %2859 = vmatprep.subr.bf16.mxu0 0
    %2860 = vmatpush1.bf16.msra.mxu0 %v2753
    %2861 = vmatprep.subr.bf16.mxu0 0
    %2862 = vmatpush1.bf16.msra.mxu0 %v2754
    %2863 = vmatprep.subr.bf16.mxu0 0
    %2864 = vmatpush1.bf16.msra.mxu0 %v2755
    %2865 = vmatprep.subr.bf16.mxu0 0
    %2866 = vmatpush1.bf16.msra.mxu0 %v2756
    %2867 = vmatprep.subr.bf16.mxu0 0
    %2868 = vmatpush1.bf16.msra.mxu0 %v2757
    %2869 = vmatprep.subr.bf16.mxu0 0
    %2870 = vmatpush1.bf16.msra.mxu0 %v2758
    %2871 = vmatprep.subr.bf16.mxu0 0
    %2872 = vmatpush1.bf16.msra.mxu0 %v2759
    %2873 = vmatprep.mubr.bf16.mxu0 %v2588
    %2874 = vmatmul.mubr.bf16.gmra.mrb[0].mxu0 %v2587
    %v2875 = vpop.f32.mrb[0].mxu0
    %v2876 = vadd.f32 %v2827, %v2875
    %v2877 = vpop.f32.mrb[0].mxu0
    %v2878 = vpop.f32.mrb[0].mxu0
    %v2879 = vadd.f32 %v2830, %v2878
    %v2880 = vpop.f32.mrb[0].mxu0
    %2881 = vmatprep.mubr.bf16.mxu0 %v2592
    %2882 = vmatmul.mubr.bf16.gmra.mrb[0].mxu0 %v2591
    %v2883 = vpop.f32.mrb[0].mxu0
    %v2884 = vadd.f32 %v2835, %v2883
    %v2885 = vpop.f32.mrb[0].mxu0
    %v2886 = vpop.f32.mrb[0].mxu0
    %v2887 = vadd.f32 %v2838, %v2886
    %v2888 = vpop.f32.mrb[0].mxu0
    %2889 = vdwg.mxu0
    %v2890 = vld [vmem:[%s17] sm:$0x1]
    %v2892 = vlaneseq
    %v2893 = vshrl.u32 %v2892, 7
    %v2894 = vsub.s32 0, %v2893
    %v2895 = vrot.slane %v2890, %v2894
    %v2897 = vmul.f32 %v2895, %v2876
    %v2898 = vmul.f32 %v2895, %v2879
    %v2899 = vmul.f32 %v2895, %v2884
    %v2900 = vmul.f32 %v2895, %v2887
    %v2901 = vadd.f32 %v1977, %v2897
    %v2902 = vadd.f32 %v1978, %v2898
    %v2903 = vadd.f32 %v1979, %v2899
    %v2904 = vadd.f32 %v1980, %v2900
    %s2905 = scalar_lea.vmem %s4, 1
    %v2906 = vld [vmem:[%s2905] sm:$0x1]
    %s2907 = scalar_lea.vmem %s5, 1
    %v2908 = vld [vmem:[%s2907] sm:$0x1]
    %2909 = vadd.xlane.f32.xlu0 %v2901
    %v2910 = vpop.xlane.xlu0 %2909
    %2911 = vadd.xlane.f32.xlu0 %v2902
    %v2912 = vpop.xlane.xlu0 %2911
    %2913 = vadd.xlane.f32.xlu0 %v2903
    %v2914 = vpop.xlane.xlu0 %2913
    %2915 = vadd.xlane.f32.xlu0 %v2904
    %v2916 = vpop.xlane.xlu0 %2915
    %v2917 = vmul.f32 %v2910, %v579
    %v2918 = vmul.f32 %v2912, %v579
    %v2919 = vmul.f32 %v2914, %v579
    %v2920 = vmul.f32 %v2916, %v579
    %v2921 = vmul.f32 %v2901, %v2901
    %v2922 = vmul.f32 %v2902, %v2902
    %v2923 = vmul.f32 %v2903, %v2903
    %v2924 = vmul.f32 %v2904, %v2904
    %2925 = vadd.xlane.f32.xlu0 %v2921
    %v2926 = vpop.xlane.xlu0 %2925
    %2927 = vadd.xlane.f32.xlu0 %v2922
    %v2928 = vpop.xlane.xlu0 %2927
    %2929 = vadd.xlane.f32.xlu0 %v2923
    %v2930 = vpop.xlane.xlu0 %2929
    %2931 = vadd.xlane.f32.xlu0 %v2924
    %v2932 = vpop.xlane.xlu0 %2931
    %v2933 = vmul.f32 %v2926, %v579
    %v2934 = vmul.f32 %v2928, %v579
    %v2935 = vmul.f32 %v2930, %v579
    %v2936 = vmul.f32 %v2932, %v579
    %v2937 = vmul.f32 %v2917, %v2917
    %v2938 = vmul.f32 %v2918, %v2918
    %v2939 = vmul.f32 %v2919, %v2919
    %v2940 = vmul.f32 %v2920, %v2920
    %v2941 = vsub.f32 %v2933, %v2937
    %v2942 = vsub.f32 %v2934, %v2938
    %v2943 = vsub.f32 %v2935, %v2939
    %v2944 = vsub.f32 %v2936, %v2940
    %v2945 = vsub.f32 %v2901, %v2917
    %v2946 = vsub.f32 %v2902, %v2918
    %v2947 = vsub.f32 %v2903, %v2919
    %v2948 = vsub.f32 %v2904, %v2920
    %v2949 = vadd.f32 %v2941, 1e-06
    %v2950 = vadd.f32 %v2942, 1e-06
    %v2951 = vadd.f32 %v2943, 1e-06
    %v2952 = vadd.f32 %v2944, 1e-06
    %v2953 = vrsqrt.pop %v2949
    %v2954 = vrsqrt.pop %v2950
    %v2955 = vrsqrt.pop %v2951
    %v2956 = vrsqrt.pop %v2952
    %v2957 = vmul.f32 %v2945, %v2953
    %v2958 = vmul.f32 %v2946, %v2954
    %v2959 = vmul.f32 %v2947, %v2955
    %v2960 = vmul.f32 %v2948, %v2956
    %v2962 = vlaneseq
    %v2963 = vshrl.u32 %v2962, 7
    %v2964 = vsub.s32 0, %v2963
    %v2965 = vrot.slane %v2906, %v2964
    %v2967 = vmul.f32 %v2957, %v2965
    %v2968 = vmul.f32 %v2958, %v2965
    %v2969 = vmul.f32 %v2959, %v2965
    %v2970 = vmul.f32 %v2960, %v2965
    %v2972 = vlaneseq
    %v2973 = vshrl.u32 %v2972, 7
    %v2974 = vsub.s32 0, %v2973
    %v2975 = vrot.slane %v2908, %v2974
    %v2977 = vadd.f32 %v2967, %v2975
    %v2978 = vadd.f32 %v2968, %v2975
    %v2979 = vadd.f32 %v2969, %v2975
    %v2980 = vadd.f32 %v2970, %v2975
    %s2981 = scalar_lea.vmem %s6, 192
    %v2982 = vld [vmem:[%s2981] sm:$0xff]
    %v2983 = vld [vmem:[%s2981 + $0x8] sm:$0xf]
    %v2984 = vld [vmem:[%s2981 + $0xc] sm:$0xff]
    %v2985 = vld [vmem:[%s2981 + $0x14] sm:$0xf]
    %v2986 = vld [vmem:[%s2981 + $0x18] sm:$0xff]
    %v2987 = vld [vmem:[%s2981 + $0x20] sm:$0xf]
    %v2988 = vld [vmem:[%s2981 + $0x24] sm:$0xff]
    %v2989 = vld [vmem:[%s2981 + $0x2c] sm:$0xf]
    %v2990 = vld [vmem:[%s2981 + $0x30] sm:$0xff]
    %v2991 = vld [vmem:[%s2981 + $0x38] sm:$0xf]
    %v2992 = vld [vmem:[%s2981 + $0x3c] sm:$0xff]
    %v2993 = vld [vmem:[%s2981 + $0x44] sm:$0xf]
    %v2994 = vld [vmem:[%s2981 + $0x48] sm:$0xff]
    %v2995 = vld [vmem:[%s2981 + $0x50] sm:$0xf]
    %v2996 = vld [vmem:[%s2981 + $0x54] sm:$0xff]
    %v2997 = vld [vmem:[%s2981 + $0x5c] sm:$0xf]
    %v2998 = vld [vmem:[%s2981 + $0x60] sm:$0xff]
    %v2999 = vld [vmem:[%s2981 + $0x68] sm:$0xf]
    %v3000 = vld [vmem:[%s2981 + $0x6c] sm:$0xff]
    %v3001 = vld [vmem:[%s2981 + $0x74] sm:$0xf]
    %v3002 = vld [vmem:[%s2981 + $0x78] sm:$0xff]
    %v3003 = vld [vmem:[%s2981 + $0x80] sm:$0xf]
    %v3004 = vld [vmem:[%s2981 + $0x84] sm:$0xff]
    %v3005 = vld [vmem:[%s2981 + $0x8c] sm:$0xf]
    %v3006 = vld [vmem:[%s2981 + $0x90] sm:$0xff]
    %v3007 = vld [vmem:[%s2981 + $0x98] sm:$0xf]
    %v3008 = vld [vmem:[%s2981 + $0x9c] sm:$0xff]
    %v3009 = vld [vmem:[%s2981 + $0xa4] sm:$0xf]
    %v3010 = vld [vmem:[%s2981 + $0xa8] sm:$0xff]
    %v3011 = vld [vmem:[%s2981 + $0xb0] sm:$0xf]
    %v3012 = vld [vmem:[%s2981 + $0xb4] sm:$0xff]
    %v3013 = vld [vmem:[%s2981 + $0xbc] sm:$0xf]
    %v3014 = vpack.c.bf16 %v2978, %v2977
    %v3015 = vpack.c.bf16 %v2980, %v2979
    %s3016 = scalar_lea.vmem %s7, 3
    %v3017 = vld [vmem:[%s3016] sm:$0x7]
    %v3019 = vlaneseq
    %v3020 = vshrl.u32 %v3019, 7
    %v3021 = vsub.s32 0, %v3020
    %v3022 = vrot.slane %v3017, %v3021
    %v3023 = vlaneseq
    %v3024 = vshrl.u32 %v3023, 7
    %v3025 = vsub.s32 1, %v3024
    %v3026 = vrot.slane %v3017, %v3025
    %v3027 = vlaneseq
    %v3028 = vshrl.u32 %v3027, 7
    %v3029 = vsub.s32 2, %v3028
    %v3030 = vrot.slane %v3017, %v3029
    %v3066 = vunpack.c.l.b16 %v2982
    %v3067 = vunpack.c.h.b16 %v2982
    %v3068 = vunpack.c.l.b16 %v2983
    %v3069 = vunpack.c.l.b16 %v2984
    %v3070 = vunpack.c.h.b16 %v2984
    %v3071 = vunpack.c.l.b16 %v2985
    %v3072 = vunpack.c.l.b16 %v2986
    %v3073 = vunpack.c.h.b16 %v2986
    %v3074 = vunpack.c.l.b16 %v2987
    %v3075 = vunpack.c.l.b16 %v2988
    %v3076 = vunpack.c.h.b16 %v2988
    %v3077 = vunpack.c.l.b16 %v2989
    %v3078 = vunpack.c.l.b16 %v2990
    %v3079 = vunpack.c.h.b16 %v2990
    %v3080 = vunpack.c.l.b16 %v2991
    %v3081 = vunpack.c.l.b16 %v2992
    %v3082 = vunpack.c.h.b16 %v2992
    %v3083 = vunpack.c.l.b16 %v2993
    %v3084 = vunpack.c.l.b16 %v2994
    %v3085 = vunpack.c.h.b16 %v2994
    %v3086 = vunpack.c.l.b16 %v2995
    %v3087 = vunpack.c.l.b16 %v2996
    %v3088 = vunpack.c.h.b16 %v2996
    %v3089 = vunpack.c.l.b16 %v2997
    %v3090 = vunpack.c.l.b16 %v2998
    %v3091 = vunpack.c.h.b16 %v2998
    %v3092 = vunpack.c.l.b16 %v2999
    %v3093 = vunpack.c.l.b16 %v3000
    %v3094 = vunpack.c.h.b16 %v3000
    %v3095 = vunpack.c.l.b16 %v3001
    %v3096 = vunpack.c.l.b16 %v3002
    %v3097 = vunpack.c.h.b16 %v3002
    %v3098 = vunpack.c.l.b16 %v3003
    %v3099 = vunpack.c.l.b16 %v3004
    %v3100 = vunpack.c.h.b16 %v3004
    %v3101 = vunpack.c.l.b16 %v3005
    %v3102 = vunpack.c.l.b16 %v3006
    %v3103 = vunpack.c.h.b16 %v3006
    %v3104 = vunpack.c.l.b16 %v3007
    %v3105 = vunpack.c.l.b16 %v3008
    %v3106 = vunpack.c.h.b16 %v3008
    %v3107 = vunpack.c.l.b16 %v3009
    %v3108 = vunpack.c.l.b16 %v3010
    %v3109 = vunpack.c.h.b16 %v3010
    %v3110 = vunpack.c.l.b16 %v3011
    %v3111 = vunpack.c.l.b16 %v3012
    %v3112 = vunpack.c.h.b16 %v3012
    %v3113 = vunpack.c.l.b16 %v3013
    %v3114 = vpack.c.b16 %v3069, %v3066
    %v3115 = vpack.c.b16 %v3070, %v3067
    %v3116 = vpack.c.b16 %v3071, %v3068
    %v3117 = vpack.c.b16 %v3075, %v3072
    %v3118 = vpack.c.b16 %v3076, %v3073
    %v3119 = vpack.c.b16 %v3077, %v3074
    %v3120 = vpack.c.b16 %v3081, %v3078
    %v3121 = vpack.c.b16 %v3082, %v3079
    %v3122 = vpack.c.b16 %v3083, %v3080
    %v3123 = vpack.c.b16 %v3087, %v3084
    %v3124 = vpack.c.b16 %v3088, %v3085
    %v3125 = vpack.c.b16 %v3089, %v3086
    %v3126 = vpack.c.b16 %v3093, %v3090
    %v3127 = vpack.c.b16 %v3094, %v3091
    %v3128 = vpack.c.b16 %v3095, %v3092
    %v3129 = vpack.c.b16 %v3099, %v3096
    %v3130 = vpack.c.b16 %v3100, %v3097
    %v3131 = vpack.c.b16 %v3101, %v3098
    %v3132 = vpack.c.b16 %v3105, %v3102
    %v3133 = vpack.c.b16 %v3106, %v3103
    %v3134 = vpack.c.b16 %v3107, %v3104
    %v3135 = vpack.c.b16 %v3111, %v3108
    %v3136 = vpack.c.b16 %v3112, %v3109
    %v3137 = vpack.c.b16 %v3113, %v3110
    %3162 = vmatprep.subr.bf16.mxu0 %v3115
    %3163 = vmatpush1.bf16.msra.mxu0 %v3114
    %3164 = vmatprep.subr.bf16.mxu0 %v3118
    %3165 = vmatpush1.bf16.msra.mxu0 %v3117
    %3166 = vmatprep.subr.bf16.mxu0 %v3121
    %3167 = vmatpush1.bf16.msra.mxu0 %v3120
    %3168 = vmatprep.subr.bf16.mxu0 %v3124
    %3169 = vmatpush1.bf16.msra.mxu0 %v3123
    %3170 = vmatprep.subr.bf16.mxu0 %v3127
    %3171 = vmatpush1.bf16.msra.mxu0 %v3126
    %3172 = vmatprep.subr.bf16.mxu0 %v3130
    %3173 = vmatpush1.bf16.msra.mxu0 %v3129
    %3174 = vmatprep.subr.bf16.mxu0 %v3133
    %3175 = vmatpush1.bf16.msra.mxu0 %v3132
    %3176 = vmatprep.subr.bf16.mxu0 %v3136
    %3177 = vmatpush1.bf16.msra.mxu0 %v3135
    %3178 = vmatprep.subr.bf16.mxu0 0
    %3179 = vmatpush1.bf16.msra.mxu0 0
    %3180 = vmatprep.subr.bf16.mxu0 0
    %3181 = vmatpush1.bf16.msra.mxu0 0
    %3182 = vmatprep.subr.bf16.mxu0 0
    %3183 = vmatpush1.bf16.msra.mxu0 0
    %3184 = vmatprep.subr.bf16.mxu0 0
    %3185 = vmatpush1.bf16.msra.mxu0 0
    %3186 = vmatprep.subr.bf16.mxu0 0
    %3187 = vmatpush1.bf16.msra.mxu0 0
    %3188 = vmatprep.subr.bf16.mxu0 0
    %3189 = vmatpush1.bf16.msra.mxu0 0
    %3190 = vmatprep.subr.bf16.mxu0 0
    %3191 = vmatpush1.bf16.msra.mxu0 0
    %3192 = vmatprep.subr.bf16.mxu0 0
    %3193 = vmatpush1.bf16.msra.mxu0 0
    %3194 = vmatprep.mubr.bf16.mxu0 0
    %3195 = vmatmul.mubr.bf16.gmra.mrb[0].mxu0 %v3014
    %v3196 = vpop.f32.mrb[0].mxu0
    %v3197 = vadd.f32 %v3022, %v3196
    %v3198 = vpop.f32.mrb[0].mxu0
    %v3199 = vadd.f32 %v3026, %v3198
    %v3200 = vpop.f32.mrb[0].mxu0
    %v3201 = vadd.f32 %v3022, %v3200
    %v3202 = vpop.f32.mrb[0].mxu0
    %v3203 = vadd.f32 %v3026, %v3202
    %3204 = vmatprep.mubr.bf16.mxu0 0
    %3205 = vmatmul.mubr.bf16.gmra.mrb[0].mxu0 %v3015
    %v3206 = vpop.f32.mrb[0].mxu0
    %v3207 = vadd.f32 %v3022, %v3206
    %v3208 = vpop.f32.mrb[0].mxu0
    %v3209 = vadd.f32 %v3026, %v3208
    %v3210 = vpop.f32.mrb[0].mxu0
    %v3211 = vadd.f32 %v3022, %v3210
    %v3212 = vpop.f32.mrb[0].mxu0
    %v3213 = vadd.f32 %v3026, %v3212
    %3214 = vdwg.mxu0
    %3215 = vmatprep.subr.bf16.mxu0 0
    %3216 = vmatpush1.bf16.msra.mxu0 %v3116
    %3217 = vmatprep.subr.bf16.mxu0 0
    %3218 = vmatpush1.bf16.msra.mxu0 %v3119
    %3219 = vmatprep.subr.bf16.mxu0 0
    %3220 = vmatpush1.bf16.msra.mxu0 %v3122
    %3221 = vmatprep.subr.bf16.mxu0 0
    %3222 = vmatpush1.bf16.msra.mxu0 %v3125
    %3223 = vmatprep.subr.bf16.mxu0 0
    %3224 = vmatpush1.bf16.msra.mxu0 %v3128
    %3225 = vmatprep.subr.bf16.mxu0 0
    %3226 = vmatpush1.bf16.msra.mxu0 %v3131
    %3227 = vmatprep.subr.bf16.mxu0 0
    %3228 = vmatpush1.bf16.msra.mxu0 %v3134
    %3229 = vmatprep.subr.bf16.mxu0 0
    %3230 = vmatpush1.bf16.msra.mxu0 %v3137
    %3231 = vmatprep.subr.bf16.mxu0 0
    %3232 = vmatpush1.bf16.msra.mxu0 0
    %3233 = vmatprep.subr.bf16.mxu0 0
    %3234 = vmatpush1.bf16.msra.mxu0 0
    %3235 = vmatprep.subr.bf16.mxu0 0
    %3236 = vmatpush1.bf16.msra.mxu0 0
    %3237 = vmatprep.subr.bf16.mxu0 0
    %3238 = vmatpush1.bf16.msra.mxu0 0
    %3239 = vmatprep.subr.bf16.mxu0 0
    %3240 = vmatpush1.bf16.msra.mxu0 0
    %3241 = vmatprep.subr.bf16.mxu0 0
    %3242 = vmatpush1.bf16.msra.mxu0 0
    %3243 = vmatprep.subr.bf16.mxu0 0
    %3244 = vmatpush1.bf16.msra.mxu0 0
    %3245 = vmatprep.subr.bf16.mxu0 0
    %3246 = vmatpush1.bf16.msra.mxu0 0
    %3247 = vmatprep.mubr.bf16.mxu0 0
    %3248 = vmatmul.mubr.bf16.gmra.mrb[0].mxu0 %v3014
    %v3249 = vpop.f32.mrb[0].mxu0
    %v3250 = vadd.f32 %v3030, %v3249
    %v3251 = vpop.f32.mrb[0].mxu0
    %v3252 = vpop.f32.mrb[0].mxu0
    %v3253 = vadd.f32 %v3030, %v3252
    %v3254 = vpop.f32.mrb[0].mxu0
    %3255 = vmatprep.mubr.bf16.mxu0 0
    %3256 = vmatmul.mubr.bf16.gmra.mrb[0].mxu0 %v3015
    %v3257 = vpop.f32.mrb[0].mxu0
    %v3258 = vadd.f32 %v3030, %v3257
    %v3259 = vpop.f32.mrb[0].mxu0
    %v3260 = vpop.f32.mrb[0].mxu0
    %v3261 = vadd.f32 %v3030, %v3260
    %v3262 = vpop.f32.mrb[0].mxu0
    %3263 = vdwg.mxu0
    %v3264 = vpack.c.bf16 %v3197, %v3197
    %v3265 = vpack.c.bf16 %v3201, %v3201
    %v3266 = vpack.c.bf16 %v3207, %v3207
    %v3267 = vpack.c.bf16 %v3211, %v3211
    %v3268 = vpack.c.bf16 %v3199, %v3199
    %v3269 = vpack.c.bf16 %v3203, %v3203
    %v3270 = vpack.c.bf16 %v3209, %v3209
    %v3271 = vpack.c.bf16 %v3213, %v3213
    %v3273 = vsel %vm933, %v3264, 0
    %v3276 = vsel %vm933, %v3268, 0
    %3278 = vmatprep.subr.bf16.mxu0 0
    %3279 = vmatpush1.bf16.xpose.msra.mxu0 %v3276
    %3280 = vmatprep.subr.bf16.mxu0 0
    %3281 = vmatpush1.bf16.xpose.msra.mxu0 0
    %3282 = vmatprep.subr.bf16.mxu0 0
    %3283 = vmatpush1.bf16.xpose.msra.mxu0 0
    %3284 = vmatprep.subr.bf16.mxu0 0
    %3285 = vmatpush1.bf16.xpose.msra.mxu0 0
    %3286 = vmatprep.subr.bf16.mxu0 0
    %3287 = vmatpush1.bf16.xpose.msra.mxu0 0
    %3288 = vmatprep.subr.bf16.mxu0 0
    %3289 = vmatpush1.bf16.xpose.msra.mxu0 0
    %3290 = vmatprep.subr.bf16.mxu0 0
    %3291 = vmatpush1.bf16.xpose.msra.mxu0 0
    %3292 = vmatprep.subr.bf16.mxu0 0
    %3293 = vmatpush1.bf16.xpose.msra.mxu0 0
    %3294 = vmatprep.subr.bf16.mxu0 0
    %3295 = vmatpush1.bf16.xpose.msra.mxu0 0
    %3296 = vmatprep.subr.bf16.mxu0 0
    %3297 = vmatpush1.bf16.xpose.msra.mxu0 0
    %3298 = vmatprep.subr.bf16.mxu0 0
    %3299 = vmatpush1.bf16.xpose.msra.mxu0 0
    %3300 = vmatprep.subr.bf16.mxu0 0
    %3301 = vmatpush1.bf16.xpose.msra.mxu0 0
    %3302 = vmatprep.subr.bf16.mxu0 0
    %3303 = vmatpush1.bf16.xpose.msra.mxu0 0
    %3304 = vmatprep.subr.bf16.mxu0 0
    %3305 = vmatpush1.bf16.xpose.msra.mxu0 0
    %3306 = vmatprep.subr.bf16.mxu0 0
    %3307 = vmatpush1.bf16.xpose.msra.mxu0 0
    %3308 = vmatprep.subr.bf16.mxu0 0
    %3309 = vmatpush1.bf16.xpose.msra.mxu0 0
    %3310 = vmatprep.mubr.bf16.mxu0 0
    %3311 = vmatmul.mubr.bf16.gmra.mrb[0].mxu0 %v3273
    %v3312 = vpop.f32.mrb[0].mxu0
    %v3313 = vadd.f32 0.0, %v3312
    %v3314 = vpop.f32.mrb[0].mxu0
    %v3315 = vpop.f32.mrb[0].mxu0
    %v3316 = vpop.f32.mrb[0].mxu0
    %3317 = vdwg.mxu0
    %v3319 = vsel %vm933, %v3265, 0
    %v3322 = vsel %vm933, %v3269, 0
    %3324 = vmatprep.subr.bf16.mxu0 0
    %3325 = vmatpush1.bf16.xpose.msra.mxu0 %v3322
    %3326 = vmatprep.subr.bf16.mxu0 0
    %3327 = vmatpush1.bf16.xpose.msra.mxu0 0
    %3328 = vmatprep.subr.bf16.mxu0 0
    %3329 = vmatpush1.bf16.xpose.msra.mxu0 0
    %3330 = vmatprep.subr.bf16.mxu0 0
    %3331 = vmatpush1.bf16.xpose.msra.mxu0 0
    %3332 = vmatprep.subr.bf16.mxu0 0
    %3333 = vmatpush1.bf16.xpose.msra.mxu0 0
    %3334 = vmatprep.subr.bf16.mxu0 0
    %3335 = vmatpush1.bf16.xpose.msra.mxu0 0
    %3336 = vmatprep.subr.bf16.mxu0 0
    %3337 = vmatpush1.bf16.xpose.msra.mxu0 0
    %3338 = vmatprep.subr.bf16.mxu0 0
    %3339 = vmatpush1.bf16.xpose.msra.mxu0 0
    %3340 = vmatprep.subr.bf16.mxu0 0
    %3341 = vmatpush1.bf16.xpose.msra.mxu0 0
    %3342 = vmatprep.subr.bf16.mxu0 0
    %3343 = vmatpush1.bf16.xpose.msra.mxu0 0
    %3344 = vmatprep.subr.bf16.mxu0 0
    %3345 = vmatpush1.bf16.xpose.msra.mxu0 0
    %3346 = vmatprep.subr.bf16.mxu0 0
    %3347 = vmatpush1.bf16.xpose.msra.mxu0 0
    %3348 = vmatprep.subr.bf16.mxu0 0
    %3349 = vmatpush1.bf16.xpose.msra.mxu0 0
    %3350 = vmatprep.subr.bf16.mxu0 0
    %3351 = vmatpush1.bf16.xpose.msra.mxu0 0
    %3352 = vmatprep.subr.bf16.mxu0 0
    %3353 = vmatpush1.bf16.xpose.msra.mxu0 0
    %3354 = vmatprep.subr.bf16.mxu0 0
    %3355 = vmatpush1.bf16.xpose.msra.mxu0 0
    %3356 = vmatprep.mubr.bf16.mxu0 0
    %3357 = vmatmul.mubr.bf16.gmra.mrb[0].mxu0 %v3319
    %v3358 = vpop.f32.mrb[0].mxu0
    %v3359 = vadd.f32 0.0, %v3358
    %v3360 = vpop.f32.mrb[0].mxu0
    %v3361 = vpop.f32.mrb[0].mxu0
    %v3362 = vpop.f32.mrb[0].mxu0
    %3363 = vdwg.mxu0
    %v3365 = vsel %vm933, %v3266, 0
    %v3368 = vsel %vm933, %v3270, 0
    %3370 = vmatprep.subr.bf16.mxu0 0
    %3371 = vmatpush1.bf16.xpose.msra.mxu0 %v3368
    %3372 = vmatprep.subr.bf16.mxu0 0
    %3373 = vmatpush1.bf16.xpose.msra.mxu0 0
    %3374 = vmatprep.subr.bf16.mxu0 0
    %3375 = vmatpush1.bf16.xpose.msra.mxu0 0
    %3376 = vmatprep.subr.bf16.mxu0 0
    %3377 = vmatpush1.bf16.xpose.msra.mxu0 0
    %3378 = vmatprep.subr.bf16.mxu0 0
    %3379 = vmatpush1.bf16.xpose.msra.mxu0 0
    %3380 = vmatprep.subr.bf16.mxu0 0
    %3381 = vmatpush1.bf16.xpose.msra.mxu0 0
    %3382 = vmatprep.subr.bf16.mxu0 0
    %3383 = vmatpush1.bf16.xpose.msra.mxu0 0
    %3384 = vmatprep.subr.bf16.mxu0 0
    %3385 = vmatpush1.bf16.xpose.msra.mxu0 0
    %3386 = vmatprep.subr.bf16.mxu0 0
    %3387 = vmatpush1.bf16.xpose.msra.mxu0 0
    %3388 = vmatprep.subr.bf16.mxu0 0
    %3389 = vmatpush1.bf16.xpose.msra.mxu0 0
    %3390 = vmatprep.subr.bf16.mxu0 0
    %3391 = vmatpush1.bf16.xpose.msra.mxu0 0
    %3392 = vmatprep.subr.bf16.mxu0 0
    %3393 = vmatpush1.bf16.xpose.msra.mxu0 0
    %3394 = vmatprep.subr.bf16.mxu0 0
    %3395 = vmatpush1.bf16.xpose.msra.mxu0 0
    %3396 = vmatprep.subr.bf16.mxu0 0
    %3397 = vmatpush1.bf16.xpose.msra.mxu0 0
    %3398 = vmatprep.subr.bf16.mxu0 0
    %3399 = vmatpush1.bf16.xpose.msra.mxu0 0
    %3400 = vmatprep.subr.bf16.mxu0 0
    %3401 = vmatpush1.bf16.xpose.msra.mxu0 0
    %3402 = vmatprep.mubr.bf16.mxu0 0
    %3403 = vmatmul.mubr.bf16.gmra.mrb[0].mxu0 %v3365
    %v3404 = vpop.f32.mrb[0].mxu0
    %v3405 = vadd.f32 0.0, %v3404
    %v3406 = vpop.f32.mrb[0].mxu0
    %v3407 = vpop.f32.mrb[0].mxu0
    %v3408 = vpop.f32.mrb[0].mxu0
    %3409 = vdwg.mxu0
    %v3411 = vsel %vm933, %v3267, 0
    %v3414 = vsel %vm933, %v3271, 0
    %3416 = vmatprep.subr.bf16.mxu0 0
    %3417 = vmatpush1.bf16.xpose.msra.mxu0 %v3414
    %3418 = vmatprep.subr.bf16.mxu0 0
    %3419 = vmatpush1.bf16.xpose.msra.mxu0 0
    %3420 = vmatprep.subr.bf16.mxu0 0
    %3421 = vmatpush1.bf16.xpose.msra.mxu0 0
    %3422 = vmatprep.subr.bf16.mxu0 0
    %3423 = vmatpush1.bf16.xpose.msra.mxu0 0
    %3424 = vmatprep.subr.bf16.mxu0 0
    %3425 = vmatpush1.bf16.xpose.msra.mxu0 0
    %3426 = vmatprep.subr.bf16.mxu0 0
    %3427 = vmatpush1.bf16.xpose.msra.mxu0 0
    %3428 = vmatprep.subr.bf16.mxu0 0
    %3429 = vmatpush1.bf16.xpose.msra.mxu0 0
    %3430 = vmatprep.subr.bf16.mxu0 0
    %3431 = vmatpush1.bf16.xpose.msra.mxu0 0
    %3432 = vmatprep.subr.bf16.mxu0 0
    %3433 = vmatpush1.bf16.xpose.msra.mxu0 0
    %3434 = vmatprep.subr.bf16.mxu0 0
    %3435 = vmatpush1.bf16.xpose.msra.mxu0 0
    %3436 = vmatprep.subr.bf16.mxu0 0
    %3437 = vmatpush1.bf16.xpose.msra.mxu0 0
    %3438 = vmatprep.subr.bf16.mxu0 0
    %3439 = vmatpush1.bf16.xpose.msra.mxu0 0
    %3440 = vmatprep.subr.bf16.mxu0 0
    %3441 = vmatpush1.bf16.xpose.msra.mxu0 0
    %3442 = vmatprep.subr.bf16.mxu0 0
    %3443 = vmatpush1.bf16.xpose.msra.mxu0 0
    %3444 = vmatprep.subr.bf16.mxu0 0
    %3445 = vmatpush1.bf16.xpose.msra.mxu0 0
    %3446 = vmatprep.subr.bf16.mxu0 0
    %3447 = vmatpush1.bf16.xpose.msra.mxu0 0
    %3448 = vmatprep.mubr.bf16.mxu0 0
    %3449 = vmatmul.mubr.bf16.gmra.mrb[0].mxu0 %v3411
    %v3450 = vpop.f32.mrb[0].mxu0
    %v3451 = vadd.f32 0.0, %v3450
    %v3452 = vpop.f32.mrb[0].mxu0
    %v3453 = vpop.f32.mrb[0].mxu0
    %v3454 = vpop.f32.mrb[0].mxu0
    %3455 = vdwg.mxu0
    %v3456 = vmul.f32 %v3313, 0.125
    %v3457 = vmul.f32 %v3359, 0.125
    %v3458 = vmul.f32 %v3405, 0.125
    %v3459 = vmul.f32 %v3451, 0.125
    %v3460 = vadd.f32 %v3456, %v568
    %v3461 = vadd.f32 %v3457, %v568
    %v3462 = vadd.f32 %v3458, %v568
    %v3463 = vadd.f32 %v3459, %v568
    %v3464 = vsel %vm1126, %v3460, -inf
    %3465 = vmax.xlane.f32.xlu0 %v3464
    %v3466 = vpop.xlane.xlu0 %3465
    %v3467 = vsel %vm1126, %v3461, -inf
    %3468 = vmax.xlane.f32.xlu0 %v3467
    %v3469 = vpop.xlane.xlu0 %3468
    %v3470 = vsel %vm1126, %v3462, -inf
    %3471 = vmax.xlane.f32.xlu0 %v3470
    %v3472 = vpop.xlane.xlu0 %3471
    %v3473 = vsel %vm1126, %v3463, -inf
    %3474 = vmax.xlane.f32.xlu0 %v3473
    %v3475 = vpop.xlane.xlu0 %3474
    %v3476 = vsub.f32 %v3460, %v3466
    %v3477 = vsub.f32 %v3461, %v3469
    %v3478 = vsub.f32 %v3462, %v3472
    %v3479 = vsub.f32 %v3463, %v3475
    %v3480 = vmul.f32 %v3476, 1.442695
    %v3481 = vpow.pop %v3480
    %v3482 = vmul.f32 %v3477, 1.442695
    %v3483 = vpow.pop %v3482
    %v3484 = vmul.f32 %v3478, 1.442695
    %v3485 = vpow.pop %v3484
    %v3486 = vmul.f32 %v3479, 1.442695
    %v3487 = vpow.pop %v3486
    %v3488 = vsel %vm1126, %v3481, 0.0
    %3489 = vadd.xlane.f32.xlu0 %v3488
    %v3490 = vpop.xlane.xlu0 %3489
    %v3491 = vsel %vm1126, %v3483, 0.0
    %3492 = vadd.xlane.f32.xlu0 %v3491
    %v3493 = vpop.xlane.xlu0 %3492
    %v3494 = vsel %vm1126, %v3485, 0.0
    %3495 = vadd.xlane.f32.xlu0 %v3494
    %v3496 = vpop.xlane.xlu0 %3495
    %v3497 = vsel %vm1126, %v3487, 0.0
    %3498 = vadd.xlane.f32.xlu0 %v3497
    %v3499 = vpop.xlane.xlu0 %3498
    %v3500 = vrcp.pop %v3490
    %v3501 = vrcp.pop %v3493
    %v3502 = vrcp.pop %v3496
    %v3503 = vrcp.pop %v3499
    %v3504 = vmul.f32 %v3481, %v3500
    %v3505 = vmul.f32 %v3483, %v3501
    %v3506 = vmul.f32 %v3485, %v3502
    %v3507 = vmul.f32 %v3487, %v3503
    %v3508 = vpack.c.bf16 %v3504, %v3504
    %v3509 = vpack.c.bf16 %v3505, %v3505
    %v3510 = vpack.c.bf16 %v3506, %v3506
    %v3511 = vpack.c.bf16 %v3507, %v3507
    %v3512 = vpack.c.bf16 %v3250, %v3250
    %v3513 = vpack.c.bf16 %v3253, %v3253
    %v3514 = vpack.c.bf16 %v3258, %v3258
    %v3515 = vpack.c.bf16 %v3261, %v3261
    %v3517 = vsel %vm1126, %v3508, 0
    %v3520 = vsel %vm1182, %v3512, 0
    %3522 = vmatprep.subr.bf16.mxu0 0
    %3523 = vmatpush1.bf16.msra.mxu0 %v3520
    %3524 = vmatprep.subr.bf16.mxu0 0
    %3525 = vmatpush1.bf16.msra.mxu0 0
    %3526 = vmatprep.subr.bf16.mxu0 0
    %3527 = vmatpush1.bf16.msra.mxu0 0
    %3528 = vmatprep.subr.bf16.mxu0 0
    %3529 = vmatpush1.bf16.msra.mxu0 0
    %3530 = vmatprep.subr.bf16.mxu0 0
    %3531 = vmatpush1.bf16.msra.mxu0 0
    %3532 = vmatprep.subr.bf16.mxu0 0
    %3533 = vmatpush1.bf16.msra.mxu0 0
    %3534 = vmatprep.subr.bf16.mxu0 0
    %3535 = vmatpush1.bf16.msra.mxu0 0
    %3536 = vmatprep.subr.bf16.mxu0 0
    %3537 = vmatpush1.bf16.msra.mxu0 0
    %3538 = vmatprep.subr.bf16.mxu0 0
    %3539 = vmatpush1.bf16.msra.mxu0 0
    %3540 = vmatprep.subr.bf16.mxu0 0
    %3541 = vmatpush1.bf16.msra.mxu0 0
    %3542 = vmatprep.subr.bf16.mxu0 0
    %3543 = vmatpush1.bf16.msra.mxu0 0
    %3544 = vmatprep.subr.bf16.mxu0 0
    %3545 = vmatpush1.bf16.msra.mxu0 0
    %3546 = vmatprep.subr.bf16.mxu0 0
    %3547 = vmatpush1.bf16.msra.mxu0 0
    %3548 = vmatprep.subr.bf16.mxu0 0
    %3549 = vmatpush1.bf16.msra.mxu0 0
    %3550 = vmatprep.subr.bf16.mxu0 0
    %3551 = vmatpush1.bf16.msra.mxu0 0
    %3552 = vmatprep.subr.bf16.mxu0 0
    %3553 = vmatpush1.bf16.msra.mxu0 0
    %3554 = vmatprep.mubr.bf16.mxu0 0
    %3555 = vmatmul.mubr.bf16.gmra.mrb[0].mxu0 %v3517
    %v3556 = vpop.f32.mrb[0].mxu0
    %v3557 = vadd.f32 0.0, %v3556
    %v3558 = vpop.f32.mrb[0].mxu0
    %v3559 = vpop.f32.mrb[0].mxu0
    %v3560 = vpop.f32.mrb[0].mxu0
    %3561 = vdwg.mxu0
    %v3563 = vsel %vm1126, %v3509, 0
    %v3566 = vsel %vm1182, %v3513, 0
    %3568 = vmatprep.subr.bf16.mxu0 0
    %3569 = vmatpush1.bf16.msra.mxu0 %v3566
    %3570 = vmatprep.subr.bf16.mxu0 0
    %3571 = vmatpush1.bf16.msra.mxu0 0
    %3572 = vmatprep.subr.bf16.mxu0 0
    %3573 = vmatpush1.bf16.msra.mxu0 0
    %3574 = vmatprep.subr.bf16.mxu0 0
    %3575 = vmatpush1.bf16.msra.mxu0 0
    %3576 = vmatprep.subr.bf16.mxu0 0
    %3577 = vmatpush1.bf16.msra.mxu0 0
    %3578 = vmatprep.subr.bf16.mxu0 0
    %3579 = vmatpush1.bf16.msra.mxu0 0
    %3580 = vmatprep.subr.bf16.mxu0 0
    %3581 = vmatpush1.bf16.msra.mxu0 0
    %3582 = vmatprep.subr.bf16.mxu0 0
    %3583 = vmatpush1.bf16.msra.mxu0 0
    %3584 = vmatprep.subr.bf16.mxu0 0
    %3585 = vmatpush1.bf16.msra.mxu0 0
    %3586 = vmatprep.subr.bf16.mxu0 0
    %3587 = vmatpush1.bf16.msra.mxu0 0
    %3588 = vmatprep.subr.bf16.mxu0 0
    %3589 = vmatpush1.bf16.msra.mxu0 0
    %3590 = vmatprep.subr.bf16.mxu0 0
    %3591 = vmatpush1.bf16.msra.mxu0 0
    %3592 = vmatprep.subr.bf16.mxu0 0
    %3593 = vmatpush1.bf16.msra.mxu0 0
    %3594 = vmatprep.subr.bf16.mxu0 0
    %3595 = vmatpush1.bf16.msra.mxu0 0
    %3596 = vmatprep.subr.bf16.mxu0 0
    %3597 = vmatpush1.bf16.msra.mxu0 0
    %3598 = vmatprep.subr.bf16.mxu0 0
    %3599 = vmatpush1.bf16.msra.mxu0 0
    %3600 = vmatprep.mubr.bf16.mxu0 0
    %3601 = vmatmul.mubr.bf16.gmra.mrb[0].mxu0 %v3563
    %v3602 = vpop.f32.mrb[0].mxu0
    %v3603 = vadd.f32 0.0, %v3602
    %v3604 = vpop.f32.mrb[0].mxu0
    %v3605 = vpop.f32.mrb[0].mxu0
    %v3606 = vpop.f32.mrb[0].mxu0
    %3607 = vdwg.mxu0
    %v3609 = vsel %vm1126, %v3510, 0
    %v3612 = vsel %vm1182, %v3514, 0
    %3614 = vmatprep.subr.bf16.mxu0 0
    %3615 = vmatpush1.bf16.msra.mxu0 %v3612
    %3616 = vmatprep.subr.bf16.mxu0 0
    %3617 = vmatpush1.bf16.msra.mxu0 0
    %3618 = vmatprep.subr.bf16.mxu0 0
    %3619 = vmatpush1.bf16.msra.mxu0 0
    %3620 = vmatprep.subr.bf16.mxu0 0
    %3621 = vmatpush1.bf16.msra.mxu0 0
    %3622 = vmatprep.subr.bf16.mxu0 0
    %3623 = vmatpush1.bf16.msra.mxu0 0
    %3624 = vmatprep.subr.bf16.mxu0 0
    %3625 = vmatpush1.bf16.msra.mxu0 0
    %3626 = vmatprep.subr.bf16.mxu0 0
    %3627 = vmatpush1.bf16.msra.mxu0 0
    %3628 = vmatprep.subr.bf16.mxu0 0
    %3629 = vmatpush1.bf16.msra.mxu0 0
    %3630 = vmatprep.subr.bf16.mxu0 0
    %3631 = vmatpush1.bf16.msra.mxu0 0
    %3632 = vmatprep.subr.bf16.mxu0 0
    %3633 = vmatpush1.bf16.msra.mxu0 0
    %3634 = vmatprep.subr.bf16.mxu0 0
    %3635 = vmatpush1.bf16.msra.mxu0 0
    %3636 = vmatprep.subr.bf16.mxu0 0
    %3637 = vmatpush1.bf16.msra.mxu0 0
    %3638 = vmatprep.subr.bf16.mxu0 0
    %3639 = vmatpush1.bf16.msra.mxu0 0
    %3640 = vmatprep.subr.bf16.mxu0 0
    %3641 = vmatpush1.bf16.msra.mxu0 0
    %3642 = vmatprep.subr.bf16.mxu0 0
    %3643 = vmatpush1.bf16.msra.mxu0 0
    %3644 = vmatprep.subr.bf16.mxu0 0
    %3645 = vmatpush1.bf16.msra.mxu0 0
    %3646 = vmatprep.mubr.bf16.mxu0 0
    %3647 = vmatmul.mubr.bf16.gmra.mrb[0].mxu0 %v3609
    %v3648 = vpop.f32.mrb[0].mxu0
    %v3649 = vadd.f32 0.0, %v3648
    %v3650 = vpop.f32.mrb[0].mxu0
    %v3651 = vpop.f32.mrb[0].mxu0
    %v3652 = vpop.f32.mrb[0].mxu0
    %3653 = vdwg.mxu0
    %v3655 = vsel %vm1126, %v3511, 0
    %v3658 = vsel %vm1182, %v3515, 0
    %3660 = vmatprep.subr.bf16.mxu0 0
    %3661 = vmatpush1.bf16.msra.mxu0 %v3658
    %3662 = vmatprep.subr.bf16.mxu0 0
    %3663 = vmatpush1.bf16.msra.mxu0 0
    %3664 = vmatprep.subr.bf16.mxu0 0
    %3665 = vmatpush1.bf16.msra.mxu0 0
    %3666 = vmatprep.subr.bf16.mxu0 0
    %3667 = vmatpush1.bf16.msra.mxu0 0
    %3668 = vmatprep.subr.bf16.mxu0 0
    %3669 = vmatpush1.bf16.msra.mxu0 0
    %3670 = vmatprep.subr.bf16.mxu0 0
    %3671 = vmatpush1.bf16.msra.mxu0 0
    %3672 = vmatprep.subr.bf16.mxu0 0
    %3673 = vmatpush1.bf16.msra.mxu0 0
    %3674 = vmatprep.subr.bf16.mxu0 0
    %3675 = vmatpush1.bf16.msra.mxu0 0
    %3676 = vmatprep.subr.bf16.mxu0 0
    %3677 = vmatpush1.bf16.msra.mxu0 0
    %3678 = vmatprep.subr.bf16.mxu0 0
    %3679 = vmatpush1.bf16.msra.mxu0 0
    %3680 = vmatprep.subr.bf16.mxu0 0
    %3681 = vmatpush1.bf16.msra.mxu0 0
    %3682 = vmatprep.subr.bf16.mxu0 0
    %3683 = vmatpush1.bf16.msra.mxu0 0
    %3684 = vmatprep.subr.bf16.mxu0 0
    %3685 = vmatpush1.bf16.msra.mxu0 0
    %3686 = vmatprep.subr.bf16.mxu0 0
    %3687 = vmatpush1.bf16.msra.mxu0 0
    %3688 = vmatprep.subr.bf16.mxu0 0
    %3689 = vmatpush1.bf16.msra.mxu0 0
    %3690 = vmatprep.subr.bf16.mxu0 0
    %3691 = vmatpush1.bf16.msra.mxu0 0
    %3692 = vmatprep.mubr.bf16.mxu0 0
    %3693 = vmatmul.mubr.bf16.gmra.mrb[0].mxu0 %v3655
    %v3694 = vpop.f32.mrb[0].mxu0
    %v3695 = vadd.f32 0.0, %v3694
    %v3696 = vpop.f32.mrb[0].mxu0
    %v3697 = vpop.f32.mrb[0].mxu0
    %v3698 = vpop.f32.mrb[0].mxu0
    %3699 = vdwg.mxu0
    %3701 = vrot.lane.b32.xlu0 %v3264, 64
    %v3702 = vpop.permute.xlu0 %3701
    %3704 = vrot.lane.b32.xlu0 %v3268, 64
    %v3705 = vpop.permute.xlu0 %3704
    %v3707 = vsel %vm933, %v3702, 0
    %v3710 = vsel %vm933, %v3705, 0
    %3712 = vmatprep.subr.bf16.mxu0 0
    %3713 = vmatpush1.bf16.xpose.msra.mxu0 %v3710
    %3714 = vmatprep.subr.bf16.mxu0 0
    %3715 = vmatpush1.bf16.xpose.msra.mxu0 0
    %3716 = vmatprep.subr.bf16.mxu0 0
    %3717 = vmatpush1.bf16.xpose.msra.mxu0 0
    %3718 = vmatprep.subr.bf16.mxu0 0
    %3719 = vmatpush1.bf16.xpose.msra.mxu0 0
    %3720 = vmatprep.subr.bf16.mxu0 0
    %3721 = vmatpush1.bf16.xpose.msra.mxu0 0
    %3722 = vmatprep.subr.bf16.mxu0 0
    %3723 = vmatpush1.bf16.xpose.msra.mxu0 0
    %3724 = vmatprep.subr.bf16.mxu0 0
    %3725 = vmatpush1.bf16.xpose.msra.mxu0 0
    %3726 = vmatprep.subr.bf16.mxu0 0
    %3727 = vmatpush1.bf16.xpose.msra.mxu0 0
    %3728 = vmatprep.subr.bf16.mxu0 0
    %3729 = vmatpush1.bf16.xpose.msra.mxu0 0
    %3730 = vmatprep.subr.bf16.mxu0 0
    %3731 = vmatpush1.bf16.xpose.msra.mxu0 0
    %3732 = vmatprep.subr.bf16.mxu0 0
    %3733 = vmatpush1.bf16.xpose.msra.mxu0 0
    %3734 = vmatprep.subr.bf16.mxu0 0
    %3735 = vmatpush1.bf16.xpose.msra.mxu0 0
    %3736 = vmatprep.subr.bf16.mxu0 0
    %3737 = vmatpush1.bf16.xpose.msra.mxu0 0
    %3738 = vmatprep.subr.bf16.mxu0 0
    %3739 = vmatpush1.bf16.xpose.msra.mxu0 0
    %3740 = vmatprep.subr.bf16.mxu0 0
    %3741 = vmatpush1.bf16.xpose.msra.mxu0 0
    %3742 = vmatprep.subr.bf16.mxu0 0
    %3743 = vmatpush1.bf16.xpose.msra.mxu0 0
    %3744 = vmatprep.mubr.bf16.mxu0 0
    %3745 = vmatmul.mubr.bf16.gmra.mrb[0].mxu0 %v3707
    %v3746 = vpop.f32.mrb[0].mxu0
    %v3747 = vadd.f32 0.0, %v3746
    %v3748 = vpop.f32.mrb[0].mxu0
    %v3749 = vpop.f32.mrb[0].mxu0
    %v3750 = vpop.f32.mrb[0].mxu0
    %3751 = vdwg.mxu0
    %3753 = vrot.lane.b32.xlu0 %v3265, 64
    %v3754 = vpop.permute.xlu0 %3753
    %3756 = vrot.lane.b32.xlu0 %v3269, 64
    %v3757 = vpop.permute.xlu0 %3756
    %v3759 = vsel %vm933, %v3754, 0
    %v3762 = vsel %vm933, %v3757, 0
    %3764 = vmatprep.subr.bf16.mxu0 0
    %3765 = vmatpush1.bf16.xpose.msra.mxu0 %v3762
    %3766 = vmatprep.subr.bf16.mxu0 0
    %3767 = vmatpush1.bf16.xpose.msra.mxu0 0
    %3768 = vmatprep.subr.bf16.mxu0 0
    %3769 = vmatpush1.bf16.xpose.msra.mxu0 0
    %3770 = vmatprep.subr.bf16.mxu0 0
    %3771 = vmatpush1.bf16.xpose.msra.mxu0 0
    %3772 = vmatprep.subr.bf16.mxu0 0
    %3773 = vmatpush1.bf16.xpose.msra.mxu0 0
    %3774 = vmatprep.subr.bf16.mxu0 0
    %3775 = vmatpush1.bf16.xpose.msra.mxu0 0
    %3776 = vmatprep.subr.bf16.mxu0 0
    %3777 = vmatpush1.bf16.xpose.msra.mxu0 0
    %3778 = vmatprep.subr.bf16.mxu0 0
    %3779 = vmatpush1.bf16.xpose.msra.mxu0 0
    %3780 = vmatprep.subr.bf16.mxu0 0
    %3781 = vmatpush1.bf16.xpose.msra.mxu0 0
    %3782 = vmatprep.subr.bf16.mxu0 0
    %3783 = vmatpush1.bf16.xpose.msra.mxu0 0
    %3784 = vmatprep.subr.bf16.mxu0 0
    %3785 = vmatpush1.bf16.xpose.msra.mxu0 0
    %3786 = vmatprep.subr.bf16.mxu0 0
    %3787 = vmatpush1.bf16.xpose.msra.mxu0 0
    %3788 = vmatprep.subr.bf16.mxu0 0
    %3789 = vmatpush1.bf16.xpose.msra.mxu0 0
    %3790 = vmatprep.subr.bf16.mxu0 0
    %3791 = vmatpush1.bf16.xpose.msra.mxu0 0
    %3792 = vmatprep.subr.bf16.mxu0 0
    %3793 = vmatpush1.bf16.xpose.msra.mxu0 0
    %3794 = vmatprep.subr.bf16.mxu0 0
    %3795 = vmatpush1.bf16.xpose.msra.mxu0 0
    %3796 = vmatprep.mubr.bf16.mxu0 0
    %3797 = vmatmul.mubr.bf16.gmra.mrb[0].mxu0 %v3759
    %v3798 = vpop.f32.mrb[0].mxu0
    %v3799 = vadd.f32 0.0, %v3798
    %v3800 = vpop.f32.mrb[0].mxu0
    %v3801 = vpop.f32.mrb[0].mxu0
    %v3802 = vpop.f32.mrb[0].mxu0
    %3803 = vdwg.mxu0
    %3805 = vrot.lane.b32.xlu0 %v3266, 64
    %v3806 = vpop.permute.xlu0 %3805
    %3808 = vrot.lane.b32.xlu0 %v3270, 64
    %v3809 = vpop.permute.xlu0 %3808
    %v3811 = vsel %vm933, %v3806, 0
    %v3814 = vsel %vm933, %v3809, 0
    %3816 = vmatprep.subr.bf16.mxu0 0
    %3817 = vmatpush1.bf16.xpose.msra.mxu0 %v3814
    %3818 = vmatprep.subr.bf16.mxu0 0
    %3819 = vmatpush1.bf16.xpose.msra.mxu0 0
    %3820 = vmatprep.subr.bf16.mxu0 0
    %3821 = vmatpush1.bf16.xpose.msra.mxu0 0
    %3822 = vmatprep.subr.bf16.mxu0 0
    %3823 = vmatpush1.bf16.xpose.msra.mxu0 0
    %3824 = vmatprep.subr.bf16.mxu0 0
    %3825 = vmatpush1.bf16.xpose.msra.mxu0 0
    %3826 = vmatprep.subr.bf16.mxu0 0
    %3827 = vmatpush1.bf16.xpose.msra.mxu0 0
    %3828 = vmatprep.subr.bf16.mxu0 0
    %3829 = vmatpush1.bf16.xpose.msra.mxu0 0
    %3830 = vmatprep.subr.bf16.mxu0 0
    %3831 = vmatpush1.bf16.xpose.msra.mxu0 0
    %3832 = vmatprep.subr.bf16.mxu0 0
    %3833 = vmatpush1.bf16.xpose.msra.mxu0 0
    %3834 = vmatprep.subr.bf16.mxu0 0
    %3835 = vmatpush1.bf16.xpose.msra.mxu0 0
    %3836 = vmatprep.subr.bf16.mxu0 0
    %3837 = vmatpush1.bf16.xpose.msra.mxu0 0
    %3838 = vmatprep.subr.bf16.mxu0 0
    %3839 = vmatpush1.bf16.xpose.msra.mxu0 0
    %3840 = vmatprep.subr.bf16.mxu0 0
    %3841 = vmatpush1.bf16.xpose.msra.mxu0 0
    %3842 = vmatprep.subr.bf16.mxu0 0
    %3843 = vmatpush1.bf16.xpose.msra.mxu0 0
    %3844 = vmatprep.subr.bf16.mxu0 0
    %3845 = vmatpush1.bf16.xpose.msra.mxu0 0
    %3846 = vmatprep.subr.bf16.mxu0 0
    %3847 = vmatpush1.bf16.xpose.msra.mxu0 0
    %3848 = vmatprep.mubr.bf16.mxu0 0
    %3849 = vmatmul.mubr.bf16.gmra.mrb[0].mxu0 %v3811
    %v3850 = vpop.f32.mrb[0].mxu0
    %v3851 = vadd.f32 0.0, %v3850
    %v3852 = vpop.f32.mrb[0].mxu0
    %v3853 = vpop.f32.mrb[0].mxu0
    %v3854 = vpop.f32.mrb[0].mxu0
    %3855 = vdwg.mxu0
    %3857 = vrot.lane.b32.xlu0 %v3267, 64
    %v3858 = vpop.permute.xlu0 %3857
    %3860 = vrot.lane.b32.xlu0 %v3271, 64
    %v3861 = vpop.permute.xlu0 %3860
    %v3863 = vsel %vm933, %v3858, 0
    %v3866 = vsel %vm933, %v3861, 0
    %3868 = vmatprep.subr.bf16.mxu0 0
    %3869 = vmatpush1.bf16.xpose.msra.mxu0 %v3866
    %3870 = vmatprep.subr.bf16.mxu0 0
    %3871 = vmatpush1.bf16.xpose.msra.mxu0 0
    %3872 = vmatprep.subr.bf16.mxu0 0
    %3873 = vmatpush1.bf16.xpose.msra.mxu0 0
    %3874 = vmatprep.subr.bf16.mxu0 0
    %3875 = vmatpush1.bf16.xpose.msra.mxu0 0
    %3876 = vmatprep.subr.bf16.mxu0 0
    %3877 = vmatpush1.bf16.xpose.msra.mxu0 0
    %3878 = vmatprep.subr.bf16.mxu0 0
    %3879 = vmatpush1.bf16.xpose.msra.mxu0 0
    %3880 = vmatprep.subr.bf16.mxu0 0
    %3881 = vmatpush1.bf16.xpose.msra.mxu0 0
    %3882 = vmatprep.subr.bf16.mxu0 0
    %3883 = vmatpush1.bf16.xpose.msra.mxu0 0
    %3884 = vmatprep.subr.bf16.mxu0 0
    %3885 = vmatpush1.bf16.xpose.msra.mxu0 0
    %3886 = vmatprep.subr.bf16.mxu0 0
    %3887 = vmatpush1.bf16.xpose.msra.mxu0 0
    %3888 = vmatprep.subr.bf16.mxu0 0
    %3889 = vmatpush1.bf16.xpose.msra.mxu0 0
    %3890 = vmatprep.subr.bf16.mxu0 0
    %3891 = vmatpush1.bf16.xpose.msra.mxu0 0
    %3892 = vmatprep.subr.bf16.mxu0 0
    %3893 = vmatpush1.bf16.xpose.msra.mxu0 0
    %3894 = vmatprep.subr.bf16.mxu0 0
    %3895 = vmatpush1.bf16.xpose.msra.mxu0 0
    %3896 = vmatprep.subr.bf16.mxu0 0
    %3897 = vmatpush1.bf16.xpose.msra.mxu0 0
    %3898 = vmatprep.subr.bf16.mxu0 0
    %3899 = vmatpush1.bf16.xpose.msra.mxu0 0
    %3900 = vmatprep.mubr.bf16.mxu0 0
    %3901 = vmatmul.mubr.bf16.gmra.mrb[0].mxu0 %v3863
    %v3902 = vpop.f32.mrb[0].mxu0
    %v3903 = vadd.f32 0.0, %v3902
    %v3904 = vpop.f32.mrb[0].mxu0
    %v3905 = vpop.f32.mrb[0].mxu0
    %v3906 = vpop.f32.mrb[0].mxu0
    %3907 = vdwg.mxu0
    %v3908 = vmul.f32 %v3747, 0.125
    %v3909 = vmul.f32 %v3799, 0.125
    %v3910 = vmul.f32 %v3851, 0.125
    %v3911 = vmul.f32 %v3903, 0.125
    %v3912 = vadd.f32 %v3908, %v568
    %v3913 = vadd.f32 %v3909, %v568
    %v3914 = vadd.f32 %v3910, %v568
    %v3915 = vadd.f32 %v3911, %v568
    %v3916 = vsel %vm1126, %v3912, -inf
    %3917 = vmax.xlane.f32.xlu0 %v3916
    %v3918 = vpop.xlane.xlu0 %3917
    %v3919 = vsel %vm1126, %v3913, -inf
    %3920 = vmax.xlane.f32.xlu0 %v3919
    %v3921 = vpop.xlane.xlu0 %3920
    %v3922 = vsel %vm1126, %v3914, -inf
    %3923 = vmax.xlane.f32.xlu0 %v3922
    %v3924 = vpop.xlane.xlu0 %3923
    %v3925 = vsel %vm1126, %v3915, -inf
    %3926 = vmax.xlane.f32.xlu0 %v3925
    %v3927 = vpop.xlane.xlu0 %3926
    %v3928 = vsub.f32 %v3912, %v3918
    %v3929 = vsub.f32 %v3913, %v3921
    %v3930 = vsub.f32 %v3914, %v3924
    %v3931 = vsub.f32 %v3915, %v3927
    %v3932 = vmul.f32 %v3928, 1.442695
    %v3933 = vpow.pop %v3932
    %v3934 = vmul.f32 %v3929, 1.442695
    %v3935 = vpow.pop %v3934
    %v3936 = vmul.f32 %v3930, 1.442695
    %v3937 = vpow.pop %v3936
    %v3938 = vmul.f32 %v3931, 1.442695
    %v3939 = vpow.pop %v3938
    %v3940 = vsel %vm1126, %v3933, 0.0
    %3941 = vadd.xlane.f32.xlu0 %v3940
    %v3942 = vpop.xlane.xlu0 %3941
    %v3943 = vsel %vm1126, %v3935, 0.0
    %3944 = vadd.xlane.f32.xlu0 %v3943
    %v3945 = vpop.xlane.xlu0 %3944
    %v3946 = vsel %vm1126, %v3937, 0.0
    %3947 = vadd.xlane.f32.xlu0 %v3946
    %v3948 = vpop.xlane.xlu0 %3947
    %v3949 = vsel %vm1126, %v3939, 0.0
    %3950 = vadd.xlane.f32.xlu0 %v3949
    %v3951 = vpop.xlane.xlu0 %3950
    %v3952 = vrcp.pop %v3942
    %v3953 = vrcp.pop %v3945
    %v3954 = vrcp.pop %v3948
    %v3955 = vrcp.pop %v3951
    %v3956 = vmul.f32 %v3933, %v3952
    %v3957 = vmul.f32 %v3935, %v3953
    %v3958 = vmul.f32 %v3937, %v3954
    %v3959 = vmul.f32 %v3939, %v3955
    %v3960 = vpack.c.bf16 %v3956, %v3956
    %v3961 = vpack.c.bf16 %v3957, %v3957
    %v3962 = vpack.c.bf16 %v3958, %v3958
    %v3963 = vpack.c.bf16 %v3959, %v3959
    %3965 = vrot.lane.b32.xlu0 %v3512, 64
    %v3966 = vpop.permute.xlu0 %3965
    %v3968 = vsel %vm1126, %v3960, 0
    %v3971 = vsel %vm1182, %v3966, 0
    %3973 = vmatprep.subr.bf16.mxu0 0
    %3974 = vmatpush1.bf16.msra.mxu0 %v3971
    %3975 = vmatprep.subr.bf16.mxu0 0
    %3976 = vmatpush1.bf16.msra.mxu0 0
    %3977 = vmatprep.subr.bf16.mxu0 0
    %3978 = vmatpush1.bf16.msra.mxu0 0
    %3979 = vmatprep.subr.bf16.mxu0 0
    %3980 = vmatpush1.bf16.msra.mxu0 0
    %3981 = vmatprep.subr.bf16.mxu0 0
    %3982 = vmatpush1.bf16.msra.mxu0 0
    %3983 = vmatprep.subr.bf16.mxu0 0
    %3984 = vmatpush1.bf16.msra.mxu0 0
    %3985 = vmatprep.subr.bf16.mxu0 0
    %3986 = vmatpush1.bf16.msra.mxu0 0
    %3987 = vmatprep.subr.bf16.mxu0 0
    %3988 = vmatpush1.bf16.msra.mxu0 0
    %3989 = vmatprep.subr.bf16.mxu0 0
    %3990 = vmatpush1.bf16.msra.mxu0 0
    %3991 = vmatprep.subr.bf16.mxu0 0
    %3992 = vmatpush1.bf16.msra.mxu0 0
    %3993 = vmatprep.subr.bf16.mxu0 0
    %3994 = vmatpush1.bf16.msra.mxu0 0
    %3995 = vmatprep.subr.bf16.mxu0 0
    %3996 = vmatpush1.bf16.msra.mxu0 0
    %3997 = vmatprep.subr.bf16.mxu0 0
    %3998 = vmatpush1.bf16.msra.mxu0 0
    %3999 = vmatprep.subr.bf16.mxu0 0
    %4000 = vmatpush1.bf16.msra.mxu0 0
    %4001 = vmatprep.subr.bf16.mxu0 0
    %4002 = vmatpush1.bf16.msra.mxu0 0
    %4003 = vmatprep.subr.bf16.mxu0 0
    %4004 = vmatpush1.bf16.msra.mxu0 0
    %4005 = vmatprep.mubr.bf16.mxu0 0
    %4006 = vmatmul.mubr.bf16.gmra.mrb[0].mxu0 %v3968
    %v4007 = vpop.f32.mrb[0].mxu0
    %v4008 = vadd.f32 0.0, %v4007
    %v4009 = vpop.f32.mrb[0].mxu0
    %v4010 = vpop.f32.mrb[0].mxu0
    %v4011 = vpop.f32.mrb[0].mxu0
    %4012 = vdwg.mxu0
    %4014 = vrot.lane.b32.xlu0 %v3513, 64
    %v4015 = vpop.permute.xlu0 %4014
    %v4017 = vsel %vm1126, %v3961, 0
    %v4020 = vsel %vm1182, %v4015, 0
    %4022 = vmatprep.subr.bf16.mxu0 0
    %4023 = vmatpush1.bf16.msra.mxu0 %v4020
    %4024 = vmatprep.subr.bf16.mxu0 0
    %4025 = vmatpush1.bf16.msra.mxu0 0
    %4026 = vmatprep.subr.bf16.mxu0 0
    %4027 = vmatpush1.bf16.msra.mxu0 0
    %4028 = vmatprep.subr.bf16.mxu0 0
    %4029 = vmatpush1.bf16.msra.mxu0 0
    %4030 = vmatprep.subr.bf16.mxu0 0
    %4031 = vmatpush1.bf16.msra.mxu0 0
    %4032 = vmatprep.subr.bf16.mxu0 0
    %4033 = vmatpush1.bf16.msra.mxu0 0
    %4034 = vmatprep.subr.bf16.mxu0 0
    %4035 = vmatpush1.bf16.msra.mxu0 0
    %4036 = vmatprep.subr.bf16.mxu0 0
    %4037 = vmatpush1.bf16.msra.mxu0 0
    %4038 = vmatprep.subr.bf16.mxu0 0
    %4039 = vmatpush1.bf16.msra.mxu0 0
    %4040 = vmatprep.subr.bf16.mxu0 0
    %4041 = vmatpush1.bf16.msra.mxu0 0
    %4042 = vmatprep.subr.bf16.mxu0 0
    %4043 = vmatpush1.bf16.msra.mxu0 0
    %4044 = vmatprep.subr.bf16.mxu0 0
    %4045 = vmatpush1.bf16.msra.mxu0 0
    %4046 = vmatprep.subr.bf16.mxu0 0
    %4047 = vmatpush1.bf16.msra.mxu0 0
    %4048 = vmatprep.subr.bf16.mxu0 0
    %4049 = vmatpush1.bf16.msra.mxu0 0
    %4050 = vmatprep.subr.bf16.mxu0 0
    %4051 = vmatpush1.bf16.msra.mxu0 0
    %4052 = vmatprep.subr.bf16.mxu0 0
    %4053 = vmatpush1.bf16.msra.mxu0 0
    %4054 = vmatprep.mubr.bf16.mxu0 0
    %4055 = vmatmul.mubr.bf16.gmra.mrb[0].mxu0 %v4017
    %v4056 = vpop.f32.mrb[0].mxu0
    %v4057 = vadd.f32 0.0, %v4056
    %v4058 = vpop.f32.mrb[0].mxu0
    %v4059 = vpop.f32.mrb[0].mxu0
    %v4060 = vpop.f32.mrb[0].mxu0
    %4061 = vdwg.mxu0
    %4063 = vrot.lane.b32.xlu0 %v3514, 64
    %v4064 = vpop.permute.xlu0 %4063
    %v4066 = vsel %vm1126, %v3962, 0
    %v4069 = vsel %vm1182, %v4064, 0
    %4071 = vmatprep.subr.bf16.mxu0 0
    %4072 = vmatpush1.bf16.msra.mxu0 %v4069
    %4073 = vmatprep.subr.bf16.mxu0 0
    %4074 = vmatpush1.bf16.msra.mxu0 0
    %4075 = vmatprep.subr.bf16.mxu0 0
    %4076 = vmatpush1.bf16.msra.mxu0 0
    %4077 = vmatprep.subr.bf16.mxu0 0
    %4078 = vmatpush1.bf16.msra.mxu0 0
    %4079 = vmatprep.subr.bf16.mxu0 0
    %4080 = vmatpush1.bf16.msra.mxu0 0
    %4081 = vmatprep.subr.bf16.mxu0 0
    %4082 = vmatpush1.bf16.msra.mxu0 0
    %4083 = vmatprep.subr.bf16.mxu0 0
    %4084 = vmatpush1.bf16.msra.mxu0 0
    %4085 = vmatprep.subr.bf16.mxu0 0
    %4086 = vmatpush1.bf16.msra.mxu0 0
    %4087 = vmatprep.subr.bf16.mxu0 0
    %4088 = vmatpush1.bf16.msra.mxu0 0
    %4089 = vmatprep.subr.bf16.mxu0 0
    %4090 = vmatpush1.bf16.msra.mxu0 0
    %4091 = vmatprep.subr.bf16.mxu0 0
    %4092 = vmatpush1.bf16.msra.mxu0 0
    %4093 = vmatprep.subr.bf16.mxu0 0
    %4094 = vmatpush1.bf16.msra.mxu0 0
    %4095 = vmatprep.subr.bf16.mxu0 0
    %4096 = vmatpush1.bf16.msra.mxu0 0
    %4097 = vmatprep.subr.bf16.mxu0 0
    %4098 = vmatpush1.bf16.msra.mxu0 0
    %4099 = vmatprep.subr.bf16.mxu0 0
    %4100 = vmatpush1.bf16.msra.mxu0 0
    %4101 = vmatprep.subr.bf16.mxu0 0
    %4102 = vmatpush1.bf16.msra.mxu0 0
    %4103 = vmatprep.mubr.bf16.mxu0 0
    %4104 = vmatmul.mubr.bf16.gmra.mrb[0].mxu0 %v4066
    %v4105 = vpop.f32.mrb[0].mxu0
    %v4106 = vadd.f32 0.0, %v4105
    %v4107 = vpop.f32.mrb[0].mxu0
    %v4108 = vpop.f32.mrb[0].mxu0
    %v4109 = vpop.f32.mrb[0].mxu0
    %4110 = vdwg.mxu0
    %4112 = vrot.lane.b32.xlu0 %v3515, 64
    %v4113 = vpop.permute.xlu0 %4112
    %v4115 = vsel %vm1126, %v3963, 0
    %v4118 = vsel %vm1182, %v4113, 0
    %4120 = vmatprep.subr.bf16.mxu0 0
    %4121 = vmatpush1.bf16.msra.mxu0 %v4118
    %4122 = vmatprep.subr.bf16.mxu0 0
    %4123 = vmatpush1.bf16.msra.mxu0 0
    %4124 = vmatprep.subr.bf16.mxu0 0
    %4125 = vmatpush1.bf16.msra.mxu0 0
    %4126 = vmatprep.subr.bf16.mxu0 0
    %4127 = vmatpush1.bf16.msra.mxu0 0
    %4128 = vmatprep.subr.bf16.mxu0 0
    %4129 = vmatpush1.bf16.msra.mxu0 0
    %4130 = vmatprep.subr.bf16.mxu0 0
    %4131 = vmatpush1.bf16.msra.mxu0 0
    %4132 = vmatprep.subr.bf16.mxu0 0
    %4133 = vmatpush1.bf16.msra.mxu0 0
    %4134 = vmatprep.subr.bf16.mxu0 0
    %4135 = vmatpush1.bf16.msra.mxu0 0
    %4136 = vmatprep.subr.bf16.mxu0 0
    %4137 = vmatpush1.bf16.msra.mxu0 0
    %4138 = vmatprep.subr.bf16.mxu0 0
    %4139 = vmatpush1.bf16.msra.mxu0 0
    %4140 = vmatprep.subr.bf16.mxu0 0
    %4141 = vmatpush1.bf16.msra.mxu0 0
    %4142 = vmatprep.subr.bf16.mxu0 0
    %4143 = vmatpush1.bf16.msra.mxu0 0
    %4144 = vmatprep.subr.bf16.mxu0 0
    %4145 = vmatpush1.bf16.msra.mxu0 0
    %4146 = vmatprep.subr.bf16.mxu0 0
    %4147 = vmatpush1.bf16.msra.mxu0 0
    %4148 = vmatprep.subr.bf16.mxu0 0
    %4149 = vmatpush1.bf16.msra.mxu0 0
    %4150 = vmatprep.subr.bf16.mxu0 0
    %4151 = vmatpush1.bf16.msra.mxu0 0
    %4152 = vmatprep.mubr.bf16.mxu0 0
    %4153 = vmatmul.mubr.bf16.gmra.mrb[0].mxu0 %v4115
    %v4154 = vpop.f32.mrb[0].mxu0
    %v4155 = vadd.f32 0.0, %v4154
    %v4156 = vpop.f32.mrb[0].mxu0
    %v4157 = vpop.f32.mrb[0].mxu0
    %v4158 = vpop.f32.mrb[0].mxu0
    %4159 = vdwg.mxu0
    %4164 = vrot.lane.b32.xlu0 %v4008, 64
    %v4165 = vpop.permute.xlu0 %4164
    %4166 = vrot.lane.b32.xlu0 %v4057, 64
    %v4167 = vpop.permute.xlu0 %4166
    %4168 = vrot.lane.b32.xlu0 %v4106, 64
    %v4169 = vpop.permute.xlu0 %4168
    %4170 = vrot.lane.b32.xlu0 %v4155, 64
    %v4171 = vpop.permute.xlu0 %4170
    %v4176 = vsel %vm933, %v3557, %v4165
    %v4177 = vsel %vm933, %v3603, %v4167
    %v4178 = vsel %vm933, %v3649, %v4169
    %v4179 = vsel %vm933, %v3695, %v4171
    %s4180 = scalar_lea.vmem %s8, 64
    %v4181 = vld [vmem:[%s4180] sm:$0xf]
    %v4182 = vld [vmem:[%s4180 + $0x4] sm:$0xf]
    %v4183 = vld [vmem:[%s4180 + $0x8] sm:$0xf]
    %v4184 = vld [vmem:[%s4180 + $0xc] sm:$0xf]
    %v4185 = vld [vmem:[%s4180 + $0x10] sm:$0xf]
    %v4186 = vld [vmem:[%s4180 + $0x14] sm:$0xf]
    %v4187 = vld [vmem:[%s4180 + $0x18] sm:$0xf]
    %v4188 = vld [vmem:[%s4180 + $0x1c] sm:$0xf]
    %v4189 = vld [vmem:[%s4180 + $0x20] sm:$0xf]
    %v4190 = vld [vmem:[%s4180 + $0x24] sm:$0xf]
    %v4191 = vld [vmem:[%s4180 + $0x28] sm:$0xf]
    %v4192 = vld [vmem:[%s4180 + $0x2c] sm:$0xf]
    %v4193 = vld [vmem:[%s4180 + $0x30] sm:$0xf]
    %v4194 = vld [vmem:[%s4180 + $0x34] sm:$0xf]
    %v4195 = vld [vmem:[%s4180 + $0x38] sm:$0xf]
    %v4196 = vld [vmem:[%s4180 + $0x3c] sm:$0xf]
    %v4197 = vpack.c.bf16 %v4177, %v4176
    %v4198 = vpack.c.bf16 %v4179, %v4178
    %s4199 = scalar_lea.vmem %s9, 1
    %v4200 = vld [vmem:[%s4199] sm:$0x1]
    %v4202 = vlaneseq
    %v4203 = vshrl.u32 %v4202, 7
    %v4204 = vsub.s32 0, %v4203
    %v4205 = vrot.slane %v4200, %v4204
    %v4223 = vunpack.c.l.b16 %v4181
    %v4224 = vunpack.c.l.b16 %v4182
    %v4225 = vunpack.c.l.b16 %v4183
    %v4226 = vunpack.c.l.b16 %v4184
    %v4227 = vunpack.c.l.b16 %v4185
    %v4228 = vunpack.c.l.b16 %v4186
    %v4229 = vunpack.c.l.b16 %v4187
    %v4230 = vunpack.c.l.b16 %v4188
    %v4231 = vunpack.c.l.b16 %v4189
    %v4232 = vunpack.c.l.b16 %v4190
    %v4233 = vunpack.c.l.b16 %v4191
    %v4234 = vunpack.c.l.b16 %v4192
    %v4235 = vunpack.c.l.b16 %v4193
    %v4236 = vunpack.c.l.b16 %v4194
    %v4237 = vunpack.c.l.b16 %v4195
    %v4238 = vunpack.c.l.b16 %v4196
    %v4239 = vpack.c.b16 %v4224, %v4223
    %v4240 = vpack.c.b16 %v4226, %v4225
    %v4241 = vpack.c.b16 %v4228, %v4227
    %v4242 = vpack.c.b16 %v4230, %v4229
    %v4243 = vpack.c.b16 %v4232, %v4231
    %v4244 = vpack.c.b16 %v4234, %v4233
    %v4245 = vpack.c.b16 %v4236, %v4235
    %v4246 = vpack.c.b16 %v4238, %v4237
    %4255 = vmatprep.subr.bf16.mxu0 0
    %4256 = vmatpush1.bf16.msra.mxu0 %v4239
    %4257 = vmatprep.subr.bf16.mxu0 0
    %4258 = vmatpush1.bf16.msra.mxu0 %v4240
    %4259 = vmatprep.subr.bf16.mxu0 0
    %4260 = vmatpush1.bf16.msra.mxu0 %v4241
    %4261 = vmatprep.subr.bf16.mxu0 0
    %4262 = vmatpush1.bf16.msra.mxu0 %v4242
    %4263 = vmatprep.subr.bf16.mxu0 0
    %4264 = vmatpush1.bf16.msra.mxu0 %v4243
    %4265 = vmatprep.subr.bf16.mxu0 0
    %4266 = vmatpush1.bf16.msra.mxu0 %v4244
    %4267 = vmatprep.subr.bf16.mxu0 0
    %4268 = vmatpush1.bf16.msra.mxu0 %v4245
    %4269 = vmatprep.subr.bf16.mxu0 0
    %4270 = vmatpush1.bf16.msra.mxu0 %v4246
    %4271 = vmatprep.subr.bf16.mxu0 0
    %4272 = vmatpush1.bf16.msra.mxu0 0
    %4273 = vmatprep.subr.bf16.mxu0 0
    %4274 = vmatpush1.bf16.msra.mxu0 0
    %4275 = vmatprep.subr.bf16.mxu0 0
    %4276 = vmatpush1.bf16.msra.mxu0 0
    %4277 = vmatprep.subr.bf16.mxu0 0
    %4278 = vmatpush1.bf16.msra.mxu0 0
    %4279 = vmatprep.subr.bf16.mxu0 0
    %4280 = vmatpush1.bf16.msra.mxu0 0
    %4281 = vmatprep.subr.bf16.mxu0 0
    %4282 = vmatpush1.bf16.msra.mxu0 0
    %4283 = vmatprep.subr.bf16.mxu0 0
    %4284 = vmatpush1.bf16.msra.mxu0 0
    %4285 = vmatprep.subr.bf16.mxu0 0
    %4286 = vmatpush1.bf16.msra.mxu0 0
    %4287 = vmatprep.mubr.bf16.mxu0 0
    %4288 = vmatmul.mubr.bf16.gmra.mrb[0].mxu0 %v4197
    %v4289 = vpop.f32.mrb[0].mxu0
    %v4290 = vadd.f32 %v4205, %v4289
    %v4291 = vpop.f32.mrb[0].mxu0
    %v4292 = vpop.f32.mrb[0].mxu0
    %v4293 = vadd.f32 %v4205, %v4292
    %v4294 = vpop.f32.mrb[0].mxu0
    %4295 = vmatprep.mubr.bf16.mxu0 0
    %4296 = vmatmul.mubr.bf16.gmra.mrb[0].mxu0 %v4198
    %v4297 = vpop.f32.mrb[0].mxu0
    %v4298 = vadd.f32 %v4205, %v4297
    %v4299 = vpop.f32.mrb[0].mxu0
    %v4300 = vpop.f32.mrb[0].mxu0
    %v4301 = vadd.f32 %v4205, %v4300
    %v4302 = vpop.f32.mrb[0].mxu0
    %4303 = vdwg.mxu0
    %s4304 = scalar_lea.vmem %s10, 1
    %v4305 = vld [vmem:[%s4304] sm:$0x1]
    %v4307 = vlaneseq
    %v4308 = vshrl.u32 %v4307, 7
    %v4309 = vsub.s32 0, %v4308
    %v4310 = vrot.slane %v4305, %v4309
    %v4312 = vmul.f32 %v4310, %v4290
    %v4313 = vmul.f32 %v4310, %v4293
    %v4314 = vmul.f32 %v4310, %v4298
    %v4315 = vmul.f32 %v4310, %v4301
    %v4316 = vadd.f32 %v2901, %v4312
    %v4317 = vadd.f32 %v2902, %v4313
    %v4318 = vadd.f32 %v2903, %v4314
    %v4319 = vadd.f32 %v2904, %v4315
    %s4320 = scalar_lea.vmem %s11, 1
    %v4321 = vld [vmem:[%s4320] sm:$0x1]
    %s4322 = scalar_lea.vmem %s12, 1
    %v4323 = vld [vmem:[%s4322] sm:$0x1]
    %4324 = vadd.xlane.f32.xlu0 %v4316
    %v4325 = vpop.xlane.xlu0 %4324
    %4326 = vadd.xlane.f32.xlu0 %v4317
    %v4327 = vpop.xlane.xlu0 %4326
    %4328 = vadd.xlane.f32.xlu0 %v4318
    %v4329 = vpop.xlane.xlu0 %4328
    %4330 = vadd.xlane.f32.xlu0 %v4319
    %v4331 = vpop.xlane.xlu0 %4330
    %v4332 = vmul.f32 %v4325, %v579
    %v4333 = vmul.f32 %v4327, %v579
    %v4334 = vmul.f32 %v4329, %v579
    %v4335 = vmul.f32 %v4331, %v579
    %v4336 = vmul.f32 %v4316, %v4316
    %v4337 = vmul.f32 %v4317, %v4317
    %v4338 = vmul.f32 %v4318, %v4318
    %v4339 = vmul.f32 %v4319, %v4319
    %4340 = vadd.xlane.f32.xlu0 %v4336
    %v4341 = vpop.xlane.xlu0 %4340
    %4342 = vadd.xlane.f32.xlu0 %v4337
    %v4343 = vpop.xlane.xlu0 %4342
    %4344 = vadd.xlane.f32.xlu0 %v4338
    %v4345 = vpop.xlane.xlu0 %4344
    %4346 = vadd.xlane.f32.xlu0 %v4339
    %v4347 = vpop.xlane.xlu0 %4346
    %v4348 = vmul.f32 %v4341, %v579
    %v4349 = vmul.f32 %v4343, %v579
    %v4350 = vmul.f32 %v4345, %v579
    %v4351 = vmul.f32 %v4347, %v579
    %v4352 = vmul.f32 %v4332, %v4332
    %v4353 = vmul.f32 %v4333, %v4333
    %v4354 = vmul.f32 %v4334, %v4334
    %v4355 = vmul.f32 %v4335, %v4335
    %v4356 = vsub.f32 %v4348, %v4352
    %v4357 = vsub.f32 %v4349, %v4353
    %v4358 = vsub.f32 %v4350, %v4354
    %v4359 = vsub.f32 %v4351, %v4355
    %v4360 = vsub.f32 %v4316, %v4332
    %v4361 = vsub.f32 %v4317, %v4333
    %v4362 = vsub.f32 %v4318, %v4334
    %v4363 = vsub.f32 %v4319, %v4335
    %v4364 = vadd.f32 %v4356, 1e-06
    %v4365 = vadd.f32 %v4357, 1e-06
    %v4366 = vadd.f32 %v4358, 1e-06
    %v4367 = vadd.f32 %v4359, 1e-06
    %v4368 = vrsqrt.pop %v4364
    %v4369 = vrsqrt.pop %v4365
    %v4370 = vrsqrt.pop %v4366
    %v4371 = vrsqrt.pop %v4367
    %v4372 = vmul.f32 %v4360, %v4368
    %v4373 = vmul.f32 %v4361, %v4369
    %v4374 = vmul.f32 %v4362, %v4370
    %v4375 = vmul.f32 %v4363, %v4371
    %v4377 = vlaneseq
    %v4378 = vshrl.u32 %v4377, 7
    %v4379 = vsub.s32 0, %v4378
    %v4380 = vrot.slane %v4321, %v4379
    %v4382 = vmul.f32 %v4372, %v4380
    %v4383 = vmul.f32 %v4373, %v4380
    %v4384 = vmul.f32 %v4374, %v4380
    %v4385 = vmul.f32 %v4375, %v4380
    %v4387 = vlaneseq
    %v4388 = vshrl.u32 %v4387, 7
    %v4389 = vsub.s32 0, %v4388
    %v4390 = vrot.slane %v4323, %v4389
    %v4392 = vadd.f32 %v4382, %v4390
    %v4393 = vadd.f32 %v4383, %v4390
    %v4394 = vadd.f32 %v4384, %v4390
    %v4395 = vadd.f32 %v4385, %v4390
    %s4396 = scalar_lea.vmem %s13, 256
    %v4397 = vld [vmem:[%s4396] sm:$0xff]
    %v4398 = vld [vmem:[%s4396 + $0x8] sm:$0xff]
    %v4399 = vld [vmem:[%s4396 + $0x10] sm:$0xff]
    %v4400 = vld [vmem:[%s4396 + $0x18] sm:$0xff]
    %v4401 = vld [vmem:[%s4396 + $0x20] sm:$0xff]
    %v4402 = vld [vmem:[%s4396 + $0x28] sm:$0xff]
    %v4403 = vld [vmem:[%s4396 + $0x30] sm:$0xff]
    %v4404 = vld [vmem:[%s4396 + $0x38] sm:$0xff]
    %v4405 = vld [vmem:[%s4396 + $0x40] sm:$0xff]
    %v4406 = vld [vmem:[%s4396 + $0x48] sm:$0xff]
    %v4407 = vld [vmem:[%s4396 + $0x50] sm:$0xff]
    %v4408 = vld [vmem:[%s4396 + $0x58] sm:$0xff]
    %v4409 = vld [vmem:[%s4396 + $0x60] sm:$0xff]
    %v4410 = vld [vmem:[%s4396 + $0x68] sm:$0xff]
    %v4411 = vld [vmem:[%s4396 + $0x70] sm:$0xff]
    %v4412 = vld [vmem:[%s4396 + $0x78] sm:$0xff]
    %v4413 = vld [vmem:[%s4396 + $0x80] sm:$0xff]
    %v4414 = vld [vmem:[%s4396 + $0x88] sm:$0xff]
    %v4415 = vld [vmem:[%s4396 + $0x90] sm:$0xff]
    %v4416 = vld [vmem:[%s4396 + $0x98] sm:$0xff]
    %v4417 = vld [vmem:[%s4396 + $0xa0] sm:$0xff]
    %v4418 = vld [vmem:[%s4396 + $0xa8] sm:$0xff]
    %v4419 = vld [vmem:[%s4396 + $0xb0] sm:$0xff]
    %v4420 = vld [vmem:[%s4396 + $0xb8] sm:$0xff]
    %v4421 = vld [vmem:[%s4396 + $0xc0] sm:$0xff]
    %v4422 = vld [vmem:[%s4396 + $0xc8] sm:$0xff]
    %v4423 = vld [vmem:[%s4396 + $0xd0] sm:$0xff]
    %v4424 = vld [vmem:[%s4396 + $0xd8] sm:$0xff]
    %v4425 = vld [vmem:[%s4396 + $0xe0] sm:$0xff]
    %v4426 = vld [vmem:[%s4396 + $0xe8] sm:$0xff]
    %v4427 = vld [vmem:[%s4396 + $0xf0] sm:$0xff]
    %v4428 = vld [vmem:[%s4396 + $0xf8] sm:$0xff]
    %v4429 = vpack.c.bf16 %v4393, %v4392
    %v4430 = vpack.c.bf16 %v4395, %v4394
    %s4431 = scalar_lea.vmem %s14, 4
    %v4432 = vld [vmem:[%s4431] sm:$0xf]
    %v4434 = vlaneseq
    %v4435 = vshrl.u32 %v4434, 7
    %v4436 = vsub.s32 0, %v4435
    %v4437 = vrot.slane %v4432, %v4436
    %v4438 = vlaneseq
    %v4439 = vshrl.u32 %v4438, 7
    %v4440 = vsub.s32 1, %v4439
    %v4441 = vrot.slane %v4432, %v4440
    %v4442 = vlaneseq
    %v4443 = vshrl.u32 %v4442, 7
    %v4444 = vsub.s32 2, %v4443
    %v4445 = vrot.slane %v4432, %v4444
    %v4446 = vlaneseq
    %v4447 = vshrl.u32 %v4446, 7
    %v4448 = vsub.s32 3, %v4447
    %v4449 = vrot.slane %v4432, %v4448
    %v4486 = vunpack.c.l.b16 %v4397
    %v4487 = vunpack.c.h.b16 %v4397
    %v4488 = vunpack.c.l.b16 %v4398
    %v4489 = vunpack.c.h.b16 %v4398
    %v4490 = vunpack.c.l.b16 %v4399
    %v4491 = vunpack.c.h.b16 %v4399
    %v4492 = vunpack.c.l.b16 %v4400
    %v4493 = vunpack.c.h.b16 %v4400
    %v4494 = vunpack.c.l.b16 %v4401
    %v4495 = vunpack.c.h.b16 %v4401
    %v4496 = vunpack.c.l.b16 %v4402
    %v4497 = vunpack.c.h.b16 %v4402
    %v4498 = vunpack.c.l.b16 %v4403
    %v4499 = vunpack.c.h.b16 %v4403
    %v4500 = vunpack.c.l.b16 %v4404
    %v4501 = vunpack.c.h.b16 %v4404
    %v4502 = vunpack.c.l.b16 %v4405
    %v4503 = vunpack.c.h.b16 %v4405
    %v4504 = vunpack.c.l.b16 %v4406
    %v4505 = vunpack.c.h.b16 %v4406
    %v4506 = vunpack.c.l.b16 %v4407
    %v4507 = vunpack.c.h.b16 %v4407
    %v4508 = vunpack.c.l.b16 %v4408
    %v4509 = vunpack.c.h.b16 %v4408
    %v4510 = vunpack.c.l.b16 %v4409
    %v4511 = vunpack.c.h.b16 %v4409
    %v4512 = vunpack.c.l.b16 %v4410
    %v4513 = vunpack.c.h.b16 %v4410
    %v4514 = vunpack.c.l.b16 %v4411
    %v4515 = vunpack.c.h.b16 %v4411
    %v4516 = vunpack.c.l.b16 %v4412
    %v4517 = vunpack.c.h.b16 %v4412
    %v4518 = vunpack.c.l.b16 %v4413
    %v4519 = vunpack.c.h.b16 %v4413
    %v4520 = vunpack.c.l.b16 %v4414
    %v4521 = vunpack.c.h.b16 %v4414
    %v4522 = vunpack.c.l.b16 %v4415
    %v4523 = vunpack.c.h.b16 %v4415
    %v4524 = vunpack.c.l.b16 %v4416
    %v4525 = vunpack.c.h.b16 %v4416
    %v4526 = vunpack.c.l.b16 %v4417
    %v4527 = vunpack.c.h.b16 %v4417
    %v4528 = vunpack.c.l.b16 %v4418
    %v4529 = vunpack.c.h.b16 %v4418
    %v4530 = vunpack.c.l.b16 %v4419
    %v4531 = vunpack.c.h.b16 %v4419
    %v4532 = vunpack.c.l.b16 %v4420
    %v4533 = vunpack.c.h.b16 %v4420
    %v4534 = vunpack.c.l.b16 %v4421
    %v4535 = vunpack.c.h.b16 %v4421
    %v4536 = vunpack.c.l.b16 %v4422
    %v4537 = vunpack.c.h.b16 %v4422
    %v4538 = vunpack.c.l.b16 %v4423
    %v4539 = vunpack.c.h.b16 %v4423
    %v4540 = vunpack.c.l.b16 %v4424
    %v4541 = vunpack.c.h.b16 %v4424
    %v4542 = vunpack.c.l.b16 %v4425
    %v4543 = vunpack.c.h.b16 %v4425
    %v4544 = vunpack.c.l.b16 %v4426
    %v4545 = vunpack.c.h.b16 %v4426
    %v4546 = vunpack.c.l.b16 %v4427
    %v4547 = vunpack.c.h.b16 %v4427
    %v4548 = vunpack.c.l.b16 %v4428
    %v4549 = vunpack.c.h.b16 %v4428
    %v4550 = vpack.c.b16 %v4490, %v4486
    %v4551 = vpack.c.b16 %v4491, %v4487
    %v4552 = vpack.c.b16 %v4492, %v4488
    %v4553 = vpack.c.b16 %v4493, %v4489
    %v4554 = vpack.c.b16 %v4498, %v4494
    %v4555 = vpack.c.b16 %v4499, %v4495
    %v4556 = vpack.c.b16 %v4500, %v4496
    %v4557 = vpack.c.b16 %v4501, %v4497
    %v4558 = vpack.c.b16 %v4506, %v4502
    %v4559 = vpack.c.b16 %v4507, %v4503
    %v4560 = vpack.c.b16 %v4508, %v4504
    %v4561 = vpack.c.b16 %v4509, %v4505
    %v4562 = vpack.c.b16 %v4514, %v4510
    %v4563 = vpack.c.b16 %v4515, %v4511
    %v4564 = vpack.c.b16 %v4516, %v4512
    %v4565 = vpack.c.b16 %v4517, %v4513
    %v4566 = vpack.c.b16 %v4522, %v4518
    %v4567 = vpack.c.b16 %v4523, %v4519
    %v4568 = vpack.c.b16 %v4524, %v4520
    %v4569 = vpack.c.b16 %v4525, %v4521
    %v4570 = vpack.c.b16 %v4530, %v4526
    %v4571 = vpack.c.b16 %v4531, %v4527
    %v4572 = vpack.c.b16 %v4532, %v4528
    %v4573 = vpack.c.b16 %v4533, %v4529
    %v4574 = vpack.c.b16 %v4538, %v4534
    %v4575 = vpack.c.b16 %v4539, %v4535
    %v4576 = vpack.c.b16 %v4540, %v4536
    %v4577 = vpack.c.b16 %v4541, %v4537
    %v4578 = vpack.c.b16 %v4546, %v4542
    %v4579 = vpack.c.b16 %v4547, %v4543
    %v4580 = vpack.c.b16 %v4548, %v4544
    %v4581 = vpack.c.b16 %v4549, %v4545
    %4614 = vmatprep.subr.bf16.mxu0 %v4551
    %4615 = vmatpush1.bf16.msra.mxu0 %v4550
    %4616 = vmatprep.subr.bf16.mxu0 %v4555
    %4617 = vmatpush1.bf16.msra.mxu0 %v4554
    %4618 = vmatprep.subr.bf16.mxu0 %v4559
    %4619 = vmatpush1.bf16.msra.mxu0 %v4558
    %4620 = vmatprep.subr.bf16.mxu0 %v4563
    %4621 = vmatpush1.bf16.msra.mxu0 %v4562
    %4622 = vmatprep.subr.bf16.mxu0 %v4567
    %4623 = vmatpush1.bf16.msra.mxu0 %v4566
    %4624 = vmatprep.subr.bf16.mxu0 %v4571
    %4625 = vmatpush1.bf16.msra.mxu0 %v4570
    %4626 = vmatprep.subr.bf16.mxu0 %v4575
    %4627 = vmatpush1.bf16.msra.mxu0 %v4574
    %4628 = vmatprep.subr.bf16.mxu0 %v4579
    %4629 = vmatpush1.bf16.msra.mxu0 %v4578
    %4630 = vmatprep.subr.bf16.mxu0 0
    %4631 = vmatpush1.bf16.msra.mxu0 0
    %4632 = vmatprep.subr.bf16.mxu0 0
    %4633 = vmatpush1.bf16.msra.mxu0 0
    %4634 = vmatprep.subr.bf16.mxu0 0
    %4635 = vmatpush1.bf16.msra.mxu0 0
    %4636 = vmatprep.subr.bf16.mxu0 0
    %4637 = vmatpush1.bf16.msra.mxu0 0
    %4638 = vmatprep.subr.bf16.mxu0 0
    %4639 = vmatpush1.bf16.msra.mxu0 0
    %4640 = vmatprep.subr.bf16.mxu0 0
    %4641 = vmatpush1.bf16.msra.mxu0 0
    %4642 = vmatprep.subr.bf16.mxu0 0
    %4643 = vmatpush1.bf16.msra.mxu0 0
    %4644 = vmatprep.subr.bf16.mxu0 0
    %4645 = vmatpush1.bf16.msra.mxu0 0
    %4646 = vmatprep.mubr.bf16.mxu0 0
    %4647 = vmatmul.mubr.bf16.gmra.mrb[0].mxu0 %v4429
    %v4648 = vpop.f32.mrb[0].mxu0
    %v4649 = vadd.f32 %v4437, %v4648
    %v4650 = vpop.f32.mrb[0].mxu0
    %v4651 = vadd.f32 %v4441, %v4650
    %v4652 = vpop.f32.mrb[0].mxu0
    %v4653 = vadd.f32 %v4437, %v4652
    %v4654 = vpop.f32.mrb[0].mxu0
    %v4655 = vadd.f32 %v4441, %v4654
    %4656 = vmatprep.mubr.bf16.mxu0 0
    %4657 = vmatmul.mubr.bf16.gmra.mrb[0].mxu0 %v4430
    %v4658 = vpop.f32.mrb[0].mxu0
    %v4659 = vadd.f32 %v4437, %v4658
    %v4660 = vpop.f32.mrb[0].mxu0
    %v4661 = vadd.f32 %v4441, %v4660
    %v4662 = vpop.f32.mrb[0].mxu0
    %v4663 = vadd.f32 %v4437, %v4662
    %v4664 = vpop.f32.mrb[0].mxu0
    %v4665 = vadd.f32 %v4441, %v4664
    %4666 = vdwg.mxu0
    %4667 = vmatprep.subr.bf16.mxu0 %v4553
    %4668 = vmatpush1.bf16.msra.mxu0 %v4552
    %4669 = vmatprep.subr.bf16.mxu0 %v4557
    %4670 = vmatpush1.bf16.msra.mxu0 %v4556
    %4671 = vmatprep.subr.bf16.mxu0 %v4561
    %4672 = vmatpush1.bf16.msra.mxu0 %v4560
    %4673 = vmatprep.subr.bf16.mxu0 %v4565
    %4674 = vmatpush1.bf16.msra.mxu0 %v4564
    %4675 = vmatprep.subr.bf16.mxu0 %v4569
    %4676 = vmatpush1.bf16.msra.mxu0 %v4568
    %4677 = vmatprep.subr.bf16.mxu0 %v4573
    %4678 = vmatpush1.bf16.msra.mxu0 %v4572
    %4679 = vmatprep.subr.bf16.mxu0 %v4577
    %4680 = vmatpush1.bf16.msra.mxu0 %v4576
    %4681 = vmatprep.subr.bf16.mxu0 %v4581
    %4682 = vmatpush1.bf16.msra.mxu0 %v4580
    %4683 = vmatprep.subr.bf16.mxu0 0
    %4684 = vmatpush1.bf16.msra.mxu0 0
    %4685 = vmatprep.subr.bf16.mxu0 0
    %4686 = vmatpush1.bf16.msra.mxu0 0
    %4687 = vmatprep.subr.bf16.mxu0 0
    %4688 = vmatpush1.bf16.msra.mxu0 0
    %4689 = vmatprep.subr.bf16.mxu0 0
    %4690 = vmatpush1.bf16.msra.mxu0 0
    %4691 = vmatprep.subr.bf16.mxu0 0
    %4692 = vmatpush1.bf16.msra.mxu0 0
    %4693 = vmatprep.subr.bf16.mxu0 0
    %4694 = vmatpush1.bf16.msra.mxu0 0
    %4695 = vmatprep.subr.bf16.mxu0 0
    %4696 = vmatpush1.bf16.msra.mxu0 0
    %4697 = vmatprep.subr.bf16.mxu0 0
    %4698 = vmatpush1.bf16.msra.mxu0 0
    %4699 = vmatprep.mubr.bf16.mxu0 0
    %4700 = vmatmul.mubr.bf16.gmra.mrb[0].mxu0 %v4429
    %v4701 = vpop.f32.mrb[0].mxu0
    %v4702 = vadd.f32 %v4445, %v4701
    %v4703 = vpop.f32.mrb[0].mxu0
    %v4704 = vadd.f32 %v4449, %v4703
    %v4705 = vpop.f32.mrb[0].mxu0
    %v4706 = vadd.f32 %v4445, %v4705
    %v4707 = vpop.f32.mrb[0].mxu0
    %v4708 = vadd.f32 %v4449, %v4707
    %4709 = vmatprep.mubr.bf16.mxu0 0
    %4710 = vmatmul.mubr.bf16.gmra.mrb[0].mxu0 %v4430
    %v4711 = vpop.f32.mrb[0].mxu0
    %v4712 = vadd.f32 %v4445, %v4711
    %v4713 = vpop.f32.mrb[0].mxu0
    %v4714 = vadd.f32 %v4449, %v4713
    %v4715 = vpop.f32.mrb[0].mxu0
    %v4716 = vadd.f32 %v4445, %v4715
    %v4717 = vpop.f32.mrb[0].mxu0
    %v4718 = vadd.f32 %v4449, %v4717
    %4719 = vdwg.mxu0
    %v4720 = vmul.f32 %v4649, %v4649
    %v4721 = vmul.f32 %v4651, %v4651
    %v4722 = vmul.f32 %v4702, %v4702
    %v4723 = vmul.f32 %v4704, %v4704
    %v4724 = vmul.f32 %v4653, %v4653
    %v4725 = vmul.f32 %v4655, %v4655
    %v4726 = vmul.f32 %v4706, %v4706
    %v4727 = vmul.f32 %v4708, %v4708
    %v4728 = vmul.f32 %v4659, %v4659
    %v4729 = vmul.f32 %v4661, %v4661
    %v4730 = vmul.f32 %v4712, %v4712
    %v4731 = vmul.f32 %v4714, %v4714
    %v4732 = vmul.f32 %v4663, %v4663
    %v4733 = vmul.f32 %v4665, %v4665
    %v4734 = vmul.f32 %v4716, %v4716
    %v4735 = vmul.f32 %v4718, %v4718
    %v4736 = vmul.f32 %v4649, %v4720
    %v4737 = vmul.f32 %v4651, %v4721
    %v4738 = vmul.f32 %v4702, %v4722
    %v4739 = vmul.f32 %v4704, %v4723
    %v4740 = vmul.f32 %v4653, %v4724
    %v4741 = vmul.f32 %v4655, %v4725
    %v4742 = vmul.f32 %v4706, %v4726
    %v4743 = vmul.f32 %v4708, %v4727
    %v4744 = vmul.f32 %v4659, %v4728
    %v4745 = vmul.f32 %v4661, %v4729
    %v4746 = vmul.f32 %v4712, %v4730
    %v4747 = vmul.f32 %v4714, %v4731
    %v4748 = vmul.f32 %v4663, %v4732
    %v4749 = vmul.f32 %v4665, %v4733
    %v4750 = vmul.f32 %v4716, %v4734
    %v4751 = vmul.f32 %v4718, %v4735
    %v4752 = vmul.f32 %v4736, 0.044715
    %v4753 = vmul.f32 %v4737, 0.044715
    %v4754 = vmul.f32 %v4738, 0.044715
    %v4755 = vmul.f32 %v4739, 0.044715
    %v4756 = vmul.f32 %v4740, 0.044715
    %v4757 = vmul.f32 %v4741, 0.044715
    %v4758 = vmul.f32 %v4742, 0.044715
    %v4759 = vmul.f32 %v4743, 0.044715
    %v4760 = vmul.f32 %v4744, 0.044715
    %v4761 = vmul.f32 %v4745, 0.044715
    %v4762 = vmul.f32 %v4746, 0.044715
    %v4763 = vmul.f32 %v4747, 0.044715
    %v4764 = vmul.f32 %v4748, 0.044715
    %v4765 = vmul.f32 %v4749, 0.044715
    %v4766 = vmul.f32 %v4750, 0.044715
    %v4767 = vmul.f32 %v4751, 0.044715
    %v4768 = vadd.f32 %v4649, %v4752
    %v4769 = vadd.f32 %v4651, %v4753
    %v4770 = vadd.f32 %v4702, %v4754
    %v4771 = vadd.f32 %v4704, %v4755
    %v4772 = vadd.f32 %v4653, %v4756
    %v4773 = vadd.f32 %v4655, %v4757
    %v4774 = vadd.f32 %v4706, %v4758
    %v4775 = vadd.f32 %v4708, %v4759
    %v4776 = vadd.f32 %v4659, %v4760
    %v4777 = vadd.f32 %v4661, %v4761
    %v4778 = vadd.f32 %v4712, %v4762
    %v4779 = vadd.f32 %v4714, %v4763
    %v4780 = vadd.f32 %v4663, %v4764
    %v4781 = vadd.f32 %v4665, %v4765
    %v4782 = vadd.f32 %v4716, %v4766
    %v4783 = vadd.f32 %v4718, %v4767
    %v4784 = vmul.f32 %v4768, 0.7978846
    %v4785 = vmul.f32 %v4769, 0.7978846
    %v4786 = vmul.f32 %v4770, 0.7978846
    %v4787 = vmul.f32 %v4771, 0.7978846
    %v4788 = vmul.f32 %v4772, 0.7978846
    %v4789 = vmul.f32 %v4773, 0.7978846
    %v4790 = vmul.f32 %v4774, 0.7978846
    %v4791 = vmul.f32 %v4775, 0.7978846
    %v4792 = vmul.f32 %v4776, 0.7978846
    %v4793 = vmul.f32 %v4777, 0.7978846
    %v4794 = vmul.f32 %v4778, 0.7978846
    %v4795 = vmul.f32 %v4779, 0.7978846
    %v4796 = vmul.f32 %v4780, 0.7978846
    %v4797 = vmul.f32 %v4781, 0.7978846
    %v4798 = vmul.f32 %v4782, 0.7978846
    %v4799 = vmul.f32 %v4783, 0.7978846
    %v4800 = vtanh.pop %v4784
    %v4801 = vtanh.pop %v4785
    %v4802 = vtanh.pop %v4786
    %v4803 = vtanh.pop %v4787
    %v4804 = vtanh.pop %v4788
    %v4805 = vtanh.pop %v4789
    %v4806 = vtanh.pop %v4790
    %v4807 = vtanh.pop %v4791
    %v4808 = vtanh.pop %v4792
    %v4809 = vtanh.pop %v4793
    %v4810 = vtanh.pop %v4794
    %v4811 = vtanh.pop %v4795
    %v4812 = vtanh.pop %v4796
    %v4813 = vtanh.pop %v4797
    %v4814 = vtanh.pop %v4798
    %v4815 = vtanh.pop %v4799
    %v4816 = vadd.f32 %v4800, 1.0
    %v4817 = vadd.f32 %v4801, 1.0
    %v4818 = vadd.f32 %v4802, 1.0
    %v4819 = vadd.f32 %v4803, 1.0
    %v4820 = vadd.f32 %v4804, 1.0
    %v4821 = vadd.f32 %v4805, 1.0
    %v4822 = vadd.f32 %v4806, 1.0
    %v4823 = vadd.f32 %v4807, 1.0
    %v4824 = vadd.f32 %v4808, 1.0
    %v4825 = vadd.f32 %v4809, 1.0
    %v4826 = vadd.f32 %v4810, 1.0
    %v4827 = vadd.f32 %v4811, 1.0
    %v4828 = vadd.f32 %v4812, 1.0
    %v4829 = vadd.f32 %v4813, 1.0
    %v4830 = vadd.f32 %v4814, 1.0
    %v4831 = vadd.f32 %v4815, 1.0
    %v4832 = vmul.f32 %v4816, 0.5
    %v4833 = vmul.f32 %v4817, 0.5
    %v4834 = vmul.f32 %v4818, 0.5
    %v4835 = vmul.f32 %v4819, 0.5
    %v4836 = vmul.f32 %v4820, 0.5
    %v4837 = vmul.f32 %v4821, 0.5
    %v4838 = vmul.f32 %v4822, 0.5
    %v4839 = vmul.f32 %v4823, 0.5
    %v4840 = vmul.f32 %v4824, 0.5
    %v4841 = vmul.f32 %v4825, 0.5
    %v4842 = vmul.f32 %v4826, 0.5
    %v4843 = vmul.f32 %v4827, 0.5
    %v4844 = vmul.f32 %v4828, 0.5
    %v4845 = vmul.f32 %v4829, 0.5
    %v4846 = vmul.f32 %v4830, 0.5
    %v4847 = vmul.f32 %v4831, 0.5
    %v4848 = vmul.f32 %v4649, %v4832
    %v4849 = vmul.f32 %v4651, %v4833
    %v4850 = vmul.f32 %v4702, %v4834
    %v4851 = vmul.f32 %v4704, %v4835
    %v4852 = vmul.f32 %v4653, %v4836
    %v4853 = vmul.f32 %v4655, %v4837
    %v4854 = vmul.f32 %v4706, %v4838
    %v4855 = vmul.f32 %v4708, %v4839
    %v4856 = vmul.f32 %v4659, %v4840
    %v4857 = vmul.f32 %v4661, %v4841
    %v4858 = vmul.f32 %v4712, %v4842
    %v4859 = vmul.f32 %v4714, %v4843
    %v4860 = vmul.f32 %v4663, %v4844
    %v4861 = vmul.f32 %v4665, %v4845
    %v4862 = vmul.f32 %v4716, %v4846
    %v4863 = vmul.f32 %v4718, %v4847
    %s4864 = scalar_lea.vmem %s15, 256
    %v4865 = vld [vmem:[%s4864] sm:$0xf]
    %v4866 = vld [vmem:[%s4864 + $0x4] sm:$0xf]
    %v4867 = vld [vmem:[%s4864 + $0x8] sm:$0xf]
    %v4868 = vld [vmem:[%s4864 + $0xc] sm:$0xf]
    %v4869 = vld [vmem:[%s4864 + $0x10] sm:$0xf]
    %v4870 = vld [vmem:[%s4864 + $0x14] sm:$0xf]
    %v4871 = vld [vmem:[%s4864 + $0x18] sm:$0xf]
    %v4872 = vld [vmem:[%s4864 + $0x1c] sm:$0xf]
    %v4873 = vld [vmem:[%s4864 + $0x20] sm:$0xf]
    %v4874 = vld [vmem:[%s4864 + $0x24] sm:$0xf]
    %v4875 = vld [vmem:[%s4864 + $0x28] sm:$0xf]
    %v4876 = vld [vmem:[%s4864 + $0x2c] sm:$0xf]
    %v4877 = vld [vmem:[%s4864 + $0x30] sm:$0xf]
    %v4878 = vld [vmem:[%s4864 + $0x34] sm:$0xf]
    %v4879 = vld [vmem:[%s4864 + $0x38] sm:$0xf]
    %v4880 = vld [vmem:[%s4864 + $0x3c] sm:$0xf]
    %v4881 = vld [vmem:[%s4864 + $0x40] sm:$0xf]
    %v4882 = vld [vmem:[%s4864 + $0x44] sm:$0xf]
    %v4883 = vld [vmem:[%s4864 + $0x48] sm:$0xf]
    %v4884 = vld [vmem:[%s4864 + $0x4c] sm:$0xf]
    %v4885 = vld [vmem:[%s4864 + $0x50] sm:$0xf]
    %v4886 = vld [vmem:[%s4864 + $0x54] sm:$0xf]
    %v4887 = vld [vmem:[%s4864 + $0x58] sm:$0xf]
    %v4888 = vld [vmem:[%s4864 + $0x5c] sm:$0xf]
    %v4889 = vld [vmem:[%s4864 + $0x60] sm:$0xf]
    %v4890 = vld [vmem:[%s4864 + $0x64] sm:$0xf]
    %v4891 = vld [vmem:[%s4864 + $0x68] sm:$0xf]
    %v4892 = vld [vmem:[%s4864 + $0x6c] sm:$0xf]
    %v4893 = vld [vmem:[%s4864 + $0x70] sm:$0xf]
    %v4894 = vld [vmem:[%s4864 + $0x74] sm:$0xf]
    %v4895 = vld [vmem:[%s4864 + $0x78] sm:$0xf]
    %v4896 = vld [vmem:[%s4864 + $0x7c] sm:$0xf]
    %v4897 = vld [vmem:[%s4864 + $0x80] sm:$0xf]
    %v4898 = vld [vmem:[%s4864 + $0x84] sm:$0xf]
    %v4899 = vld [vmem:[%s4864 + $0x88] sm:$0xf]
    %v4900 = vld [vmem:[%s4864 + $0x8c] sm:$0xf]
    %v4901 = vld [vmem:[%s4864 + $0x90] sm:$0xf]
    %v4902 = vld [vmem:[%s4864 + $0x94] sm:$0xf]
    %v4903 = vld [vmem:[%s4864 + $0x98] sm:$0xf]
    %v4904 = vld [vmem:[%s4864 + $0x9c] sm:$0xf]
    %v4905 = vld [vmem:[%s4864 + $0xa0] sm:$0xf]
    %v4906 = vld [vmem:[%s4864 + $0xa4] sm:$0xf]
    %v4907 = vld [vmem:[%s4864 + $0xa8] sm:$0xf]
    %v4908 = vld [vmem:[%s4864 + $0xac] sm:$0xf]
    %v4909 = vld [vmem:[%s4864 + $0xb0] sm:$0xf]
    %v4910 = vld [vmem:[%s4864 + $0xb4] sm:$0xf]
    %v4911 = vld [vmem:[%s4864 + $0xb8] sm:$0xf]
    %v4912 = vld [vmem:[%s4864 + $0xbc] sm:$0xf]
    %v4913 = vld [vmem:[%s4864 + $0xc0] sm:$0xf]
    %v4914 = vld [vmem:[%s4864 + $0xc4] sm:$0xf]
    %v4915 = vld [vmem:[%s4864 + $0xc8] sm:$0xf]
    %v4916 = vld [vmem:[%s4864 + $0xcc] sm:$0xf]
    %v4917 = vld [vmem:[%s4864 + $0xd0] sm:$0xf]
    %v4918 = vld [vmem:[%s4864 + $0xd4] sm:$0xf]
    %v4919 = vld [vmem:[%s4864 + $0xd8] sm:$0xf]
    %v4920 = vld [vmem:[%s4864 + $0xdc] sm:$0xf]
    %v4921 = vld [vmem:[%s4864 + $0xe0] sm:$0xf]
    %v4922 = vld [vmem:[%s4864 + $0xe4] sm:$0xf]
    %v4923 = vld [vmem:[%s4864 + $0xe8] sm:$0xf]
    %v4924 = vld [vmem:[%s4864 + $0xec] sm:$0xf]
    %v4925 = vld [vmem:[%s4864 + $0xf0] sm:$0xf]
    %v4926 = vld [vmem:[%s4864 + $0xf4] sm:$0xf]
    %v4927 = vld [vmem:[%s4864 + $0xf8] sm:$0xf]
    %v4928 = vld [vmem:[%s4864 + $0xfc] sm:$0xf]
    %v4929 = vpack.c.bf16 %v4852, %v4848
    %v4930 = vpack.c.bf16 %v4853, %v4849
    %v4931 = vpack.c.bf16 %v4854, %v4850
    %v4932 = vpack.c.bf16 %v4855, %v4851
    %v4933 = vpack.c.bf16 %v4860, %v4856
    %v4934 = vpack.c.bf16 %v4861, %v4857
    %v4935 = vpack.c.bf16 %v4862, %v4858
    %v4936 = vpack.c.bf16 %v4863, %v4859
    %s4937 = scalar_lea.vmem %s16, 1
    %v4938 = vld [vmem:[%s4937] sm:$0x1]
    %v4940 = vlaneseq
    %v4941 = vshrl.u32 %v4940, 7
    %v4942 = vsub.s32 0, %v4941
    %v4943 = vrot.slane %v4938, %v4942
    %v5009 = vunpack.c.l.b16 %v4865
    %v5010 = vunpack.c.l.b16 %v4866
    %v5011 = vunpack.c.l.b16 %v4867
    %v5012 = vunpack.c.l.b16 %v4868
    %v5013 = vunpack.c.l.b16 %v4869
    %v5014 = vunpack.c.l.b16 %v4870
    %v5015 = vunpack.c.l.b16 %v4871
    %v5016 = vunpack.c.l.b16 %v4872
    %v5017 = vunpack.c.l.b16 %v4873
    %v5018 = vunpack.c.l.b16 %v4874
    %v5019 = vunpack.c.l.b16 %v4875
    %v5020 = vunpack.c.l.b16 %v4876
    %v5021 = vunpack.c.l.b16 %v4877
    %v5022 = vunpack.c.l.b16 %v4878
    %v5023 = vunpack.c.l.b16 %v4879
    %v5024 = vunpack.c.l.b16 %v4880
    %v5025 = vunpack.c.l.b16 %v4881
    %v5026 = vunpack.c.l.b16 %v4882
    %v5027 = vunpack.c.l.b16 %v4883
    %v5028 = vunpack.c.l.b16 %v4884
    %v5029 = vunpack.c.l.b16 %v4885
    %v5030 = vunpack.c.l.b16 %v4886
    %v5031 = vunpack.c.l.b16 %v4887
    %v5032 = vunpack.c.l.b16 %v4888
    %v5033 = vunpack.c.l.b16 %v4889
    %v5034 = vunpack.c.l.b16 %v4890
    %v5035 = vunpack.c.l.b16 %v4891
    %v5036 = vunpack.c.l.b16 %v4892
    %v5037 = vunpack.c.l.b16 %v4893
    %v5038 = vunpack.c.l.b16 %v4894
    %v5039 = vunpack.c.l.b16 %v4895
    %v5040 = vunpack.c.l.b16 %v4896
    %v5041 = vunpack.c.l.b16 %v4897
    %v5042 = vunpack.c.l.b16 %v4898
    %v5043 = vunpack.c.l.b16 %v4899
    %v5044 = vunpack.c.l.b16 %v4900
    %v5045 = vunpack.c.l.b16 %v4901
    %v5046 = vunpack.c.l.b16 %v4902
    %v5047 = vunpack.c.l.b16 %v4903
    %v5048 = vunpack.c.l.b16 %v4904
    %v5049 = vunpack.c.l.b16 %v4905
    %v5050 = vunpack.c.l.b16 %v4906
    %v5051 = vunpack.c.l.b16 %v4907
    %v5052 = vunpack.c.l.b16 %v4908
    %v5053 = vunpack.c.l.b16 %v4909
    %v5054 = vunpack.c.l.b16 %v4910
    %v5055 = vunpack.c.l.b16 %v4911
    %v5056 = vunpack.c.l.b16 %v4912
    %v5057 = vunpack.c.l.b16 %v4913
    %v5058 = vunpack.c.l.b16 %v4914
    %v5059 = vunpack.c.l.b16 %v4915
    %v5060 = vunpack.c.l.b16 %v4916
    %v5061 = vunpack.c.l.b16 %v4917
    %v5062 = vunpack.c.l.b16 %v4918
    %v5063 = vunpack.c.l.b16 %v4919
    %v5064 = vunpack.c.l.b16 %v4920
    %v5065 = vunpack.c.l.b16 %v4921
    %v5066 = vunpack.c.l.b16 %v4922
    %v5067 = vunpack.c.l.b16 %v4923
    %v5068 = vunpack.c.l.b16 %v4924
    %v5069 = vunpack.c.l.b16 %v4925
    %v5070 = vunpack.c.l.b16 %v4926
    %v5071 = vunpack.c.l.b16 %v4927
    %v5072 = vunpack.c.l.b16 %v4928
    %v5073 = vpack.c.b16 %v5010, %v5009
    %v5074 = vpack.c.b16 %v5012, %v5011
    %v5075 = vpack.c.b16 %v5014, %v5013
    %v5076 = vpack.c.b16 %v5016, %v5015
    %v5077 = vpack.c.b16 %v5018, %v5017
    %v5078 = vpack.c.b16 %v5020, %v5019
    %v5079 = vpack.c.b16 %v5022, %v5021
    %v5080 = vpack.c.b16 %v5024, %v5023
    %v5081 = vpack.c.b16 %v5026, %v5025
    %v5082 = vpack.c.b16 %v5028, %v5027
    %v5083 = vpack.c.b16 %v5030, %v5029
    %v5084 = vpack.c.b16 %v5032, %v5031
    %v5085 = vpack.c.b16 %v5034, %v5033
    %v5086 = vpack.c.b16 %v5036, %v5035
    %v5087 = vpack.c.b16 %v5038, %v5037
    %v5088 = vpack.c.b16 %v5040, %v5039
    %v5089 = vpack.c.b16 %v5042, %v5041
    %v5090 = vpack.c.b16 %v5044, %v5043
    %v5091 = vpack.c.b16 %v5046, %v5045
    %v5092 = vpack.c.b16 %v5048, %v5047
    %v5093 = vpack.c.b16 %v5050, %v5049
    %v5094 = vpack.c.b16 %v5052, %v5051
    %v5095 = vpack.c.b16 %v5054, %v5053
    %v5096 = vpack.c.b16 %v5056, %v5055
    %v5097 = vpack.c.b16 %v5058, %v5057
    %v5098 = vpack.c.b16 %v5060, %v5059
    %v5099 = vpack.c.b16 %v5062, %v5061
    %v5100 = vpack.c.b16 %v5064, %v5063
    %v5101 = vpack.c.b16 %v5066, %v5065
    %v5102 = vpack.c.b16 %v5068, %v5067
    %v5103 = vpack.c.b16 %v5070, %v5069
    %v5104 = vpack.c.b16 %v5072, %v5071
    %5137 = vmatprep.subr.bf16.mxu0 0
    %5138 = vmatpush1.bf16.msra.mxu0 %v5073
    %5139 = vmatprep.subr.bf16.mxu0 0
    %5140 = vmatpush1.bf16.msra.mxu0 %v5074
    %5141 = vmatprep.subr.bf16.mxu0 0
    %5142 = vmatpush1.bf16.msra.mxu0 %v5075
    %5143 = vmatprep.subr.bf16.mxu0 0
    %5144 = vmatpush1.bf16.msra.mxu0 %v5076
    %5145 = vmatprep.subr.bf16.mxu0 0
    %5146 = vmatpush1.bf16.msra.mxu0 %v5077
    %5147 = vmatprep.subr.bf16.mxu0 0
    %5148 = vmatpush1.bf16.msra.mxu0 %v5078
    %5149 = vmatprep.subr.bf16.mxu0 0
    %5150 = vmatpush1.bf16.msra.mxu0 %v5079
    %5151 = vmatprep.subr.bf16.mxu0 0
    %5152 = vmatpush1.bf16.msra.mxu0 %v5080
    %5153 = vmatprep.subr.bf16.mxu0 0
    %5154 = vmatpush1.bf16.msra.mxu0 %v5081
    %5155 = vmatprep.subr.bf16.mxu0 0
    %5156 = vmatpush1.bf16.msra.mxu0 %v5082
    %5157 = vmatprep.subr.bf16.mxu0 0
    %5158 = vmatpush1.bf16.msra.mxu0 %v5083
    %5159 = vmatprep.subr.bf16.mxu0 0
    %5160 = vmatpush1.bf16.msra.mxu0 %v5084
    %5161 = vmatprep.subr.bf16.mxu0 0
    %5162 = vmatpush1.bf16.msra.mxu0 %v5085
    %5163 = vmatprep.subr.bf16.mxu0 0
    %5164 = vmatpush1.bf16.msra.mxu0 %v5086
    %5165 = vmatprep.subr.bf16.mxu0 0
    %5166 = vmatpush1.bf16.msra.mxu0 %v5087
    %5167 = vmatprep.subr.bf16.mxu0 0
    %5168 = vmatpush1.bf16.msra.mxu0 %v5088
    %5169 = vmatprep.mubr.bf16.mxu0 %v4930
    %5170 = vmatmul.mubr.bf16.gmra.mrb[0].mxu0 %v4929
    %v5171 = vpop.f32.mrb[0].mxu0
    %v5172 = vadd.f32 %v4943, %v5171
    %v5173 = vpop.f32.mrb[0].mxu0
    %v5174 = vpop.f32.mrb[0].mxu0
    %v5175 = vadd.f32 %v4943, %v5174
    %v5176 = vpop.f32.mrb[0].mxu0
    %5177 = vmatprep.mubr.bf16.mxu0 %v4934
    %5178 = vmatmul.mubr.bf16.gmra.mrb[0].mxu0 %v4933
    %v5179 = vpop.f32.mrb[0].mxu0
    %v5180 = vadd.f32 %v4943, %v5179
    %v5181 = vpop.f32.mrb[0].mxu0
    %v5182 = vpop.f32.mrb[0].mxu0
    %v5183 = vadd.f32 %v4943, %v5182
    %v5184 = vpop.f32.mrb[0].mxu0
    %5185 = vdwg.mxu0
    %5186 = vmatprep.subr.bf16.mxu0 0
    %5187 = vmatpush1.bf16.msra.mxu0 %v5089
    %5188 = vmatprep.subr.bf16.mxu0 0
    %5189 = vmatpush1.bf16.msra.mxu0 %v5090
    %5190 = vmatprep.subr.bf16.mxu0 0
    %5191 = vmatpush1.bf16.msra.mxu0 %v5091
    %5192 = vmatprep.subr.bf16.mxu0 0
    %5193 = vmatpush1.bf16.msra.mxu0 %v5092
    %5194 = vmatprep.subr.bf16.mxu0 0
    %5195 = vmatpush1.bf16.msra.mxu0 %v5093
    %5196 = vmatprep.subr.bf16.mxu0 0
    %5197 = vmatpush1.bf16.msra.mxu0 %v5094
    %5198 = vmatprep.subr.bf16.mxu0 0
    %5199 = vmatpush1.bf16.msra.mxu0 %v5095
    %5200 = vmatprep.subr.bf16.mxu0 0
    %5201 = vmatpush1.bf16.msra.mxu0 %v5096
    %5202 = vmatprep.subr.bf16.mxu0 0
    %5203 = vmatpush1.bf16.msra.mxu0 %v5097
    %5204 = vmatprep.subr.bf16.mxu0 0
    %5205 = vmatpush1.bf16.msra.mxu0 %v5098
    %5206 = vmatprep.subr.bf16.mxu0 0
    %5207 = vmatpush1.bf16.msra.mxu0 %v5099
    %5208 = vmatprep.subr.bf16.mxu0 0
    %5209 = vmatpush1.bf16.msra.mxu0 %v5100
    %5210 = vmatprep.subr.bf16.mxu0 0
    %5211 = vmatpush1.bf16.msra.mxu0 %v5101
    %5212 = vmatprep.subr.bf16.mxu0 0
    %5213 = vmatpush1.bf16.msra.mxu0 %v5102
    %5214 = vmatprep.subr.bf16.mxu0 0
    %5215 = vmatpush1.bf16.msra.mxu0 %v5103
    %5216 = vmatprep.subr.bf16.mxu0 0
    %5217 = vmatpush1.bf16.msra.mxu0 %v5104
    %5218 = vmatprep.mubr.bf16.mxu0 %v4932
    %5219 = vmatmul.mubr.bf16.gmra.mrb[0].mxu0 %v4931
    %v5220 = vpop.f32.mrb[0].mxu0
    %v5221 = vadd.f32 %v5172, %v5220
    %v5222 = vpop.f32.mrb[0].mxu0
    %v5223 = vpop.f32.mrb[0].mxu0
    %v5224 = vadd.f32 %v5175, %v5223
    %v5225 = vpop.f32.mrb[0].mxu0
    %5226 = vmatprep.mubr.bf16.mxu0 %v4936
    %5227 = vmatmul.mubr.bf16.gmra.mrb[0].mxu0 %v4935
    %v5228 = vpop.f32.mrb[0].mxu0
    %v5229 = vadd.f32 %v5180, %v5228
    %v5230 = vpop.f32.mrb[0].mxu0
    %v5231 = vpop.f32.mrb[0].mxu0
    %v5232 = vadd.f32 %v5183, %v5231
    %v5233 = vpop.f32.mrb[0].mxu0
    %5234 = vdwg.mxu0
    %s5235 = scalar_lea.vmem %s17, 1
    %v5236 = vld [vmem:[%s5235] sm:$0x1]
    %v5238 = vlaneseq
    %v5239 = vshrl.u32 %v5238, 7
    %v5240 = vsub.s32 0, %v5239
    %v5241 = vrot.slane %v5236, %v5240
    %v5243 = vmul.f32 %v5241, %v5221
    %v5244 = vmul.f32 %v5241, %v5224
    %v5245 = vmul.f32 %v5241, %v5229
    %v5246 = vmul.f32 %v5241, %v5232
    %v5247 = vadd.f32 %v4316, %v5243
    %v5248 = vadd.f32 %v4317, %v5244
    %v5249 = vadd.f32 %v4318, %v5245
    %v5250 = vadd.f32 %v4319, %v5246
    %v5251 = vld [vmem:[%s18] sm:$0x1]
    %v5252 = vld [vmem:[%s19] sm:$0x1]
    %5253 = vadd.xlane.f32.xlu0 %v5247
    %v5254 = vpop.xlane.xlu0 %5253
    %5255 = vadd.xlane.f32.xlu0 %v5248
    %v5256 = vpop.xlane.xlu0 %5255
    %5257 = vadd.xlane.f32.xlu0 %v5249
    %v5258 = vpop.xlane.xlu0 %5257
    %5259 = vadd.xlane.f32.xlu0 %v5250
    %v5260 = vpop.xlane.xlu0 %5259
    %v5261 = vmul.f32 %v5254, %v579
    %v5262 = vmul.f32 %v5256, %v579
    %v5263 = vmul.f32 %v5258, %v579
    %v5264 = vmul.f32 %v5260, %v579
    %v5265 = vmul.f32 %v5247, %v5247
    %v5266 = vmul.f32 %v5248, %v5248
    %v5267 = vmul.f32 %v5249, %v5249
    %v5268 = vmul.f32 %v5250, %v5250
    %5269 = vadd.xlane.f32.xlu0 %v5265
    %v5270 = vpop.xlane.xlu0 %5269
    %5271 = vadd.xlane.f32.xlu0 %v5266
    %v5272 = vpop.xlane.xlu0 %5271
    %5273 = vadd.xlane.f32.xlu0 %v5267
    %v5274 = vpop.xlane.xlu0 %5273
    %5275 = vadd.xlane.f32.xlu0 %v5268
    %v5276 = vpop.xlane.xlu0 %5275
    %v5277 = vmul.f32 %v5270, %v579
    %v5278 = vmul.f32 %v5272, %v579
    %v5279 = vmul.f32 %v5274, %v579
    %v5280 = vmul.f32 %v5276, %v579
    %v5281 = vmul.f32 %v5261, %v5261
    %v5282 = vmul.f32 %v5262, %v5262
    %v5283 = vmul.f32 %v5263, %v5263
    %v5284 = vmul.f32 %v5264, %v5264
    %v5285 = vsub.f32 %v5277, %v5281
    %v5286 = vsub.f32 %v5278, %v5282
    %v5287 = vsub.f32 %v5279, %v5283
    %v5288 = vsub.f32 %v5280, %v5284
    %v5289 = vsub.f32 %v5247, %v5261
    %v5290 = vsub.f32 %v5248, %v5262
    %v5291 = vsub.f32 %v5249, %v5263
    %v5292 = vsub.f32 %v5250, %v5264
    %v5293 = vadd.f32 %v5285, 1e-06
    %v5294 = vadd.f32 %v5286, 1e-06
    %v5295 = vadd.f32 %v5287, 1e-06
    %v5296 = vadd.f32 %v5288, 1e-06
    %v5297 = vrsqrt.pop %v5293
    %v5298 = vrsqrt.pop %v5294
    %v5299 = vrsqrt.pop %v5295
    %v5300 = vrsqrt.pop %v5296
    %v5301 = vmul.f32 %v5289, %v5297
    %v5302 = vmul.f32 %v5290, %v5298
    %v5303 = vmul.f32 %v5291, %v5299
    %v5304 = vmul.f32 %v5292, %v5300
    %v5306 = vlaneseq
    %v5307 = vshrl.u32 %v5306, 7
    %v5308 = vsub.s32 0, %v5307
    %v5309 = vrot.slane %v5251, %v5308
    %v5311 = vmul.f32 %v5301, %v5309
    %v5312 = vmul.f32 %v5302, %v5309
    %v5313 = vmul.f32 %v5303, %v5309
    %v5314 = vmul.f32 %v5304, %v5309
    %v5316 = vlaneseq
    %v5317 = vshrl.u32 %v5316, 7
    %v5318 = vsub.s32 0, %v5317
    %v5319 = vrot.slane %v5252, %v5318
    %v5321 = vadd.f32 %v5311, %v5319
    %v5322 = vadd.f32 %v5312, %v5319
    %v5323 = vadd.f32 %v5313, %v5319
    %v5324 = vadd.f32 %v5314, %v5319
    %v5326 = vrot.slane %v5322, 7
    %vm5328 = vcmask 1040384
    %v5329 = vsel %vm5328, %v5321, %v5326
    %v5331 = vrot.slane %v5324, 7
    %v5333 = vsel %vm5328, %v5323, %v5331
    %v5334 = vmul.f32 %v5329, %v5329
    %vm5335 = vcmask 1041408
    %v5336 = vsel %vm5335, %v5334, 0.0
    %5337 = vadd.xlane.f32.xlu0 %v5336
    %v5338 = vpop.xlane.xlu0 %5337
    %v5339 = vrsqrt.pop %v5338
    %v5340 = vmul.f32 %v5338, %v5339
    %vm5341 = vcmp.eq.f32.partialorder %v5338, inf
    %v5342 = vsel %vm5341, %v5338, %v5340
    %vm5343 = vcmp.eq.f32.partialorder %v5338, 0.0
    %v5344 = vand.u32 %v5338, 2147483648
    %v5345 = vsel %vm5343, %v5344, %v5342
    %v5346 = vmax.f32 %v5345, 1e-08
    %v5347 = vmul.f32 %v5333, %v5333
    %v5348 = vsel %vm5335, %v5347, 0.0
    %5349 = vadd.xlane.f32.xlu0 %v5348
    %v5350 = vpop.xlane.xlu0 %5349
    %v5351 = vrsqrt.pop %v5350
    %v5352 = vmul.f32 %v5350, %v5351
    %vm5353 = vcmp.eq.f32.partialorder %v5350, inf
    %v5354 = vsel %vm5353, %v5350, %v5352
    %vm5355 = vcmp.eq.f32.partialorder %v5350, 0.0
    %v5356 = vand.u32 %v5350, 2147483648
    %v5357 = vsel %vm5355, %v5356, %v5354
    %v5358 = vmax.f32 %v5357, 1e-08
    %v5359 = vrcp.pop %v5346
    %v5360 = vmul.f32 %v5329, %v5359
    %v5361 = vrcp.pop %v5358
    %v5362 = vmul.f32 %v5333, %v5361
    %v5363 = vmul.f32 %v5360, %v5362
    %v5364 = vsel %vm5335, %v5363, 0.0
    %5365 = vadd.xlane.f32.xlu0 %v5364
    %v5366 = vpop.xlane.xlu0 %5365
    %v5367 = vsel %vm5335, %v5366, 0.0
    %v5368 = vrot.slane %v5367, 4
    %v5369 = vadd.f32 %v5367, %v5368
    %v5370 = vrot.slane %v5369, 2
    %v5371 = vadd.f32 %v5369, %v5370
    %v5372 = vrot.slane %v5371, 1
    %v5373 = vadd.f32 %v5371, %v5372
    %v5374 = vsub.f32 0.0, %v5373
    %v5375 = vrcp.pop 2.0
    %v5376 = vmul.f32 %v5374, %v5375
    %vm5377 = vcmask 0
    %5378 = vst.msk [vmem:[#allocation2] sm:$0x1] %vm5377, %v5376
    // Predicated region
    $region82: #{vit_dino_loss.1} parent=1 // pred_check
      _
    $region83: #{vit_dino_loss.1} parent=1 // pred_check_branch
      %5380 = sbr.rel (0) target = $region85
    $region84: #{vit_dino_loss.1} parent=1 // pred_region
      %s5382 = ssub.s32 16, 16
      %5383 = vsyncadd [#allocation3], %s5382
      %s5385 = sshll.u32 [#allocation2], 4
      %s5386 = int_to_ptr.vmem [resolvable:$true] %s5385
      %5388 = dma.vmem_to_hbm [thread:$0]  %s5386, 16, %s20, [#allocation3]
    $region85: #{vit_dino_loss.1} parent=1 // pred_fallthru
      _
    // Predicated region
    $region86: #{vit_dino_loss.1} parent=1 // pred_check
      _
    $region87: #{vit_dino_loss.1} parent=1 // pred_check_branch
      %5390 = sbr.rel (0) target = $region89
    $region88: #{vit_dino_loss.1} parent=1 // pred_region
      %5391 = dma.done [#allocation3], 16
    $region89: #{vit_dino_loss.1} parent=1 // pred_fallthru
      _
    %5392 = vsyncpa [#allocation3], 1

</llo_original>
